<compile_context>
chip_gen: v7x
topology: tpu7x:2x2x1
jax: 0.10.0
libtpu: 0.0.40
codegen_flags: <defaults>
</compile_context>

<pallas_src>
import functools

import jax
import jax.numpy as jnp
from jax import lax
from jax.experimental import pallas as pl
from jax.experimental.pallas import tpu as pltpu

EPS = 1e-5
LANE = 128


def _round_up(x, m):
    return (x + m - 1) // m * m


# ------------------------------ Pallas kernel ------------------------------ #

def _residual_block_kernel(xph_ref, w1_ref, b1_ref, w2_ref, b2s_ref, ws_ref,
                           o_ref, h1_ref, *, stride, out_h, out_w):
    """Fused residual block for one image.

    xph_ref : (s*s, Hq, Wq, Cin)        bf16  phase-split, spatially padded input
                                              (channels UNPADDED in HBM)
    w1_ref  : (3, K1, Cout_p)           bf16  conv1 weight, BN1 folded, kw fused in K
    b1_ref  : (1, Cout_p)               f32   folded BN1 bias
    w2_ref  : (3, 3*Cout_p, Cout_p)     bf16  conv2 weight, BN2 folded, kw fused in K
    b2s_ref : (1, Cout_p)               f32   folded BN2 bias + folded shortcut bias
    ws_ref  : (Ks, Cout_p)              bf16  shortcut 1x1 weight (identity -> eye)
    o_ref   : (1, out_h*out_w, Cout_p)  f32   lane-dense output
    h1_ref  : (out_h+2, out_w+2, Cout_p) bf16 VMEM scratch (conv2 input, zero border)
    """
    s = stride
    p = out_h * out_w
    cin = xph_ref.shape[-1]
    cout_p = w2_ref.shape[-1]
    k1 = w1_ref.shape[1]          # round_up(3*cin, 128)
    ks = ws_ref.shape[0]          # round_up(cin, 128)

    # ---- conv1 (3x3, stride s) + BN1 + ReLU : 3 K-fused matmuls ------------ #
    acc1 = jnp.broadcast_to(b1_ref[...], (p, cout_p))            # seed with bias
    zpad1 = (jnp.zeros((p, k1 - 3 * cin), jnp.bfloat16)
             if k1 > 3 * cin else None)
    for kh in range(3):
        taps = []
        for kw in range(3):
            ph = (kh % s) * s + (kw % s)
            oh, ow = kh // s, kw // s
            taps.append(
                xph_ref[ph, oh:oh + out_h, ow:ow + out_w, :].reshape(p, cin))
        if zpad1 is not None:
            taps.append(zpad1)                                    # pad K to 128 mult
        acc1 = acc1 + jnp.dot(jnp.concatenate(taps, axis=-1), w1_ref[kh],
                              preferred_element_type=jnp.float32)
    out1 = jnp.maximum(acc1, 0.0).astype(h1_ref.dtype)            # (P, Cout_p) bf16

    # Stage conv1 output in the bf16 scratch with a zero 1-pixel border
    # (= conv2's padding).  Border rows/cols only; interior written once.
    zrow = jnp.zeros((1, out_w + 2, cout_p), h1_ref.dtype)
    zcol = jnp.zeros((out_h, 1, cout_p), h1_ref.dtype)
    h1_ref[0:1, :, :] = zrow
    h1_ref[out_h + 1:out_h + 2, :, :] = zrow
    h1_ref[1:out_h + 1, :, :] = jnp.concatenate(
        [zcol, out1.reshape(out_h, out_w, cout_p), zcol], axis=1)

    # ---- shortcut (1x1 stride-s conv + BN, identity == eye) seeds acc2 ----- #
    ph_sc = (1 % s) * s + (1 % s)
    off = 1 // s
    sc = xph_ref[ph_sc, off:off + out_h, off:off + out_w, :].reshape(p, cin)
    if ks > cin:
        sc = jnp.concatenate(
            [sc, jnp.zeros((p, ks - cin), jnp.bfloat16)], axis=-1)
    acc2 = jnp.dot(sc, ws_ref[...],
                   preferred_element_type=jnp.float32) + b2s_ref[...]

    # ---- conv2 (3x3, stride 1) + BN2 : 3 K-fused matmuls, K = 3*Cout_p ------ #
    for kh in range(3):
        cat = jnp.concatenate(
            [h1_ref[kh:kh + out_h, kw:kw + out_w, :].reshape(p, cout_p)
             for kw in range(3)], axis=-1)                        # (P, 3*Cout_p) bf16
        acc2 = acc2 + jnp.dot(cat, w2_ref[kh],
                              preferred_element_type=jnp.float32)

    o_ref[0] = jnp.maximum(acc2, 0.0).astype(o_ref.dtype)


# --------------------------------- wrapper ---------------------------------- #

def _phase_split(x_nhwc, stride):
    """Spatial pad=1, then split into stride*stride phases (space-to-depth).

    out[n*s*s + ph*s + pw, i, j, c] == x_pad[n, i*s + ph, j*s + pw, c]
    so every tap of a stride-s 3x3 conv becomes a stride-1 window.
    """
    n, h, w, c = x_nhwc.shape
    s = stride
    hp, wp = h + 2, w + 2
    hq, wq = -(-hp // s), -(-wp // s)
    xp = jnp.pad(x_nhwc,
                 ((0, 0), (1, 1 + hq * s - hp), (1, 1 + wq * s - wp), (0, 0)))
    xp = xp.reshape(n, hq, s, wq, s, c)
    xp = jnp.transpose(xp, (0, 2, 4, 1, 3, 5))          # (N, s, s, Hq, Wq, C)
    return xp.reshape(n * s * s, hq, wq, c), hq, wq


@functools.partial(jax.jit, static_argnames=("stride", "cout"))
def residual_block_forward(x_nchw, params, *, stride, cout):
    n, cin, h, w = x_nchw.shape
    cout_p = params["w2"].shape[-1]
    s = stride
    out_h = (h + 2 - 3) // s + 1
    out_w = (w + 2 - 3) // s + 1
    p = out_h * out_w

    # Pre-pass fused with the bf16 cast; channels stay UNPADDED in HBM.
    x = jnp.transpose(x_nchw, (0, 2, 3, 1)).astype(jnp.bfloat16)   # NHWC bf16
    xph, hq, wq = _phase_split(x, s)                               # (N*s*s, Hq, Wq, Cin)

    kernel = functools.partial(_residual_block_kernel, stride=s,
                               out_h=out_h, out_w=out_w)

    k1 = params["w1"].shape[1]
    ks = params["ws"].shape[0]
    flops = 2 * n * p * (3 * k1 * cout_p + 3 * (3 * cout_p) * cout_p + ks * cout_p)
    bytes_accessed = (xph.size * 2
                      + (params["w1"].size + params["w2"].size + params["ws"].size) * 2
                      + (params["b1"].size + params["b2s"].size) * 4
                      + n * p * cout_p * 4)

    # Explicit scoped-VMEM budget sized from the actual chip (default scoped
    # limit is only 16/32 MiB); keep headroom vs. physical (64 MiB on v7x).
    try:
        vmem_limit = min(int(pltpu.get_tpu_info().vmem_capacity_bytes) * 3 // 4,
                         100 * 1024 * 1024)
    except Exception:
        vmem_limit = 48 * 1024 * 1024

    out = pl.pallas_call(
        kernel,
        out_shape=jax.ShapeDtypeStruct((n, p, cout_p), jnp.float32),
        grid=(n,),
        in_specs=[
            pl.BlockSpec((s * s, hq, wq, cin), lambda i: (i, 0, 0, 0)),
            pl.BlockSpec(params["w1"].shape, lambda i: (0, 0, 0)),
            pl.BlockSpec(params["b1"].shape, lambda i: (0, 0)),
            pl.BlockSpec(params["w2"].shape, lambda i: (0, 0, 0)),
            pl.BlockSpec(params["b2s"].shape, lambda i: (0, 0)),
            pl.BlockSpec(params["ws"].shape, lambda i: (0, 0)),
        ],
        out_specs=pl.BlockSpec((1, p, cout_p), lambda i: (i, 0, 0)),
        scratch_shapes=[pltpu.VMEM((out_h + 2, out_w + 2, cout_p), jnp.bfloat16)],
        compiler_params=pltpu.CompilerParams(
            dimension_semantics=("parallel",),
            vmem_limit_bytes=int(vmem_limit)),
        cost_estimate=pl.CostEstimate(flops=int(flops), transcendentals=0,
                                      bytes_accessed=int(bytes_accessed)),
    )(xph, params["w1"], params["b1"], params["w2"], params["b2s"], params["ws"])

    out = out.reshape(n, out_h, out_w, cout_p)[..., :cout]
    return jnp.transpose(out, (0, 3, 1, 2))                        # NCHW f32


# ------------------------ parameter prep (BN folding) ----------------------- #

def init_params(key, cin, cout, stride):
    cout_p = _round_up(cout, LANE)
    k1 = _round_up(3 * cin, LANE)
    ks = _round_up(cin, LANE)
    ks_keys = jax.random.split(key, 15)
    raw = {
        "w1": jax.random.normal(ks_keys[0], (cout, cin, 3, 3), jnp.float32) * 0.1,
        "w2": jax.random.normal(ks_keys[1], (cout, cout, 3, 3), jnp.float32) * 0.1,
        "ws": jax.random.normal(ks_keys[2], (cout, cin, 1, 1), jnp.float32) * 0.1,
        "g1": jax.random.uniform(ks_keys[3], (cout,), minval=0.5, maxval=1.5),
        "b1": jax.random.normal(ks_keys[4], (cout,)) * 0.1,
        "m1": jax.random.normal(ks_keys[5], (cout,)) * 0.1,
        "v1": jax.random.uniform(ks_keys[6], (cout,), minval=0.5, maxval=1.5),
        "g2": jax.random.uniform(ks_keys[7], (cout,), minval=0.5, maxval=1.5),
        "b2": jax.random.normal(ks_keys[8], (cout,)) * 0.1,
        "m2": jax.random.normal(ks_keys[9], (cout,)) * 0.1,
        "v2": jax.random.uniform(ks_keys[10], (cout,), minval=0.5, maxval=1.5),
        "gs": jax.random.uniform(ks_keys[11], (cout,), minval=0.5, maxval=1.5),
        "bs": jax.random.normal(ks_keys[12], (cout,)) * 0.1,
        "ms": jax.random.normal(ks_keys[13], (cout,)) * 0.1,
        "vs": jax.random.uniform(ks_keys[14], (cout,), minval=0.5, maxval=1.5),
    }

    def fold(g, b, m, v):
        scale = g / jnp.sqrt(v + EPS)
        return scale, b - m * scale

    s1, b1 = fold(raw["g1"], raw["b1"], raw["m1"], raw["v1"])
    s2, b2 = fold(raw["g2"], raw["b2"], raw["m2"], raw["v2"])
    ss, bs = fold(raw["gs"], raw["bs"], raw["ms"], raw["vs"])

    def pack_3x3(w_oihw, scale, ci, ci_pad, kk):
        # OIHW -> (kh, kw, cin, cout); fold BN scale into cout; pad; fuse kw into K.
        wm = jnp.transpose(w_oihw, (2, 3, 1, 0)) * scale[None, None, None, :]
        wm = jnp.pad(wm, ((0, 0), (0, 0), (0, ci_pad - ci), (0, cout_p - cout)))
        wm = wm.reshape(3, 3 * ci_pad, cout_p)
        wm = jnp.pad(wm, ((0, 0), (0, kk - 3 * ci_pad), (0, 0)))
        return wm.astype(jnp.bfloat16)

    def pack_bias(b):
        return jnp.pad(b, (0, cout_p - cout)).reshape(1, cout_p).astype(jnp.float32)

    has_projection = (stride != 1) or (cin != cout)
    if has_projection:
        ws = jnp.transpose(raw["ws"].reshape(cout, cin), (1, 0)) * ss[None, :]
        b_short = bs
    else:
        ws = jnp.eye(cin, dtype=jnp.float32)      # exact identity through the MXU
        b_short = jnp.zeros((cout,), jnp.float32)
    ws = jnp.pad(ws, ((0, ks - cin), (0, cout_p - cout))).astype(jnp.bfloat16)

    params = {
        "w1": pack_3x3(raw["w1"], s1, cin, cin, k1),           # (3, K1, Cout_p)
        "b1": pack_bias(b1),
        "w2": pack_3x3(raw["w2"], s2, cout, cout_p, 3 * cout_p),  # (3, 3*Cout_p, Cout_p)
        "b2s": pack_bias(b2 + b_short),
        "ws": ws,                                              # (Ks, Cout_p)
    }
    return params, raw


# ---------------------------- pure-JAX reference ---------------------------- #

def ref_forward(x, raw, stride, cin, cout):
    def bn(y, g, b, m, v):
        sh = (1, -1, 1, 1)
        return (y - m.reshape(sh)) / jnp.sqrt(v + EPS).reshape(sh) * g.reshape(sh) + b.reshape(sh)

    dn = ("NCHW", "OIHW", "NCHW")
    out = lax.conv_general_dilated(x, raw["w1"], (stride, stride), ((1, 1), (1, 1)),
                                   dimension_numbers=dn)
    out = jax.nn.relu(bn(out, raw["g1"], raw["b1"], raw["m1"], raw["v1"]))
    out = lax.conv_general_dilated(out, raw["w2"], (1, 1), ((1, 1), (1, 1)),
                                   dimension_numbers=dn)
    out = bn(out, raw["g2"], raw["b2"], raw["m2"], raw["v2"])
    if stride != 1 or cin != cout:
        sc = lax.conv_general_dilated(x, raw["ws"], (stride, stride), ((0, 0), (0, 0)),
                                      dimension_numbers=dn)
        sc = bn(sc, raw["gs"], raw["bs"], raw["ms"], raw["vs"])
    else:
        sc = x
    return jax.nn.relu(out + sc)


# ----------------------------------- main ----------------------------------- #

if __name__ == "__main__":
    key = jax.random.PRNGKey(0)

    configs = [
        dict(N=2, Cin=4, H=16, W=16, Cout=8, stride=2),    # projection shortcut
        dict(N=2, Cin=8, H=16, W=16, Cout=8, stride=1),    # identity shortcut
        dict(N=1, Cin=3, H=15, W=15, Cout=16, stride=2),   # odd spatial, projection
    ]
    for cfg in configs:
        key, kx, kp = jax.random.split(key, 3)
        x = jax.random.normal(kx, (cfg["N"], cfg["Cin"], cfg["H"], cfg["W"]), jnp.float32)
        params, raw = init_params(kp, cfg["Cin"], cfg["Cout"], cfg["stride"])

        out = jax.block_until_ready(
            residual_block_forward(x, params, stride=cfg["stride"], cout=cfg["Cout"]))
        ref = jax.block_until_ready(
            ref_forward(x, raw, cfg["stride"], cfg["Cin"], cfg["Cout"]))

        assert out.shape == ref.shape, (out.shape, ref.shape)
        err = float(jnp.max(jnp.abs(out - ref)))
        # bf16 MXU operands (f32 accumulation) vs. f32 reference -> loosened tolerance.
        assert jnp.allclose(out, ref, atol=5e-2, rtol=5e-2), err

    print("KERNEL_OK")
</pallas_src>

<mosaic_0001>
module attributes {stable_mosaic.version = 11 : i64} {
  func.func @_residual_block_kernel(%arg0: i32, %arg1: memref<4x9x9x4xbf16, #tpu.memory_space<vmem>>, %arg2: memref<3x128x128xbf16, #tpu.memory_space<vmem>>, %arg3: memref<1x128xf32, #tpu.memory_space<vmem>>, %arg4: memref<3x384x128xbf16, #tpu.memory_space<vmem>>, %arg5: memref<1x128xf32, #tpu.memory_space<vmem>>, %arg6: memref<128x128xbf16, #tpu.memory_space<vmem>>, %arg7: memref<1x64x128xf32, #tpu.memory_space<vmem>>, %arg8: memref<10x10x128xbf16, #tpu.memory_space<vmem>>) attributes {dimension_semantics = [#tpu.dimension_semantics<parallel>], iteration_bounds = array<i64: 2>, scalar_prefetch = 0 : i64, scratch_operands = 1 : i64, tpu.core_type = #tpu.core_type<tc>, window_params = [{transform_indices = @transform_0, window_bounds = array<i64: 4, 9, 9, 4>}, {pipeline_mode = #tpu.pipeline_mode<synchronous>, transform_indices = @transform_1, window_bounds = array<i64: 3, 128, 128>}, {pipeline_mode = #tpu.pipeline_mode<synchronous>, transform_indices = @transform_2, window_bounds = array<i64: 1, 128>}, {pipeline_mode = #tpu.pipeline_mode<synchronous>, transform_indices = @transform_3, window_bounds = array<i64: 3, 384, 128>}, {pipeline_mode = #tpu.pipeline_mode<synchronous>, transform_indices = @transform_4, window_bounds = array<i64: 1, 128>}, {pipeline_mode = #tpu.pipeline_mode<synchronous>, transform_indices = @transform_5, window_bounds = array<i64: 128, 128>}, {transform_indices = @transform_6, window_bounds = array<i64: 1, 64, 128>}]} {
    %c0 = arith.constant 0 : index
    %c0_0 = arith.constant 0 : index
    %0 = vector.load %arg3[%c0, %c0_0] : memref<1x128xf32, #tpu.memory_space<vmem>>, vector<1x128xf32>
    %1 = vector.shape_cast %0 : vector<1x128xf32> to vector<1x128xf32>
    %2 = vector.broadcast %1 : vector<1x128xf32> to vector<64x128xf32>
    %cst = arith.constant 0.000000e+00 : bf16
    %3 = vector.broadcast %cst : bf16 to vector<64x116xbf16>
    %c0_1 = arith.constant 0 : index
    %c0_2 = arith.constant 0 : index
    %c0_3 = arith.constant 0 : index
    %c0_4 = arith.constant 0 : index
    %4 = vector.load %arg1[%c0_1, %c0_2, %c0_3, %c0_4] : memref<4x9x9x4xbf16, #tpu.memory_space<vmem>>, vector<1x8x8x4xbf16>
    %5 = vector.shape_cast %4 : vector<1x8x8x4xbf16> to vector<8x8x4xbf16>
    %6 = vector.shape_cast %5 : vector<8x8x4xbf16> to vector<64x4xbf16>
    %c1 = arith.constant 1 : index
    %c0_5 = arith.constant 0 : index
    %c0_6 = arith.constant 0 : index
    %c0_7 = arith.constant 0 : index
    %7 = vector.load %arg1[%c1, %c0_5, %c0_6, %c0_7] : memref<4x9x9x4xbf16, #tpu.memory_space<vmem>>, vector<1x8x8x4xbf16>
    %8 = vector.shape_cast %7 : vector<1x8x8x4xbf16> to vector<8x8x4xbf16>
    %9 = vector.shape_cast %8 : vector<8x8x4xbf16> to vector<64x4xbf16>
    %c0_8 = arith.constant 0 : index
    %c0_9 = arith.constant 0 : index
    %c1_10 = arith.constant 1 : index
    %c0_11 = arith.constant 0 : index
    %10 = vector.load %arg1[%c0_8, %c0_9, %c1_10, %c0_11] : memref<4x9x9x4xbf16, #tpu.memory_space<vmem>>, vector<1x8x8x4xbf16>
    %11 = vector.shape_cast %10 : vector<1x8x8x4xbf16> to vector<8x8x4xbf16>
    %12 = vector.shape_cast %11 : vector<8x8x4xbf16> to vector<64x4xbf16>
    %13 = tpu.concatenate %6, %9, %12, %3 in 1 : vector<64x4xbf16>, vector<64x4xbf16>, vector<64x4xbf16>, vector<64x116xbf16> -> vector<64x128xbf16>
    %c0_12 = arith.constant 0 : index
    %c0_13 = arith.constant 0 : index
    %c0_14 = arith.constant 0 : index
    %14 = vector.load %arg2[%c0_12, %c0_13, %c0_14] : memref<3x128x128xbf16, #tpu.memory_space<vmem>>, vector<1x128x128xbf16>
    %15 = vector.shape_cast %14 : vector<1x128x128xbf16> to vector<128x128xbf16>
    %cst_15 = arith.constant dense<0.000000e+00> : vector<64x128xf32>
    %16 = tpu.matmul %13, %15, %cst_15 {dimension_numbers = #tpu.dot_dimension_numbers<[1], [0], [0], [1], [0, 0, 1, 1], [], []>} : vector<64x128xbf16>, vector<128x128xbf16>, vector<64x128xf32> -> vector<64x128xf32>
    %17 = arith.addf %2, %16 : vector<64x128xf32>
    %c2 = arith.constant 2 : index
    %c0_16 = arith.constant 0 : index
    %c0_17 = arith.constant 0 : index
    %c0_18 = arith.constant 0 : index
    %18 = vector.load %arg1[%c2, %c0_16, %c0_17, %c0_18] : memref<4x9x9x4xbf16, #tpu.memory_space<vmem>>, vector<1x8x8x4xbf16>
    %19 = vector.shape_cast %18 : vector<1x8x8x4xbf16> to vector<8x8x4xbf16>
    %20 = vector.shape_cast %19 : vector<8x8x4xbf16> to vector<64x4xbf16>
    %c3 = arith.constant 3 : index
    %c0_19 = arith.constant 0 : index
    %c0_20 = arith.constant 0 : index
    %c0_21 = arith.constant 0 : index
    %21 = vector.load %arg1[%c3, %c0_19, %c0_20, %c0_21] : memref<4x9x9x4xbf16, #tpu.memory_space<vmem>>, vector<1x8x8x4xbf16>
    %22 = vector.shape_cast %21 : vector<1x8x8x4xbf16> to vector<8x8x4xbf16>
    %23 = vector.shape_cast %22 : vector<8x8x4xbf16> to vector<64x4xbf16>
    %c2_22 = arith.constant 2 : index
    %c0_23 = arith.constant 0 : index
    %c1_24 = arith.constant 1 : index
    %c0_25 = arith.constant 0 : index
    %24 = vector.load %arg1[%c2_22, %c0_23, %c1_24, %c0_25] : memref<4x9x9x4xbf16, #tpu.memory_space<vmem>>, vector<1x8x8x4xbf16>
    %25 = vector.shape_cast %24 : vector<1x8x8x4xbf16> to vector<8x8x4xbf16>
    %26 = vector.shape_cast %25 : vector<8x8x4xbf16> to vector<64x4xbf16>
    %27 = tpu.concatenate %20, %23, %26, %3 in 1 : vector<64x4xbf16>, vector<64x4xbf16>, vector<64x4xbf16>, vector<64x116xbf16> -> vector<64x128xbf16>
    %c1_26 = arith.constant 1 : index
    %c0_27 = arith.constant 0 : index
    %c0_28 = arith.constant 0 : index
    %28 = vector.load %arg2[%c1_26, %c0_27, %c0_28] : memref<3x128x128xbf16, #tpu.memory_space<vmem>>, vector<1x128x128xbf16>
    %29 = vector.shape_cast %28 : vector<1x128x128xbf16> to vector<128x128xbf16>
    %cst_29 = arith.constant dense<0.000000e+00> : vector<64x128xf32>
    %30 = tpu.matmul %27, %29, %cst_29 {dimension_numbers = #tpu.dot_dimension_numbers<[1], [0], [0], [1], [0, 0, 1, 1], [], []>} : vector<64x128xbf16>, vector<128x128xbf16>, vector<64x128xf32> -> vector<64x128xf32>
    %31 = arith.addf %17, %30 : vector<64x128xf32>
    %c0_30 = arith.constant 0 : index
    %c1_31 = arith.constant 1 : index
    %c0_32 = arith.constant 0 : index
    %c0_33 = arith.constant 0 : index
    %32 = vector.load %arg1[%c0_30, %c1_31, %c0_32, %c0_33] : memref<4x9x9x4xbf16, #tpu.memory_space<vmem>>, vector<1x8x8x4xbf16>
    %33 = vector.shape_cast %32 : vector<1x8x8x4xbf16> to vector<8x8x4xbf16>
    %34 = vector.shape_cast %33 : vector<8x8x4xbf16> to vector<64x4xbf16>
    %c1_34 = arith.constant 1 : index
    %c1_35 = arith.constant 1 : index
    %c0_36 = arith.constant 0 : index
    %c0_37 = arith.constant 0 : index
    %35 = vector.load %arg1[%c1_34, %c1_35, %c0_36, %c0_37] : memref<4x9x9x4xbf16, #tpu.memory_space<vmem>>, vector<1x8x8x4xbf16>
    %36 = vector.shape_cast %35 : vector<1x8x8x4xbf16> to vector<8x8x4xbf16>
    %37 = vector.shape_cast %36 : vector<8x8x4xbf16> to vector<64x4xbf16>
    %c0_38 = arith.constant 0 : index
    %c1_39 = arith.constant 1 : index
    %c1_40 = arith.constant 1 : index
    %c0_41 = arith.constant 0 : index
    %38 = vector.load %arg1[%c0_38, %c1_39, %c1_40, %c0_41] : memref<4x9x9x4xbf16, #tpu.memory_space<vmem>>, vector<1x8x8x4xbf16>
    %39 = vector.shape_cast %38 : vector<1x8x8x4xbf16> to vector<8x8x4xbf16>
    %40 = vector.shape_cast %39 : vector<8x8x4xbf16> to vector<64x4xbf16>
    %41 = tpu.concatenate %34, %37, %40, %3 in 1 : vector<64x4xbf16>, vector<64x4xbf16>, vector<64x4xbf16>, vector<64x116xbf16> -> vector<64x128xbf16>
    %c2_42 = arith.constant 2 : index
    %c0_43 = arith.constant 0 : index
    %c0_44 = arith.constant 0 : index
    %42 = vector.load %arg2[%c2_42, %c0_43, %c0_44] : memref<3x128x128xbf16, #tpu.memory_space<vmem>>, vector<1x128x128xbf16>
    %43 = vector.shape_cast %42 : vector<1x128x128xbf16> to vector<128x128xbf16>
    %cst_45 = arith.constant dense<0.000000e+00> : vector<64x128xf32>
    %44 = tpu.matmul %41, %43, %cst_45 {dimension_numbers = #tpu.dot_dimension_numbers<[1], [0], [0], [1], [0, 0, 1, 1], [], []>} : vector<64x128xbf16>, vector<128x128xbf16>, vector<64x128xf32> -> vector<64x128xf32>
    %45 = arith.addf %31, %44 : vector<64x128xf32>
    %cst_46 = arith.constant 0.000000e+00 : f32
    %46 = vector.broadcast %cst_46 : f32 to vector<64x128xf32>
    %47 = arith.maximumf %45, %46 : vector<64x128xf32>
    %48 = arith.truncf %47 : vector<64x128xf32> to vector<64x128xbf16>
    %cst_47 = arith.constant 0.000000e+00 : bf16
    %49 = vector.broadcast %cst_47 : bf16 to vector<1x10x128xbf16>
    %cst_48 = arith.constant 0.000000e+00 : bf16
    %50 = vector.broadcast %cst_48 : bf16 to vector<8x1x128xbf16>
    %c0_49 = arith.constant 0 : index
    %c0_50 = arith.constant 0 : index
    %c0_51 = arith.constant 0 : index
    %51 = vector.load %arg8[%c0_49, %c0_50, %c0_51] : memref<10x10x128xbf16, #tpu.memory_space<vmem>>, vector<1x10x128xbf16>
    tpu.vector_store %arg8[%c0_49, %c0_50, %c0_51], %49 {strides = array<i32>} : memref<10x10x128xbf16, #tpu.memory_space<vmem>>, vector<1x10x128xbf16>,
    %c9 = arith.constant 9 : index
    %c0_52 = arith.constant 0 : index
    %c0_53 = arith.constant 0 : index
    %52 = vector.load %arg8[%c9, %c0_52, %c0_53] : memref<10x10x128xbf16, #tpu.memory_space<vmem>>, vector<1x10x128xbf16>
    tpu.vector_store %arg8[%c9, %c0_52, %c0_53], %49 {strides = array<i32>} : memref<10x10x128xbf16, #tpu.memory_space<vmem>>, vector<1x10x128xbf16>,
    %53 = vector.shape_cast %48 : vector<64x128xbf16> to vector<8x8x128xbf16>
    %54 = tpu.concatenate %50, %53, %50 in 1 : vector<8x1x128xbf16>, vector<8x8x128xbf16>, vector<8x1x128xbf16> -> vector<8x10x128xbf16>
    %c1_54 = arith.constant 1 : index
    %c0_55 = arith.constant 0 : index
    %c0_56 = arith.constant 0 : index
    %55 = vector.load %arg8[%c1_54, %c0_55, %c0_56] : memref<10x10x128xbf16, #tpu.memory_space<vmem>>, vector<8x10x128xbf16>
    tpu.vector_store %arg8[%c1_54, %c0_55, %c0_56], %54 {strides = array<i32>} : memref<10x10x128xbf16, #tpu.memory_space<vmem>>, vector<8x10x128xbf16>,
    %c3_57 = arith.constant 3 : index
    %c0_58 = arith.constant 0 : index
    %c0_59 = arith.constant 0 : index
    %c0_60 = arith.constant 0 : index
    %56 = vector.load %arg1[%c3_57, %c0_58, %c0_59, %c0_60] : memref<4x9x9x4xbf16, #tpu.memory_space<vmem>>, vector<1x8x8x4xbf16>
    %57 = vector.shape_cast %56 : vector<1x8x8x4xbf16> to vector<8x8x4xbf16>
    %58 = vector.shape_cast %57 : vector<8x8x4xbf16> to vector<64x4xbf16>
    %cst_61 = arith.constant 0.000000e+00 : bf16
    %59 = vector.broadcast %cst_61 : bf16 to vector<64x124xbf16>
    %60 = tpu.concatenate %58, %59 in 1 : vector<64x4xbf16>, vector<64x124xbf16> -> vector<64x128xbf16>
    %c0_62 = arith.constant 0 : index
    %c0_63 = arith.constant 0 : index
    %61 = vector.load %arg6[%c0_62, %c0_63] : memref<128x128xbf16, #tpu.memory_space<vmem>>, vector<128x128xbf16>
    %cst_64 = arith.constant dense<0.000000e+00> : vector<64x128xf32>
    %62 = tpu.matmul %60, %61, %cst_64 {dimension_numbers = #tpu.dot_dimension_numbers<[1], [0], [0], [1], [0, 0, 1, 1], [], []>} : vector<64x128xbf16>, vector<128x128xbf16>, vector<64x128xf32> -> vector<64x128xf32>
    %c0_65 = arith.constant 0 : index
    %c0_66 = arith.constant 0 : index
    %63 = vector.load %arg5[%c0_65, %c0_66] : memref<1x128xf32, #tpu.memory_space<vmem>>, vector<1x128xf32>
    %64 = vector.broadcast %63 : vector<1x128xf32> to vector<64x128xf32>
    %65 = arith.addf %62, %64 : vector<64x128xf32>
    %c0_67 = arith.constant 0 : index
    %c0_68 = arith.constant 0 : index
    %c0_69 = arith.constant 0 : index
    %66 = vector.load %arg8[%c0_67, %c0_68, %c0_69] : memref<10x10x128xbf16, #tpu.memory_space<vmem>>, vector<8x8x128xbf16>
    %67 = vector.shape_cast %66 : vector<8x8x128xbf16> to vector<64x128xbf16>
    %c0_70 = arith.constant 0 : index
    %c1_71 = arith.constant 1 : index
    %c0_72 = arith.constant 0 : index
    %68 = vector.load %arg8[%c0_70, %c1_71, %c0_72] : memref<10x10x128xbf16, #tpu.memory_space<vmem>>, vector<8x8x128xbf16>
    %69 = vector.shape_cast %68 : vector<8x8x128xbf16> to vector<64x128xbf16>
    %c0_73 = arith.constant 0 : index
    %c2_74 = arith.constant 2 : index
    %c0_75 = arith.constant 0 : index
    %70 = vector.load %arg8[%c0_73, %c2_74, %c0_75] : memref<10x10x128xbf16, #tpu.memory_space<vmem>>, vector<8x8x128xbf16>
    %71 = vector.shape_cast %70 : vector<8x8x128xbf16> to vector<64x128xbf16>
    %72 = tpu.concatenate %67, %69, %71 in 1 : vector<64x128xbf16>, vector<64x128xbf16>, vector<64x128xbf16> -> vector<64x384xbf16>
    %c0_76 = arith.constant 0 : index
    %c0_77 = arith.constant 0 : index
    %c0_78 = arith.constant 0 : index
    %73 = vector.load %arg4[%c0_76, %c0_77, %c0_78] : memref<3x384x128xbf16, #tpu.memory_space<vmem>>, vector<1x384x128xbf16>
    %74 = vector.shape_cast %73 : vector<1x384x128xbf16> to vector<384x128xbf16>
    %cst_79 = arith.constant dense<0.000000e+00> : vector<64x128xf32>
    %75 = tpu.matmul %72, %74, %cst_79 {dimension_numbers = #tpu.dot_dimension_numbers<[1], [0], [0], [1], [0, 0, 1, 1], [], []>} : vector<64x384xbf16>, vector<384x128xbf16>, vector<64x128xf32> -> vector<64x128xf32>
    %76 = arith.addf %65, %75 : vector<64x128xf32>
    %c1_80 = arith.constant 1 : index
    %c0_81 = arith.constant 0 : index
    %c0_82 = arith.constant 0 : index
    %77 = vector.load %arg8[%c1_80, %c0_81, %c0_82] : memref<10x10x128xbf16, #tpu.memory_space<vmem>>, vector<8x8x128xbf16>
    %78 = vector.shape_cast %77 : vector<8x8x128xbf16> to vector<64x128xbf16>
    %c1_83 = arith.constant 1 : index
    %c1_84 = arith.constant 1 : index
    %c0_85 = arith.constant 0 : index
    %79 = vector.load %arg8[%c1_83, %c1_84, %c0_85] : memref<10x10x128xbf16, #tpu.memory_space<vmem>>, vector<8x8x128xbf16>
    %80 = vector.shape_cast %79 : vector<8x8x128xbf16> to vector<64x128xbf16>
    %c1_86 = arith.constant 1 : index
    %c2_87 = arith.constant 2 : index
    %c0_88 = arith.constant 0 : index
    %81 = vector.load %arg8[%c1_86, %c2_87, %c0_88] : memref<10x10x128xbf16, #tpu.memory_space<vmem>>, vector<8x8x128xbf16>
    %82 = vector.shape_cast %81 : vector<8x8x128xbf16> to vector<64x128xbf16>
    %83 = tpu.concatenate %78, %80, %82 in 1 : vector<64x128xbf16>, vector<64x128xbf16>, vector<64x128xbf16> -> vector<64x384xbf16>
    %c1_89 = arith.constant 1 : index
    %c0_90 = arith.constant 0 : index
    %c0_91 = arith.constant 0 : index
    %84 = vector.load %arg4[%c1_89, %c0_90, %c0_91] : memref<3x384x128xbf16, #tpu.memory_space<vmem>>, vector<1x384x128xbf16>
    %85 = vector.shape_cast %84 : vector<1x384x128xbf16> to vector<384x128xbf16>
    %cst_92 = arith.constant dense<0.000000e+00> : vector<64x128xf32>
    %86 = tpu.matmul %83, %85, %cst_92 {dimension_numbers = #tpu.dot_dimension_numbers<[1], [0], [0], [1], [0, 0, 1, 1], [], []>} : vector<64x384xbf16>, vector<384x128xbf16>, vector<64x128xf32> -> vector<64x128xf32>
    %87 = arith.addf %76, %86 : vector<64x128xf32>
    %c2_93 = arith.constant 2 : index
    %c0_94 = arith.constant 0 : index
    %c0_95 = arith.constant 0 : index
    %88 = vector.load %arg8[%c2_93, %c0_94, %c0_95] : memref<10x10x128xbf16, #tpu.memory_space<vmem>>, vector<8x8x128xbf16>
    %89 = vector.shape_cast %88 : vector<8x8x128xbf16> to vector<64x128xbf16>
    %c2_96 = arith.constant 2 : index
    %c1_97 = arith.constant 1 : index
    %c0_98 = arith.constant 0 : index
    %90 = vector.load %arg8[%c2_96, %c1_97, %c0_98] : memref<10x10x128xbf16, #tpu.memory_space<vmem>>, vector<8x8x128xbf16>
    %91 = vector.shape_cast %90 : vector<8x8x128xbf16> to vector<64x128xbf16>
    %c2_99 = arith.constant 2 : index
    %c2_100 = arith.constant 2 : index
    %c0_101 = arith.constant 0 : index
    %92 = vector.load %arg8[%c2_99, %c2_100, %c0_101] : memref<10x10x128xbf16, #tpu.memory_space<vmem>>, vector<8x8x128xbf16>
    %93 = vector.shape_cast %92 : vector<8x8x128xbf16> to vector<64x128xbf16>
    %94 = tpu.concatenate %89, %91, %93 in 1 : vector<64x128xbf16>, vector<64x128xbf16>, vector<64x128xbf16> -> vector<64x384xbf16>
    %c2_102 = arith.constant 2 : index
    %c0_103 = arith.constant 0 : index
    %c0_104 = arith.constant 0 : index
    %95 = vector.load %arg4[%c2_102, %c0_103, %c0_104] : memref<3x384x128xbf16, #tpu.memory_space<vmem>>, vector<1x384x128xbf16>
    %96 = vector.shape_cast %95 : vector<1x384x128xbf16> to vector<384x128xbf16>
    %cst_105 = arith.constant dense<0.000000e+00> : vector<64x128xf32>
    %97 = tpu.matmul %94, %96, %cst_105 {dimension_numbers = #tpu.dot_dimension_numbers<[1], [0], [0], [1], [0, 0, 1, 1], [], []>} : vector<64x384xbf16>, vector<384x128xbf16>, vector<64x128xf32> -> vector<64x128xf32>
    %98 = arith.addf %87, %97 : vector<64x128xf32>
    %cst_106 = arith.constant 0.000000e+00 : f32
    %99 = vector.broadcast %cst_106 : f32 to vector<64x128xf32>
    %100 = arith.maximumf %98, %99 : vector<64x128xf32>
    %c0_107 = arith.constant 0 : index
    %c0_108 = arith.constant 0 : index
    %c0_109 = arith.constant 0 : index
    %101 = vector.load %arg7[%c0_107, %c0_108, %c0_109] : memref<1x64x128xf32, #tpu.memory_space<vmem>>, vector<1x64x128xf32>
    %102 = vector.shape_cast %101 : vector<1x64x128xf32> to vector<64x128xf32>
    %103 = vector.shape_cast %100 : vector<64x128xf32> to vector<1x64x128xf32>
    tpu.vector_store %arg7[%c0_107, %c0_108, %c0_109], %103 {strides = array<i32>} : memref<1x64x128xf32, #tpu.memory_space<vmem>>, vector<1x64x128xf32>,
    return
  }
  func.func @transform_0(%arg0: i32) -> (i32, i32, i32, i32) {
    %c0_i32 = arith.constant 0 : i32
    %c0_i32_0 = arith.constant 0 : i32
    %c0_i32_1 = arith.constant 0 : i32
    %c0_i32_2 = arith.constant 0 : i32
    return %arg0, %c0_i32, %c0_i32_0, %c0_i32_1 : i32, i32, i32, i32
  }
  func.func @transform_1(%arg0: i32) -> (i32, i32, i32) {
    %c0_i32 = arith.constant 0 : i32
    %c0_i32_0 = arith.constant 0 : i32
    %c0_i32_1 = arith.constant 0 : i32
    %c0_i32_2 = arith.constant 0 : i32
    return %c0_i32, %c0_i32_0, %c0_i32_1 : i32, i32, i32
  }
  func.func @transform_2(%arg0: i32) -> (i32, i32) {
    %c0_i32 = arith.constant 0 : i32
    %c0_i32_0 = arith.constant 0 : i32
    %c0_i32_1 = arith.constant 0 : i32
    return %c0_i32, %c0_i32_0 : i32, i32
  }
  func.func @transform_3(%arg0: i32) -> (i32, i32, i32) {
    %c0_i32 = arith.constant 0 : i32
    %c0_i32_0 = arith.constant 0 : i32
    %c0_i32_1 = arith.constant 0 : i32
    %c0_i32_2 = arith.constant 0 : i32
    return %c0_i32, %c0_i32_0, %c0_i32_1 : i32, i32, i32
  }
  func.func @transform_4(%arg0: i32) -> (i32, i32) {
    %c0_i32 = arith.constant 0 : i32
    %c0_i32_0 = arith.constant 0 : i32
    %c0_i32_1 = arith.constant 0 : i32
    return %c0_i32, %c0_i32_0 : i32, i32
  }
  func.func @transform_5(%arg0: i32) -> (i32, i32) {
    %c0_i32 = arith.constant 0 : i32
    %c0_i32_0 = arith.constant 0 : i32
    %c0_i32_1 = arith.constant 0 : i32
    return %c0_i32, %c0_i32_0 : i32, i32
  }
  func.func @transform_6(%arg0: i32) -> (i32, i32, i32) {
    %c0_i32 = arith.constant 0 : i32
    %c0_i32_0 = arith.constant 0 : i32
    %c0_i32_1 = arith.constant 0 : i32
    return %arg0, %c0_i32, %c0_i32_0 : i32, i32, i32
  }
}

</mosaic_0001>

<llo_original>
// kernel: residual_block_forward.1
$region0: #{residual_block_forward.1}
  #allocation0 [shape = 'u32[]', space=smem, size = 0x4, offset = 0x4, fixed_abs, tag = 'smem constant byte address 0x4 - core index']
  #allocation1 [shape = 'u32[144,128]{1,0:T(1,128)}', space=vmem, size = 0x12000, scoped, tag = 'internal scratch']
  #allocation2 [shape = 'bf16[10,10,128]{2,1,0:T(8,128)(2,1)}', space=vmem, size = 0xa000, scoped, tag = 'scratch operand']
  %s0 = inlined_call_operand.vmem [shape: bf16[8,9,9,4], index: 0, kind: input, shape index: {}]
  %s1 = inlined_call_operand.vmem [shape: bf16[3,128,128], index: 1, kind: input, shape index: {}]
  %s2 = inlined_call_operand.vmem [shape: f32[1,128], index: 2, kind: input, shape index: {}]
  %s3 = inlined_call_operand.vmem [shape: bf16[3,384,128], index: 3, kind: input, shape index: {}]
  %s4 = inlined_call_operand.vmem [shape: f32[1,128], index: 4, kind: input, shape index: {}]
  %s5 = inlined_call_operand.vmem [shape: bf16[128,128], index: 5, kind: input, shape index: {}]
  %s6 = inlined_call_operand.vmem [shape: f32[2,64,128], index: 6, kind: output, shape index: {}]
  %s7 = sld [smem:[#allocation0]]
  $region57: #{residual_block_forward.1} parent=0
    _
  %s9 = ssub.s32 1, %s7
  %s10 = scalar_select 0, %s9, %s7
  loop: start=0, step=1, limit=4
  $region2: #{residual_block_forward.1} parent=0 // loop_pre_header
    _
  $region3: #{residual_block_forward.1} parent=0 // loop_header
    %s12 = sphi 0, %s16
    %p13 = scmp.ge.s32.totalorder %s12, 4
    %s22 = sphi 0, %s24
    %s25 = sphi 0, %s22
    %s26 = sphi 0, %s25
    %s42 = sphi 0, %s26
    %s46 = sphi 0, %s46
    %s48 = sphi 0, %s46
    %s49 = sphi 0, %s48
    %s63 = sphi 0, %s49
    %s67 = sphi 0, %s67
    %s69 = sphi 0, %s67
    %s70 = sphi 0, %s69
    %s84 = sphi 0, %s70
    %s88 = sphi 0, %s88
    %s90 = sphi 0, %s88
    %s91 = sphi 0, %s90
    %s105 = sphi 0, %s91
    %s109 = sphi 0, %s109
    %s111 = sphi 0, %s109
    %s112 = sphi 0, %s111
    %s126 = sphi 0, %s112
    %s130 = sphi 0, %s130
    %s132 = sphi 0, %s130
    %s133 = sphi 0, %s132
    %s147 = sphi 0, %s133
    %s153 = sphi 0, %s155
    %s156 = sphi 0, %s153
    %s157 = sphi 0, %s156
    %s173 = sphi 0, %s157
  $region4: #{residual_block_forward.1} parent=0 // loop_header_branch
    %15 = sbr.rel (%p13) target = $region8
  $region5: #{residual_block_forward.1} parent=0 // loop_body
    %s17 = ssub.s32 %s12, 1
    %s18 = ssub.s32 %s12, 2
    %s19 = sadd.s32 %s12, 1
    %s20 = ssub.s32 %s12, %s19
    %p21 = scmp.eq.s32.totalorder %s20, 0
    %s23 = sadd.s32 %s22, 1
    %s24 = scalar_select %p21, %s22, %s23
    %p27 = pneg %p21
    %p28 = scmp.eq.s32.totalorder %s12, 1
    %p29 = por %p27, %p28
    %p30 = scmp.ne.s32.totalorder %s22, %s25
    %p31 = scmp.eq.s32.totalorder %s12, 0
    %p32 = por %p30, %p31
    %p33 = scmp.ne.s32.totalorder %s22, %s25
    %p34 = scmp.eq.s32.totalorder %s17, 1
    %p35 = por %p33, %p34
    %p36 = scmp.ne.s32.totalorder %s25, %s26
    %p37 = scmp.eq.s32.totalorder %s17, 0
    %p38 = por %p36, %p37
    %p39 = scmp.ne.s32.totalorder %s25, %s26
    %p40 = scmp.eq.s32.totalorder %s18, 1
    %p41 = por %p39, %p40
    %p43 = scmp.ne.s32.totalorder %s26, %s42
    %p44 = scmp.eq.s32.totalorder %s18, 0
    %p45 = por %p43, %p44
    %s47 = sadd.s32 %s46, 1
    %p50 = scmp.eq.s32.totalorder %s12, 1
    %p51 = scmp.ne.s32.totalorder %s46, %s48
    %p52 = scmp.eq.s32.totalorder %s12, 0
    %p53 = por %p51, %p52
    %p54 = scmp.ne.s32.totalorder %s46, %s48
    %p55 = scmp.eq.s32.totalorder %s17, 1
    %p56 = por %p54, %p55
    %p57 = scmp.ne.s32.totalorder %s48, %s49
    %p58 = scmp.eq.s32.totalorder %s17, 0
    %p59 = por %p57, %p58
    %p60 = scmp.ne.s32.totalorder %s48, %s49
    %p61 = scmp.eq.s32.totalorder %s18, 1
    %p62 = por %p60, %p61
    %p64 = scmp.ne.s32.totalorder %s49, %s63
    %p65 = scmp.eq.s32.totalorder %s18, 0
    %p66 = por %p64, %p65
    %s68 = sadd.s32 %s67, 1
    %p71 = scmp.eq.s32.totalorder %s12, 1
    %p72 = scmp.ne.s32.totalorder %s67, %s69
    %p73 = scmp.eq.s32.totalorder %s12, 0
    %p74 = por %p72, %p73
    %p75 = scmp.ne.s32.totalorder %s67, %s69
    %p76 = scmp.eq.s32.totalorder %s17, 1
    %p77 = por %p75, %p76
    %p78 = scmp.ne.s32.totalorder %s69, %s70
    %p79 = scmp.eq.s32.totalorder %s17, 0
    %p80 = por %p78, %p79
    %p81 = scmp.ne.s32.totalorder %s69, %s70
    %p82 = scmp.eq.s32.totalorder %s18, 1
    %p83 = por %p81, %p82
    %p85 = scmp.ne.s32.totalorder %s70, %s84
    %p86 = scmp.eq.s32.totalorder %s18, 0
    %p87 = por %p85, %p86
    %s89 = sadd.s32 %s88, 1
    %p92 = scmp.eq.s32.totalorder %s12, 1
    %p93 = scmp.ne.s32.totalorder %s88, %s90
    %p94 = scmp.eq.s32.totalorder %s12, 0
    %p95 = por %p93, %p94
    %p96 = scmp.ne.s32.totalorder %s88, %s90
    %p97 = scmp.eq.s32.totalorder %s17, 1
    %p98 = por %p96, %p97
    %p99 = scmp.ne.s32.totalorder %s90, %s91
    %p100 = scmp.eq.s32.totalorder %s17, 0
    %p101 = por %p99, %p100
    %p102 = scmp.ne.s32.totalorder %s90, %s91
    %p103 = scmp.eq.s32.totalorder %s18, 1
    %p104 = por %p102, %p103
    %p106 = scmp.ne.s32.totalorder %s91, %s105
    %p107 = scmp.eq.s32.totalorder %s18, 0
    %p108 = por %p106, %p107
    %s110 = sadd.s32 %s109, 1
    %p113 = scmp.eq.s32.totalorder %s12, 1
    %p114 = scmp.ne.s32.totalorder %s109, %s111
    %p115 = scmp.eq.s32.totalorder %s12, 0
    %p116 = por %p114, %p115
    %p117 = scmp.ne.s32.totalorder %s109, %s111
    %p118 = scmp.eq.s32.totalorder %s17, 1
    %p119 = por %p117, %p118
    %p120 = scmp.ne.s32.totalorder %s111, %s112
    %p121 = scmp.eq.s32.totalorder %s17, 0
    %p122 = por %p120, %p121
    %p123 = scmp.ne.s32.totalorder %s111, %s112
    %p124 = scmp.eq.s32.totalorder %s18, 1
    %p125 = por %p123, %p124
    %p127 = scmp.ne.s32.totalorder %s112, %s126
    %p128 = scmp.eq.s32.totalorder %s18, 0
    %p129 = por %p127, %p128
    %s131 = sadd.s32 %s130, 1
    %p134 = scmp.eq.s32.totalorder %s12, 1
    %p135 = scmp.ne.s32.totalorder %s130, %s132
    %p136 = scmp.eq.s32.totalorder %s12, 0
    %p137 = por %p135, %p136
    %p138 = scmp.ne.s32.totalorder %s130, %s132
    %p139 = scmp.eq.s32.totalorder %s17, 1
    %p140 = por %p138, %p139
    %p141 = scmp.ne.s32.totalorder %s132, %s133
    %p142 = scmp.eq.s32.totalorder %s17, 0
    %p143 = por %p141, %p142
    %p144 = scmp.ne.s32.totalorder %s132, %s133
    %p145 = scmp.eq.s32.totalorder %s18, 1
    %p146 = por %p144, %p145
    %p148 = scmp.ne.s32.totalorder %s133, %s147
    %p149 = scmp.eq.s32.totalorder %s18, 0
    %p150 = por %p148, %p149
    %s151 = ssub.s32 %s12, %s19
    %p152 = scmp.eq.s32.totalorder %s151, 0
    %s154 = sadd.s32 %s153, 1
    %s155 = scalar_select %p152, %s153, %s154
    %p158 = pneg %p152
    %p159 = scmp.eq.s32.totalorder %s12, 1
    %p160 = por %p158, %p159
    %p161 = scmp.ne.s32.totalorder %s153, %s156
    %p162 = scmp.eq.s32.totalorder %s12, 0
    %p163 = por %p161, %p162
    %p164 = scmp.ne.s32.totalorder %s153, %s156
    %p165 = scmp.eq.s32.totalorder %s17, 1
    %p166 = por %p164, %p165
    %p167 = scmp.ne.s32.totalorder %s156, %s157
    %p168 = scmp.eq.s32.totalorder %s17, 0
    %p169 = por %p167, %p168
    %p170 = scmp.ne.s32.totalorder %s156, %s157
    %p171 = scmp.eq.s32.totalorder %s18, 1
    %p172 = por %p170, %p171
    %p174 = scmp.ne.s32.totalorder %s157, %s173
    %p175 = scmp.eq.s32.totalorder %s18, 0
    %p176 = por %p174, %p175
    %p177 = scmp.le.s32.totalorder 1, %s12
    %p178 = scmp.lt.s32.totalorder %s12, 3
    %p179 = pnand %p177, %p178
    %p180 = pneg %p179
    // Predicated region
    $region9: #{residual_block_forward.1} parent=5 // pred_check
      _
    $region10: #{residual_block_forward.1} parent=5 // pred_check_branch
      %182 = sbr.rel (%p179) target = $region12
    $region11: #{residual_block_forward.1} parent=5 // pred_region
      %s183 = ssub.s32 %s12, 1
      // Predicated region
      $region13: #{residual_block_forward.1} parent=11 // pred_check
        %p184 = pneg %p59
      $region14: #{residual_block_forward.1} parent=11 // pred_check_branch
        %186 = sbr.rel (%p184) target = $region16
      $region15: #{residual_block_forward.1} parent=11 // pred_region
        _
      $region16: #{residual_block_forward.1} parent=11 // pred_fallthru
        _
      // Predicated region
      $region17: #{residual_block_forward.1} parent=11 // pred_check
        %p187 = pneg %p80
      $region18: #{residual_block_forward.1} parent=11 // pred_check_branch
        %189 = sbr.rel (%p187) target = $region20
      $region19: #{residual_block_forward.1} parent=11 // pred_region
        _
      $region20: #{residual_block_forward.1} parent=11 // pred_fallthru
        _
      // Predicated region
      $region21: #{residual_block_forward.1} parent=11 // pred_check
        %p190 = pneg %p101
      $region22: #{residual_block_forward.1} parent=11 // pred_check_branch
        %192 = sbr.rel (%p190) target = $region24
      $region23: #{residual_block_forward.1} parent=11 // pred_region
        _
      $region24: #{residual_block_forward.1} parent=11 // pred_fallthru
        _
      // Predicated region
      $region25: #{residual_block_forward.1} parent=11 // pred_check
        %p193 = pneg %p122
      $region26: #{residual_block_forward.1} parent=11 // pred_check_branch
        %195 = sbr.rel (%p193) target = $region28
      $region27: #{residual_block_forward.1} parent=11 // pred_region
        _
      $region28: #{residual_block_forward.1} parent=11 // pred_fallthru
        _
      // Predicated region
      $region29: #{residual_block_forward.1} parent=11 // pred_check
        %p196 = pneg %p143
      $region30: #{residual_block_forward.1} parent=11 // pred_check_branch
        %198 = sbr.rel (%p196) target = $region32
      $region31: #{residual_block_forward.1} parent=11 // pred_region
        _
      $region32: #{residual_block_forward.1} parent=11 // pred_fallthru
        _
    $region12: #{residual_block_forward.1} parent=5 // pred_fallthru
      _
    %p199 = scmp.lt.s32.totalorder %s12, 2
    // Predicated region
    $region33: #{residual_block_forward.1} parent=5 // pred_check
      %p200 = pneg %p199
    $region34: #{residual_block_forward.1} parent=5 // pred_check_branch
      %202 = sbr.rel (%p200) target = $region36
    $region35: #{residual_block_forward.1} parent=5 // pred_region
      // Predicated region
      $region37: #{residual_block_forward.1} parent=35 // pred_check
        %p203 = pneg %p32
      $region38: #{residual_block_forward.1} parent=35 // pred_check_branch
        %205 = sbr.rel (%p203) target = $region40
      $region39: #{residual_block_forward.1} parent=35 // pred_region
        %s206 = smul.u32 4, %s12
        %p207 = scmp.lt.s32.totalorder %s206, 7
        %s208 = scalar_select %p207, %s206, 7
        %s209 = smul.addr %s208, 18
        %s210 = smul.addr %s209, 4
        %s211 = scalar_lea.vmem %s0, %s210
        %s212 = smul.u32 4, %s12
      $region40: #{residual_block_forward.1} parent=35 // pred_fallthru
        _
    $region36: #{residual_block_forward.1} parent=5 // pred_fallthru
      _
    %p213 = scmp.le.s32.totalorder 1, %s12
    %p214 = scmp.lt.s32.totalorder %s12, 3
    %p215 = pnand %p213, %p214
    %p216 = pneg %p215
    // Predicated region
    $region41: #{residual_block_forward.1} parent=5 // pred_check
      _
    $region42: #{residual_block_forward.1} parent=5 // pred_check_branch
      %218 = sbr.rel (%p215) target = $region44
    $region43: #{residual_block_forward.1} parent=5 // pred_region
      %s219 = ssub.s32 %s12, 1
      %s220 = smul.u32 4, %s17
      %p221 = scmp.lt.s32.totalorder %s220, 7
      %s222 = scalar_select %p221, %s220, 7
      %s223 = smul.addr %s222, 18
      %s224 = smul.addr %s223, 4
      %s225 = scalar_lea.vmem %s0, %s224
      %p226 = pneg %p38
      %p227 = pneg %p35
      %p228 = pneg %p59
      %p229 = pneg %p56
      %p230 = pneg %p80
      %p231 = pneg %p77
      %p232 = pneg %p101
      %p233 = pneg %p98
      %p234 = pneg %p122
      %p235 = pneg %p119
      %p236 = pneg %p143
      %p237 = pneg %p140
      %p238 = pneg %p169
      %p239 = pneg %p166
      %p240 = scmp.lt.s32.totalorder %s17, 1
      %s241 = scalar_select %p240, %s17, 1
      %s242 = smul.addr %s241, 8
      %s243 = smul.addr %s242, 8
      %s244 = scalar_lea.vmem %s6, %s243
      %s245 = smul.u32 4, %s17
      %p246 = scmp.lt.s32.totalorder %s245, 7
      %s247 = scalar_select %p246, %s245, 7
      %s248 = smul.addr %s247, 18
      %s249 = smul.addr %s248, 4
      %s250 = scalar_lea.vmem %s0, %s249
      %s251 = smul.u32 4, %s17
      %p252 = scmp.lt.s32.totalorder %s17, 1
      %s253 = scalar_select %p252, %s17, 1
      %s254 = smul.addr %s253, 8
      %s255 = smul.addr %s254, 8
      %s256 = scalar_lea.vmem %s6, %s255
      %v258 = vld [vmem:[%s2] sm:$0x1]
      %v260 = vlaneseq
      %v261 = vshrl.u32 %v260, 7
      %v262 = vsub.s32 0, %v261
      %v263 = vrot.slane %v258, %v262
      %v265 = vld [vmem:[%s250] sm:$0xf]
      %v266 = vld [vmem:[%s250 + $0x8] sm:$0xf]
      %v267 = vld [vmem:[%s250 + $0x10] sm:$0xf]
      %v268 = vld [vmem:[%s250 + $0x18] sm:$0xf]
      %v269 = vld [vmem:[%s250 + $0x20] sm:$0xf]
      %v270 = vld [vmem:[%s250 + $0x28] sm:$0xf]
      %v271 = vld [vmem:[%s250 + $0x30] sm:$0xf]
      %v272 = vld [vmem:[%s250 + $0x38] sm:$0xf]
      %s273 = scalar_lea.vmem %s250, 72
      %v274 = vld [vmem:[%s273] sm:$0xf]
      %v275 = vld [vmem:[%s273 + $0x8] sm:$0xf]
      %v276 = vld [vmem:[%s273 + $0x10] sm:$0xf]
      %v277 = vld [vmem:[%s273 + $0x18] sm:$0xf]
      %v278 = vld [vmem:[%s273 + $0x20] sm:$0xf]
      %v279 = vld [vmem:[%s273 + $0x28] sm:$0xf]
      %v280 = vld [vmem:[%s273 + $0x30] sm:$0xf]
      %v281 = vld [vmem:[%s273 + $0x38] sm:$0xf]
      %v282 = vld [vmem:[%s250 + $0x4] sm:$0x1]
      %v283 = vld [vmem:[%s250 + $0xc] sm:$0x1]
      %v284 = vld [vmem:[%s250 + $0x14] sm:$0x1]
      %v285 = vld [vmem:[%s250 + $0x1c] sm:$0x1]
      %v286 = vld [vmem:[%s250 + $0x24] sm:$0x1]
      %v287 = vld [vmem:[%s250 + $0x2c] sm:$0x1]
      %v288 = vld [vmem:[%s250 + $0x34] sm:$0x1]
      %v289 = vld [vmem:[%s250 + $0x3c] sm:$0x1]
      %vm290 = vsmask.f32 3328
      %vm291 = vsmask.f32 7440
      %vm292 = vmor %vm290, %vm291
      %v294 = vshrl.u32 %v265, 16
      %v296 = vrot.slane %v294, 4
      %v297 = vshll.u32 %v265, 16
      %v299 = vrot.slane %v297, 5
      %v300 = vor.u32 %v296, %v299
      %v301 = vrot.slane %v300, 4
      %v303 = vshll.u32 %v282, 16
      %v305 = vrot.slane %v303, 5
      %v306 = vsel %vm292, %v301, %v305
      %v308 = vshrl.u32 %v266, 16
      %v310 = vrot.slane %v308, 4
      %v311 = vshll.u32 %v266, 16
      %v313 = vrot.slane %v311, 5
      %v314 = vor.u32 %v310, %v313
      %v315 = vrot.slane %v314, 4
      %v317 = vshll.u32 %v283, 16
      %v319 = vrot.slane %v317, 5
      %v320 = vsel %vm292, %v315, %v319
      %v322 = vshrl.u32 %v267, 16
      %v324 = vrot.slane %v322, 4
      %v325 = vshll.u32 %v267, 16
      %v327 = vrot.slane %v325, 5
      %v328 = vor.u32 %v324, %v327
      %v329 = vrot.slane %v328, 4
      %v331 = vshll.u32 %v284, 16
      %v333 = vrot.slane %v331, 5
      %v334 = vsel %vm292, %v329, %v333
      %v336 = vshrl.u32 %v268, 16
      %v338 = vrot.slane %v336, 4
      %v339 = vshll.u32 %v268, 16
      %v341 = vrot.slane %v339, 5
      %v342 = vor.u32 %v338, %v341
      %v343 = vrot.slane %v342, 4
      %v345 = vshll.u32 %v285, 16
      %v347 = vrot.slane %v345, 5
      %v348 = vsel %vm292, %v343, %v347
      %v350 = vshrl.u32 %v269, 16
      %v352 = vrot.slane %v350, 4
      %v353 = vshll.u32 %v269, 16
      %v355 = vrot.slane %v353, 5
      %v356 = vor.u32 %v352, %v355
      %v357 = vrot.slane %v356, 4
      %v359 = vshll.u32 %v286, 16
      %v361 = vrot.slane %v359, 5
      %v362 = vsel %vm292, %v357, %v361
      %v364 = vshrl.u32 %v270, 16
      %v366 = vrot.slane %v364, 4
      %v367 = vshll.u32 %v270, 16
      %v369 = vrot.slane %v367, 5
      %v370 = vor.u32 %v366, %v369
      %v371 = vrot.slane %v370, 4
      %v373 = vshll.u32 %v287, 16
      %v375 = vrot.slane %v373, 5
      %v376 = vsel %vm292, %v371, %v375
      %v378 = vshrl.u32 %v271, 16
      %v380 = vrot.slane %v378, 4
      %v381 = vshll.u32 %v271, 16
      %v383 = vrot.slane %v381, 5
      %v384 = vor.u32 %v380, %v383
      %v385 = vrot.slane %v384, 4
      %v387 = vshll.u32 %v288, 16
      %v389 = vrot.slane %v387, 5
      %v390 = vsel %vm292, %v385, %v389
      %v392 = vshrl.u32 %v272, 16
      %v394 = vrot.slane %v392, 4
      %v395 = vshll.u32 %v272, 16
      %v397 = vrot.slane %v395, 5
      %v398 = vor.u32 %v394, %v397
      %v399 = vrot.slane %v398, 4
      %v401 = vshll.u32 %v289, 16
      %v403 = vrot.slane %v401, 5
      %v404 = vsel %vm292, %v399, %v403
      %v413 = vunpack.c.l.b16 %v265
      %v414 = vunpack.c.l.b16 %v266
      %v415 = vunpack.c.l.b16 %v267
      %v416 = vunpack.c.l.b16 %v268
      %v417 = vunpack.c.l.b16 %v269
      %v418 = vunpack.c.l.b16 %v270
      %v419 = vunpack.c.l.b16 %v271
      %v420 = vunpack.c.l.b16 %v272
      %v421 = vpack.c.b16 %v414, %v413
      %v422 = vpack.c.b16 %v416, %v415
      %v423 = vpack.c.b16 %v418, %v417
      %v424 = vpack.c.b16 %v420, %v419
      %v433 = vunpack.c.l.b16 %v274
      %v434 = vunpack.c.l.b16 %v275
      %v435 = vunpack.c.l.b16 %v276
      %v436 = vunpack.c.l.b16 %v277
      %v437 = vunpack.c.l.b16 %v278
      %v438 = vunpack.c.l.b16 %v279
      %v439 = vunpack.c.l.b16 %v280
      %v440 = vunpack.c.l.b16 %v281
      %v441 = vpack.c.b16 %v434, %v433
      %v442 = vpack.c.b16 %v436, %v435
      %v443 = vpack.c.b16 %v438, %v437
      %v444 = vpack.c.b16 %v440, %v439
      %445 = vrot.lane.b32.xlu0 %v441, 4
      %v446 = vpop.permute.xlu0 %445
      %447 = vrot.lane.b32.xlu0 %v442, 4
      %v448 = vpop.permute.xlu0 %447
      %449 = vrot.lane.b32.xlu0 %v443, 4
      %v450 = vpop.permute.xlu0 %449
      %451 = vrot.lane.b32.xlu0 %v444, 4
      %v452 = vpop.permute.xlu0 %451
      %v453 = vunpack.c.l.b16 %v306
      %v454 = vunpack.c.l.b16 %v320
      %v455 = vunpack.c.l.b16 %v334
      %v456 = vunpack.c.l.b16 %v348
      %v457 = vunpack.c.l.b16 %v362
      %v458 = vunpack.c.l.b16 %v376
      %v459 = vunpack.c.l.b16 %v390
      %v460 = vunpack.c.l.b16 %v404
      %v461 = vpack.c.b16 %v454, %v453
      %v462 = vpack.c.b16 %v456, %v455
      %v463 = vpack.c.b16 %v458, %v457
      %v464 = vpack.c.b16 %v460, %v459
      %465 = vrot.lane.b32.xlu0 %v461, 8
      %v466 = vpop.permute.xlu0 %465
      %467 = vrot.lane.b32.xlu0 %v462, 8
      %v468 = vpop.permute.xlu0 %467
      %469 = vrot.lane.b32.xlu0 %v463, 8
      %v470 = vpop.permute.xlu0 %469
      %471 = vrot.lane.b32.xlu0 %v464, 8
      %v472 = vpop.permute.xlu0 %471
      %vm473 = vcmask 31744
      %v476 = vsel %vm473, %v421, %v446
      %v479 = vsel %vm473, %v422, %v448
      %v482 = vsel %vm473, %v423, %v450
      %v485 = vsel %vm473, %v424, %v452
      %vm486 = vcmask 64512
      %v488 = vsel %vm486, %v476, %v466
      %v490 = vsel %vm486, %v479, %v468
      %v492 = vsel %vm486, %v482, %v470
      %v494 = vsel %vm486, %v485, %v472
      %vm495 = vcmask 97280
      %v497 = vsel %vm495, %v488, 0
      %v499 = vsel %vm495, %v490, 0
      %v501 = vsel %vm495, %v492, 0
      %v503 = vsel %vm495, %v494, 0
      %v505 = vld [vmem:[%s1] sm:$0xf]
      %v506 = vld [vmem:[%s1 + $0x4] sm:$0xf]
      %v507 = vld [vmem:[%s1 + $0x8] sm:$0xf]
      %v508 = vld [vmem:[%s1 + $0xc] sm:$0xf]
      %v509 = vld [vmem:[%s1 + $0x10] sm:$0xf]
      %v510 = vld [vmem:[%s1 + $0x14] sm:$0xf]
      %v511 = vld [vmem:[%s1 + $0x18] sm:$0xf]
      %v512 = vld [vmem:[%s1 + $0x1c] sm:$0xf]
      %v513 = vld [vmem:[%s1 + $0x20] sm:$0xf]
      %v514 = vld [vmem:[%s1 + $0x24] sm:$0xf]
      %v515 = vld [vmem:[%s1 + $0x28] sm:$0xf]
      %v516 = vld [vmem:[%s1 + $0x2c] sm:$0xf]
      %v517 = vld [vmem:[%s1 + $0x30] sm:$0xf]
      %v518 = vld [vmem:[%s1 + $0x34] sm:$0xf]
      %v519 = vld [vmem:[%s1 + $0x38] sm:$0xf]
      %v520 = vld [vmem:[%s1 + $0x3c] sm:$0xf]
      %v537 = vunpack.c.l.b16 %v505
      %v538 = vunpack.c.l.b16 %v506
      %v539 = vunpack.c.l.b16 %v507
      %v540 = vunpack.c.l.b16 %v508
      %v541 = vunpack.c.l.b16 %v509
      %v542 = vunpack.c.l.b16 %v510
      %v543 = vunpack.c.l.b16 %v511
      %v544 = vunpack.c.l.b16 %v512
      %v545 = vunpack.c.l.b16 %v513
      %v546 = vunpack.c.l.b16 %v514
      %v547 = vunpack.c.l.b16 %v515
      %v548 = vunpack.c.l.b16 %v516
      %v549 = vunpack.c.l.b16 %v517
      %v550 = vunpack.c.l.b16 %v518
      %v551 = vunpack.c.l.b16 %v519
      %v552 = vunpack.c.l.b16 %v520
      %v553 = vpack.c.b16 %v538, %v537
      %v554 = vpack.c.b16 %v540, %v539
      %v555 = vpack.c.b16 %v542, %v541
      %v556 = vpack.c.b16 %v544, %v543
      %v557 = vpack.c.b16 %v546, %v545
      %v558 = vpack.c.b16 %v548, %v547
      %v559 = vpack.c.b16 %v550, %v549
      %v560 = vpack.c.b16 %v552, %v551
      %569 = vmatprep.subr.bf16.mxu0 0
      %570 = vmatpush1.bf16.msra.mxu0 %v553
      %571 = vmatprep.subr.bf16.mxu0 0
      %572 = vmatpush1.bf16.msra.mxu0 %v554
      %573 = vmatprep.subr.bf16.mxu0 0
      %574 = vmatpush1.bf16.msra.mxu0 %v555
      %575 = vmatprep.subr.bf16.mxu0 0
      %576 = vmatpush1.bf16.msra.mxu0 %v556
      %577 = vmatprep.subr.bf16.mxu0 0
      %578 = vmatpush1.bf16.msra.mxu0 %v557
      %579 = vmatprep.subr.bf16.mxu0 0
      %580 = vmatpush1.bf16.msra.mxu0 %v558
      %581 = vmatprep.subr.bf16.mxu0 0
      %582 = vmatpush1.bf16.msra.mxu0 %v559
      %583 = vmatprep.subr.bf16.mxu0 0
      %584 = vmatpush1.bf16.msra.mxu0 %v560
      %585 = vmatprep.subr.bf16.mxu0 0
      %586 = vmatpush1.bf16.msra.mxu0 0
      %587 = vmatprep.subr.bf16.mxu0 0
      %588 = vmatpush1.bf16.msra.mxu0 0
      %589 = vmatprep.subr.bf16.mxu0 0
      %590 = vmatpush1.bf16.msra.mxu0 0
      %591 = vmatprep.subr.bf16.mxu0 0
      %592 = vmatpush1.bf16.msra.mxu0 0
      %593 = vmatprep.subr.bf16.mxu0 0
      %594 = vmatpush1.bf16.msra.mxu0 0
      %595 = vmatprep.subr.bf16.mxu0 0
      %596 = vmatpush1.bf16.msra.mxu0 0
      %597 = vmatprep.subr.bf16.mxu0 0
      %598 = vmatpush1.bf16.msra.mxu0 0
      %599 = vmatprep.subr.bf16.mxu0 0
      %600 = vmatpush1.bf16.msra.mxu0 0
      %601 = vmatprep.mubr.bf16.mxu0 0
      %602 = vmatmul.mubr.bf16.gmra.mrb[0].mxu0 %v497
      %v603 = vpop.f32.mrb[0].mxu0
      %v604 = vadd.f32 0.0, %v603
      %v605 = vpop.f32.mrb[0].mxu0
      %v606 = vpop.f32.mrb[0].mxu0
      %v607 = vadd.f32 0.0, %v606
      %v608 = vpop.f32.mrb[0].mxu0
      %609 = vmatprep.mubr.bf16.mxu0 0
      %610 = vmatmul.mubr.bf16.gmra.mrb[0].mxu0 %v499
      %v611 = vpop.f32.mrb[0].mxu0
      %v612 = vadd.f32 0.0, %v611
      %v613 = vpop.f32.mrb[0].mxu0
      %v614 = vpop.f32.mrb[0].mxu0
      %v615 = vadd.f32 0.0, %v614
      %v616 = vpop.f32.mrb[0].mxu0
      %617 = vmatprep.mubr.bf16.mxu0 0
      %618 = vmatmul.mubr.bf16.gmra.mrb[0].mxu0 %v501
      %v619 = vpop.f32.mrb[0].mxu0
      %v620 = vadd.f32 0.0, %v619
      %v621 = vpop.f32.mrb[0].mxu0
      %v622 = vpop.f32.mrb[0].mxu0
      %v623 = vadd.f32 0.0, %v622
      %v624 = vpop.f32.mrb[0].mxu0
      %625 = vmatprep.mubr.bf16.mxu0 0
      %626 = vmatmul.mubr.bf16.gmra.mrb[0].mxu0 %v503
      %v627 = vpop.f32.mrb[0].mxu0
      %v628 = vadd.f32 0.0, %v627
      %v629 = vpop.f32.mrb[0].mxu0
      %v630 = vpop.f32.mrb[0].mxu0
      %v631 = vadd.f32 0.0, %v630
      %v632 = vpop.f32.mrb[0].mxu0
      %633 = vdwg.mxu0
      %v634 = vadd.f32 %v263, %v604
      %v635 = vadd.f32 %v263, %v607
      %v636 = vadd.f32 %v263, %v612
      %v637 = vadd.f32 %v263, %v615
      %v638 = vadd.f32 %v263, %v620
      %v639 = vadd.f32 %v263, %v623
      %v640 = vadd.f32 %v263, %v628
      %v641 = vadd.f32 %v263, %v631
      %s642 = scalar_lea.vmem %s250, 144
      %v643 = vld [vmem:[%s642] sm:$0xf]
      %v644 = vld [vmem:[%s642 + $0x8] sm:$0xf]
      %v645 = vld [vmem:[%s642 + $0x10] sm:$0xf]
      %v646 = vld [vmem:[%s642 + $0x18] sm:$0xf]
      %v647 = vld [vmem:[%s642 + $0x20] sm:$0xf]
      %v648 = vld [vmem:[%s642 + $0x28] sm:$0xf]
      %v649 = vld [vmem:[%s642 + $0x30] sm:$0xf]
      %v650 = vld [vmem:[%s642 + $0x38] sm:$0xf]
      %s651 = scalar_lea.vmem %s250, 216
      %v652 = vld [vmem:[%s651] sm:$0xf]
      %v653 = vld [vmem:[%s651 + $0x8] sm:$0xf]
      %v654 = vld [vmem:[%s651 + $0x10] sm:$0xf]
      %v655 = vld [vmem:[%s651 + $0x18] sm:$0xf]
      %v656 = vld [vmem:[%s651 + $0x20] sm:$0xf]
      %v657 = vld [vmem:[%s651 + $0x28] sm:$0xf]
      %v658 = vld [vmem:[%s651 + $0x30] sm:$0xf]
      %v659 = vld [vmem:[%s651 + $0x38] sm:$0xf]
      %v660 = vld [vmem:[%s642 + $0x4] sm:$0x1]
      %v661 = vld [vmem:[%s642 + $0xc] sm:$0x1]
      %v662 = vld [vmem:[%s642 + $0x14] sm:$0x1]
      %v663 = vld [vmem:[%s642 + $0x1c] sm:$0x1]
      %v664 = vld [vmem:[%s642 + $0x24] sm:$0x1]
      %v665 = vld [vmem:[%s642 + $0x2c] sm:$0x1]
      %v666 = vld [vmem:[%s642 + $0x34] sm:$0x1]
      %v667 = vld [vmem:[%s642 + $0x3c] sm:$0x1]
      %v669 = vshrl.u32 %v643, 16
      %v671 = vrot.slane %v669, 4
      %v672 = vshll.u32 %v643, 16
      %v674 = vrot.slane %v672, 5
      %v675 = vor.u32 %v671, %v674
      %v676 = vrot.slane %v675, 4
      %v678 = vshll.u32 %v660, 16
      %v680 = vrot.slane %v678, 5
      %v681 = vsel %vm292, %v676, %v680
      %v683 = vshrl.u32 %v644, 16
      %v685 = vrot.slane %v683, 4
      %v686 = vshll.u32 %v644, 16
      %v688 = vrot.slane %v686, 5
      %v689 = vor.u32 %v685, %v688
      %v690 = vrot.slane %v689, 4
      %v692 = vshll.u32 %v661, 16
      %v694 = vrot.slane %v692, 5
      %v695 = vsel %vm292, %v690, %v694
      %v697 = vshrl.u32 %v645, 16
      %v699 = vrot.slane %v697, 4
      %v700 = vshll.u32 %v645, 16
      %v702 = vrot.slane %v700, 5
      %v703 = vor.u32 %v699, %v702
      %v704 = vrot.slane %v703, 4
      %v706 = vshll.u32 %v662, 16
      %v708 = vrot.slane %v706, 5
      %v709 = vsel %vm292, %v704, %v708
      %v711 = vshrl.u32 %v646, 16
      %v713 = vrot.slane %v711, 4
      %v714 = vshll.u32 %v646, 16
      %v716 = vrot.slane %v714, 5
      %v717 = vor.u32 %v713, %v716
      %v718 = vrot.slane %v717, 4
      %v720 = vshll.u32 %v663, 16
      %v722 = vrot.slane %v720, 5
      %v723 = vsel %vm292, %v718, %v722
      %v725 = vshrl.u32 %v647, 16
      %v727 = vrot.slane %v725, 4
      %v728 = vshll.u32 %v647, 16
      %v730 = vrot.slane %v728, 5
      %v731 = vor.u32 %v727, %v730
      %v732 = vrot.slane %v731, 4
      %v734 = vshll.u32 %v664, 16
      %v736 = vrot.slane %v734, 5
      %v737 = vsel %vm292, %v732, %v736
      %v739 = vshrl.u32 %v648, 16
      %v741 = vrot.slane %v739, 4
      %v742 = vshll.u32 %v648, 16
      %v744 = vrot.slane %v742, 5
      %v745 = vor.u32 %v741, %v744
      %v746 = vrot.slane %v745, 4
      %v748 = vshll.u32 %v665, 16
      %v750 = vrot.slane %v748, 5
      %v751 = vsel %vm292, %v746, %v750
      %v753 = vshrl.u32 %v649, 16
      %v755 = vrot.slane %v753, 4
      %v756 = vshll.u32 %v649, 16
      %v758 = vrot.slane %v756, 5
      %v759 = vor.u32 %v755, %v758
      %v760 = vrot.slane %v759, 4
      %v762 = vshll.u32 %v666, 16
      %v764 = vrot.slane %v762, 5
      %v765 = vsel %vm292, %v760, %v764
      %v767 = vshrl.u32 %v650, 16
      %v769 = vrot.slane %v767, 4
      %v770 = vshll.u32 %v650, 16
      %v772 = vrot.slane %v770, 5
      %v773 = vor.u32 %v769, %v772
      %v774 = vrot.slane %v773, 4
      %v776 = vshll.u32 %v667, 16
      %v778 = vrot.slane %v776, 5
      %v779 = vsel %vm292, %v774, %v778
      %v788 = vunpack.c.l.b16 %v643
      %v789 = vunpack.c.l.b16 %v644
      %v790 = vunpack.c.l.b16 %v645
      %v791 = vunpack.c.l.b16 %v646
      %v792 = vunpack.c.l.b16 %v647
      %v793 = vunpack.c.l.b16 %v648
      %v794 = vunpack.c.l.b16 %v649
      %v795 = vunpack.c.l.b16 %v650
      %v796 = vpack.c.b16 %v789, %v788
      %v797 = vpack.c.b16 %v791, %v790
      %v798 = vpack.c.b16 %v793, %v792
      %v799 = vpack.c.b16 %v795, %v794
      %v808 = vunpack.c.l.b16 %v652
      %v809 = vunpack.c.l.b16 %v653
      %v810 = vunpack.c.l.b16 %v654
      %v811 = vunpack.c.l.b16 %v655
      %v812 = vunpack.c.l.b16 %v656
      %v813 = vunpack.c.l.b16 %v657
      %v814 = vunpack.c.l.b16 %v658
      %v815 = vunpack.c.l.b16 %v659
      %v816 = vpack.c.b16 %v809, %v808
      %v817 = vpack.c.b16 %v811, %v810
      %v818 = vpack.c.b16 %v813, %v812
      %v819 = vpack.c.b16 %v815, %v814
      %820 = vrot.lane.b32.xlu0 %v816, 4
      %v821 = vpop.permute.xlu0 %820
      %822 = vrot.lane.b32.xlu0 %v817, 4
      %v823 = vpop.permute.xlu0 %822
      %824 = vrot.lane.b32.xlu0 %v818, 4
      %v825 = vpop.permute.xlu0 %824
      %826 = vrot.lane.b32.xlu0 %v819, 4
      %v827 = vpop.permute.xlu0 %826
      %v828 = vunpack.c.l.b16 %v681
      %v829 = vunpack.c.l.b16 %v695
      %v830 = vunpack.c.l.b16 %v709
      %v831 = vunpack.c.l.b16 %v723
      %v832 = vunpack.c.l.b16 %v737
      %v833 = vunpack.c.l.b16 %v751
      %v834 = vunpack.c.l.b16 %v765
      %v835 = vunpack.c.l.b16 %v779
      %v836 = vpack.c.b16 %v829, %v828
      %v837 = vpack.c.b16 %v831, %v830
      %v838 = vpack.c.b16 %v833, %v832
      %v839 = vpack.c.b16 %v835, %v834
      %840 = vrot.lane.b32.xlu0 %v836, 8
      %v841 = vpop.permute.xlu0 %840
      %842 = vrot.lane.b32.xlu0 %v837, 8
      %v843 = vpop.permute.xlu0 %842
      %844 = vrot.lane.b32.xlu0 %v838, 8
      %v845 = vpop.permute.xlu0 %844
      %846 = vrot.lane.b32.xlu0 %v839, 8
      %v847 = vpop.permute.xlu0 %846
      %v850 = vsel %vm473, %v796, %v821
      %v853 = vsel %vm473, %v797, %v823
      %v856 = vsel %vm473, %v798, %v825
      %v859 = vsel %vm473, %v799, %v827
      %v861 = vsel %vm486, %v850, %v841
      %v863 = vsel %vm486, %v853, %v843
      %v865 = vsel %vm486, %v856, %v845
      %v867 = vsel %vm486, %v859, %v847
      %v868 = vsel %vm495, %v861, 0
      %v870 = vsel %vm495, %v863, 0
      %v872 = vsel %vm495, %v865, 0
      %v874 = vsel %vm495, %v867, 0
      %s876 = scalar_lea.vmem %s1, 64
      %v877 = vld [vmem:[%s876] sm:$0xf]
      %v878 = vld [vmem:[%s876 + $0x4] sm:$0xf]
      %v879 = vld [vmem:[%s876 + $0x8] sm:$0xf]
      %v880 = vld [vmem:[%s876 + $0xc] sm:$0xf]
      %v881 = vld [vmem:[%s876 + $0x10] sm:$0xf]
      %v882 = vld [vmem:[%s876 + $0x14] sm:$0xf]
      %v883 = vld [vmem:[%s876 + $0x18] sm:$0xf]
      %v884 = vld [vmem:[%s876 + $0x1c] sm:$0xf]
      %v885 = vld [vmem:[%s876 + $0x20] sm:$0xf]
      %v886 = vld [vmem:[%s876 + $0x24] sm:$0xf]
      %v887 = vld [vmem:[%s876 + $0x28] sm:$0xf]
      %v888 = vld [vmem:[%s876 + $0x2c] sm:$0xf]
      %v889 = vld [vmem:[%s876 + $0x30] sm:$0xf]
      %v890 = vld [vmem:[%s876 + $0x34] sm:$0xf]
      %v891 = vld [vmem:[%s876 + $0x38] sm:$0xf]
      %v892 = vld [vmem:[%s876 + $0x3c] sm:$0xf]
      %v909 = vunpack.c.l.b16 %v877
      %v910 = vunpack.c.l.b16 %v878
      %v911 = vunpack.c.l.b16 %v879
      %v912 = vunpack.c.l.b16 %v880
      %v913 = vunpack.c.l.b16 %v881
      %v914 = vunpack.c.l.b16 %v882
      %v915 = vunpack.c.l.b16 %v883
      %v916 = vunpack.c.l.b16 %v884
      %v917 = vunpack.c.l.b16 %v885
      %v918 = vunpack.c.l.b16 %v886
      %v919 = vunpack.c.l.b16 %v887
      %v920 = vunpack.c.l.b16 %v888
      %v921 = vunpack.c.l.b16 %v889
      %v922 = vunpack.c.l.b16 %v890
      %v923 = vunpack.c.l.b16 %v891
      %v924 = vunpack.c.l.b16 %v892
      %v925 = vpack.c.b16 %v910, %v909
      %v926 = vpack.c.b16 %v912, %v911
      %v927 = vpack.c.b16 %v914, %v913
      %v928 = vpack.c.b16 %v916, %v915
      %v929 = vpack.c.b16 %v918, %v917
      %v930 = vpack.c.b16 %v920, %v919
      %v931 = vpack.c.b16 %v922, %v921
      %v932 = vpack.c.b16 %v924, %v923
      %941 = vmatprep.subr.bf16.mxu0 0
      %942 = vmatpush1.bf16.msra.mxu0 %v925
      %943 = vmatprep.subr.bf16.mxu0 0
      %944 = vmatpush1.bf16.msra.mxu0 %v926
      %945 = vmatprep.subr.bf16.mxu0 0
      %946 = vmatpush1.bf16.msra.mxu0 %v927
      %947 = vmatprep.subr.bf16.mxu0 0
      %948 = vmatpush1.bf16.msra.mxu0 %v928
      %949 = vmatprep.subr.bf16.mxu0 0
      %950 = vmatpush1.bf16.msra.mxu0 %v929
      %951 = vmatprep.subr.bf16.mxu0 0
      %952 = vmatpush1.bf16.msra.mxu0 %v930
      %953 = vmatprep.subr.bf16.mxu0 0
      %954 = vmatpush1.bf16.msra.mxu0 %v931
      %955 = vmatprep.subr.bf16.mxu0 0
      %956 = vmatpush1.bf16.msra.mxu0 %v932
      %957 = vmatprep.subr.bf16.mxu0 0
      %958 = vmatpush1.bf16.msra.mxu0 0
      %959 = vmatprep.subr.bf16.mxu0 0
      %960 = vmatpush1.bf16.msra.mxu0 0
      %961 = vmatprep.subr.bf16.mxu0 0
      %962 = vmatpush1.bf16.msra.mxu0 0
      %963 = vmatprep.subr.bf16.mxu0 0
      %964 = vmatpush1.bf16.msra.mxu0 0
      %965 = vmatprep.subr.bf16.mxu0 0
      %966 = vmatpush1.bf16.msra.mxu0 0
      %967 = vmatprep.subr.bf16.mxu0 0
      %968 = vmatpush1.bf16.msra.mxu0 0
      %969 = vmatprep.subr.bf16.mxu0 0
      %970 = vmatpush1.bf16.msra.mxu0 0
      %971 = vmatprep.subr.bf16.mxu0 0
      %972 = vmatpush1.bf16.msra.mxu0 0
      %973 = vmatprep.mubr.bf16.mxu0 0
      %974 = vmatmul.mubr.bf16.gmra.mrb[0].mxu0 %v868
      %v975 = vpop.f32.mrb[0].mxu0
      %v976 = vadd.f32 0.0, %v975
      %v977 = vpop.f32.mrb[0].mxu0
      %v978 = vpop.f32.mrb[0].mxu0
      %v979 = vadd.f32 0.0, %v978
      %v980 = vpop.f32.mrb[0].mxu0
      %981 = vmatprep.mubr.bf16.mxu0 0
      %982 = vmatmul.mubr.bf16.gmra.mrb[0].mxu0 %v870
      %v983 = vpop.f32.mrb[0].mxu0
      %v984 = vadd.f32 0.0, %v983
      %v985 = vpop.f32.mrb[0].mxu0
      %v986 = vpop.f32.mrb[0].mxu0
      %v987 = vadd.f32 0.0, %v986
      %v988 = vpop.f32.mrb[0].mxu0
      %989 = vmatprep.mubr.bf16.mxu0 0
      %990 = vmatmul.mubr.bf16.gmra.mrb[0].mxu0 %v872
      %v991 = vpop.f32.mrb[0].mxu0
      %v992 = vadd.f32 0.0, %v991
      %v993 = vpop.f32.mrb[0].mxu0
      %v994 = vpop.f32.mrb[0].mxu0
      %v995 = vadd.f32 0.0, %v994
      %v996 = vpop.f32.mrb[0].mxu0
      %997 = vmatprep.mubr.bf16.mxu0 0
      %998 = vmatmul.mubr.bf16.gmra.mrb[0].mxu0 %v874
      %v999 = vpop.f32.mrb[0].mxu0
      %v1000 = vadd.f32 0.0, %v999
      %v1001 = vpop.f32.mrb[0].mxu0
      %v1002 = vpop.f32.mrb[0].mxu0
      %v1003 = vadd.f32 0.0, %v1002
      %v1004 = vpop.f32.mrb[0].mxu0
      %1005 = vdwg.mxu0
      %v1006 = vadd.f32 %v634, %v976
      %v1007 = vadd.f32 %v635, %v979
      %v1008 = vadd.f32 %v636, %v984
      %v1009 = vadd.f32 %v637, %v987
      %v1010 = vadd.f32 %v638, %v992
      %v1011 = vadd.f32 %v639, %v995
      %v1012 = vadd.f32 %v640, %v1000
      %v1013 = vadd.f32 %v641, %v1003
      %s1014 = scalar_lea.vmem %s250, 8
      %v1015 = vld [vmem:[%s1014] sm:$0xf]
      %v1016 = vld [vmem:[%s1014 + $0x8] sm:$0xf]
      %v1017 = vld [vmem:[%s1014 + $0x10] sm:$0xf]
      %v1018 = vld [vmem:[%s1014 + $0x18] sm:$0xf]
      %v1019 = vld [vmem:[%s1014 + $0x20] sm:$0xf]
      %v1020 = vld [vmem:[%s1014 + $0x28] sm:$0xf]
      %v1021 = vld [vmem:[%s1014 + $0x30] sm:$0xf]
      %v1022 = vld [vmem:[%s1014 + $0x38] sm:$0xf]
      %s1023 = scalar_lea.vmem %s250, 80
      %v1024 = vld [vmem:[%s1023] sm:$0xf]
      %v1025 = vld [vmem:[%s1023 + $0x8] sm:$0xf]
      %v1026 = vld [vmem:[%s1023 + $0x10] sm:$0xf]
      %v1027 = vld [vmem:[%s1023 + $0x18] sm:$0xf]
      %v1028 = vld [vmem:[%s1023 + $0x20] sm:$0xf]
      %v1029 = vld [vmem:[%s1023 + $0x28] sm:$0xf]
      %v1030 = vld [vmem:[%s1023 + $0x30] sm:$0xf]
      %v1031 = vld [vmem:[%s1023 + $0x38] sm:$0xf]
      %v1032 = vld [vmem:[%s1014 + $0x4] sm:$0x1]
      %v1033 = vld [vmem:[%s1014 + $0xc] sm:$0x1]
      %v1034 = vld [vmem:[%s1014 + $0x14] sm:$0x1]
      %v1035 = vld [vmem:[%s1014 + $0x1c] sm:$0x1]
      %v1036 = vld [vmem:[%s1014 + $0x24] sm:$0x1]
      %v1037 = vld [vmem:[%s1014 + $0x2c] sm:$0x1]
      %v1038 = vld [vmem:[%s1014 + $0x34] sm:$0x1]
      %v1039 = vld [vmem:[%s1014 + $0x3c] sm:$0x1]
      %v1041 = vshrl.u32 %v1015, 16
      %v1043 = vrot.slane %v1041, 4
      %v1044 = vshll.u32 %v1015, 16
      %v1046 = vrot.slane %v1044, 5
      %v1047 = vor.u32 %v1043, %v1046
      %v1048 = vrot.slane %v1047, 4
      %v1050 = vshll.u32 %v1032, 16
      %v1052 = vrot.slane %v1050, 5
      %v1053 = vsel %vm292, %v1048, %v1052
      %v1055 = vshrl.u32 %v1016, 16
      %v1057 = vrot.slane %v1055, 4
      %v1058 = vshll.u32 %v1016, 16
      %v1060 = vrot.slane %v1058, 5
      %v1061 = vor.u32 %v1057, %v1060
      %v1062 = vrot.slane %v1061, 4
      %v1064 = vshll.u32 %v1033, 16
      %v1066 = vrot.slane %v1064, 5
      %v1067 = vsel %vm292, %v1062, %v1066
      %v1069 = vshrl.u32 %v1017, 16
      %v1071 = vrot.slane %v1069, 4
      %v1072 = vshll.u32 %v1017, 16
      %v1074 = vrot.slane %v1072, 5
      %v1075 = vor.u32 %v1071, %v1074
      %v1076 = vrot.slane %v1075, 4
      %v1078 = vshll.u32 %v1034, 16
      %v1080 = vrot.slane %v1078, 5
      %v1081 = vsel %vm292, %v1076, %v1080
      %v1083 = vshrl.u32 %v1018, 16
      %v1085 = vrot.slane %v1083, 4
      %v1086 = vshll.u32 %v1018, 16
      %v1088 = vrot.slane %v1086, 5
      %v1089 = vor.u32 %v1085, %v1088
      %v1090 = vrot.slane %v1089, 4
      %v1092 = vshll.u32 %v1035, 16
      %v1094 = vrot.slane %v1092, 5
      %v1095 = vsel %vm292, %v1090, %v1094
      %v1097 = vshrl.u32 %v1019, 16
      %v1099 = vrot.slane %v1097, 4
      %v1100 = vshll.u32 %v1019, 16
      %v1102 = vrot.slane %v1100, 5
      %v1103 = vor.u32 %v1099, %v1102
      %v1104 = vrot.slane %v1103, 4
      %v1106 = vshll.u32 %v1036, 16
      %v1108 = vrot.slane %v1106, 5
      %v1109 = vsel %vm292, %v1104, %v1108
      %v1111 = vshrl.u32 %v1020, 16
      %v1113 = vrot.slane %v1111, 4
      %v1114 = vshll.u32 %v1020, 16
      %v1116 = vrot.slane %v1114, 5
      %v1117 = vor.u32 %v1113, %v1116
      %v1118 = vrot.slane %v1117, 4
      %v1120 = vshll.u32 %v1037, 16
      %v1122 = vrot.slane %v1120, 5
      %v1123 = vsel %vm292, %v1118, %v1122
      %v1125 = vshrl.u32 %v1021, 16
      %v1127 = vrot.slane %v1125, 4
      %v1128 = vshll.u32 %v1021, 16
      %v1130 = vrot.slane %v1128, 5
      %v1131 = vor.u32 %v1127, %v1130
      %v1132 = vrot.slane %v1131, 4
      %v1134 = vshll.u32 %v1038, 16
      %v1136 = vrot.slane %v1134, 5
      %v1137 = vsel %vm292, %v1132, %v1136
      %v1139 = vshrl.u32 %v1022, 16
      %v1141 = vrot.slane %v1139, 4
      %v1142 = vshll.u32 %v1022, 16
      %v1144 = vrot.slane %v1142, 5
      %v1145 = vor.u32 %v1141, %v1144
      %v1146 = vrot.slane %v1145, 4
      %v1148 = vshll.u32 %v1039, 16
      %v1150 = vrot.slane %v1148, 5
      %v1151 = vsel %vm292, %v1146, %v1150
      %v1160 = vunpack.c.l.b16 %v1015
      %v1161 = vunpack.c.l.b16 %v1016
      %v1162 = vunpack.c.l.b16 %v1017
      %v1163 = vunpack.c.l.b16 %v1018
      %v1164 = vunpack.c.l.b16 %v1019
      %v1165 = vunpack.c.l.b16 %v1020
      %v1166 = vunpack.c.l.b16 %v1021
      %v1167 = vunpack.c.l.b16 %v1022
      %v1168 = vpack.c.b16 %v1161, %v1160
      %v1169 = vpack.c.b16 %v1163, %v1162
      %v1170 = vpack.c.b16 %v1165, %v1164
      %v1171 = vpack.c.b16 %v1167, %v1166
      %v1180 = vunpack.c.l.b16 %v1024
      %v1181 = vunpack.c.l.b16 %v1025
      %v1182 = vunpack.c.l.b16 %v1026
      %v1183 = vunpack.c.l.b16 %v1027
      %v1184 = vunpack.c.l.b16 %v1028
      %v1185 = vunpack.c.l.b16 %v1029
      %v1186 = vunpack.c.l.b16 %v1030
      %v1187 = vunpack.c.l.b16 %v1031
      %v1188 = vpack.c.b16 %v1181, %v1180
      %v1189 = vpack.c.b16 %v1183, %v1182
      %v1190 = vpack.c.b16 %v1185, %v1184
      %v1191 = vpack.c.b16 %v1187, %v1186
      %1192 = vrot.lane.b32.xlu0 %v1188, 4
      %v1193 = vpop.permute.xlu0 %1192
      %1194 = vrot.lane.b32.xlu0 %v1189, 4
      %v1195 = vpop.permute.xlu0 %1194
      %1196 = vrot.lane.b32.xlu0 %v1190, 4
      %v1197 = vpop.permute.xlu0 %1196
      %1198 = vrot.lane.b32.xlu0 %v1191, 4
      %v1199 = vpop.permute.xlu0 %1198
      %v1200 = vunpack.c.l.b16 %v1053
      %v1201 = vunpack.c.l.b16 %v1067
      %v1202 = vunpack.c.l.b16 %v1081
      %v1203 = vunpack.c.l.b16 %v1095
      %v1204 = vunpack.c.l.b16 %v1109
      %v1205 = vunpack.c.l.b16 %v1123
      %v1206 = vunpack.c.l.b16 %v1137
      %v1207 = vunpack.c.l.b16 %v1151
      %v1208 = vpack.c.b16 %v1201, %v1200
      %v1209 = vpack.c.b16 %v1203, %v1202
      %v1210 = vpack.c.b16 %v1205, %v1204
      %v1211 = vpack.c.b16 %v1207, %v1206
      %1212 = vrot.lane.b32.xlu0 %v1208, 8
      %v1213 = vpop.permute.xlu0 %1212
      %1214 = vrot.lane.b32.xlu0 %v1209, 8
      %v1215 = vpop.permute.xlu0 %1214
      %1216 = vrot.lane.b32.xlu0 %v1210, 8
      %v1217 = vpop.permute.xlu0 %1216
      %1218 = vrot.lane.b32.xlu0 %v1211, 8
      %v1219 = vpop.permute.xlu0 %1218
      %v1222 = vsel %vm473, %v1168, %v1193
      %v1225 = vsel %vm473, %v1169, %v1195
      %v1228 = vsel %vm473, %v1170, %v1197
      %v1231 = vsel %vm473, %v1171, %v1199
      %v1233 = vsel %vm486, %v1222, %v1213
      %v1235 = vsel %vm486, %v1225, %v1215
      %v1237 = vsel %vm486, %v1228, %v1217
      %v1239 = vsel %vm486, %v1231, %v1219
      %v1240 = vsel %vm495, %v1233, 0
      %v1242 = vsel %vm495, %v1235, 0
      %v1244 = vsel %vm495, %v1237, 0
      %v1246 = vsel %vm495, %v1239, 0
      %s1248 = scalar_lea.vmem %s1, 128
      %v1249 = vld [vmem:[%s1248] sm:$0xf]
      %v1250 = vld [vmem:[%s1248 + $0x4] sm:$0xf]
      %v1251 = vld [vmem:[%s1248 + $0x8] sm:$0xf]
      %v1252 = vld [vmem:[%s1248 + $0xc] sm:$0xf]
      %v1253 = vld [vmem:[%s1248 + $0x10] sm:$0xf]
      %v1254 = vld [vmem:[%s1248 + $0x14] sm:$0xf]
      %v1255 = vld [vmem:[%s1248 + $0x18] sm:$0xf]
      %v1256 = vld [vmem:[%s1248 + $0x1c] sm:$0xf]
      %v1257 = vld [vmem:[%s1248 + $0x20] sm:$0xf]
      %v1258 = vld [vmem:[%s1248 + $0x24] sm:$0xf]
      %v1259 = vld [vmem:[%s1248 + $0x28] sm:$0xf]
      %v1260 = vld [vmem:[%s1248 + $0x2c] sm:$0xf]
      %v1261 = vld [vmem:[%s1248 + $0x30] sm:$0xf]
      %v1262 = vld [vmem:[%s1248 + $0x34] sm:$0xf]
      %v1263 = vld [vmem:[%s1248 + $0x38] sm:$0xf]
      %v1264 = vld [vmem:[%s1248 + $0x3c] sm:$0xf]
      %v1281 = vunpack.c.l.b16 %v1249
      %v1282 = vunpack.c.l.b16 %v1250
      %v1283 = vunpack.c.l.b16 %v1251
      %v1284 = vunpack.c.l.b16 %v1252
      %v1285 = vunpack.c.l.b16 %v1253
      %v1286 = vunpack.c.l.b16 %v1254
      %v1287 = vunpack.c.l.b16 %v1255
      %v1288 = vunpack.c.l.b16 %v1256
      %v1289 = vunpack.c.l.b16 %v1257
      %v1290 = vunpack.c.l.b16 %v1258
      %v1291 = vunpack.c.l.b16 %v1259
      %v1292 = vunpack.c.l.b16 %v1260
      %v1293 = vunpack.c.l.b16 %v1261
      %v1294 = vunpack.c.l.b16 %v1262
      %v1295 = vunpack.c.l.b16 %v1263
      %v1296 = vunpack.c.l.b16 %v1264
      %v1297 = vpack.c.b16 %v1282, %v1281
      %v1298 = vpack.c.b16 %v1284, %v1283
      %v1299 = vpack.c.b16 %v1286, %v1285
      %v1300 = vpack.c.b16 %v1288, %v1287
      %v1301 = vpack.c.b16 %v1290, %v1289
      %v1302 = vpack.c.b16 %v1292, %v1291
      %v1303 = vpack.c.b16 %v1294, %v1293
      %v1304 = vpack.c.b16 %v1296, %v1295
      %1313 = vmatprep.subr.bf16.mxu0 0
      %1314 = vmatpush1.bf16.msra.mxu0 %v1297
      %1315 = vmatprep.subr.bf16.mxu0 0
      %1316 = vmatpush1.bf16.msra.mxu0 %v1298
      %1317 = vmatprep.subr.bf16.mxu0 0
      %1318 = vmatpush1.bf16.msra.mxu0 %v1299
      %1319 = vmatprep.subr.bf16.mxu0 0
      %1320 = vmatpush1.bf16.msra.mxu0 %v1300
      %1321 = vmatprep.subr.bf16.mxu0 0
      %1322 = vmatpush1.bf16.msra.mxu0 %v1301
      %1323 = vmatprep.subr.bf16.mxu0 0
      %1324 = vmatpush1.bf16.msra.mxu0 %v1302
      %1325 = vmatprep.subr.bf16.mxu0 0
      %1326 = vmatpush1.bf16.msra.mxu0 %v1303
      %1327 = vmatprep.subr.bf16.mxu0 0
      %1328 = vmatpush1.bf16.msra.mxu0 %v1304
      %1329 = vmatprep.subr.bf16.mxu0 0
      %1330 = vmatpush1.bf16.msra.mxu0 0
      %1331 = vmatprep.subr.bf16.mxu0 0
      %1332 = vmatpush1.bf16.msra.mxu0 0
      %1333 = vmatprep.subr.bf16.mxu0 0
      %1334 = vmatpush1.bf16.msra.mxu0 0
      %1335 = vmatprep.subr.bf16.mxu0 0
      %1336 = vmatpush1.bf16.msra.mxu0 0
      %1337 = vmatprep.subr.bf16.mxu0 0
      %1338 = vmatpush1.bf16.msra.mxu0 0
      %1339 = vmatprep.subr.bf16.mxu0 0
      %1340 = vmatpush1.bf16.msra.mxu0 0
      %1341 = vmatprep.subr.bf16.mxu0 0
      %1342 = vmatpush1.bf16.msra.mxu0 0
      %1343 = vmatprep.subr.bf16.mxu0 0
      %1344 = vmatpush1.bf16.msra.mxu0 0
      %1345 = vmatprep.mubr.bf16.mxu0 0
      %1346 = vmatmul.mubr.bf16.gmra.mrb[0].mxu0 %v1240
      %v1347 = vpop.f32.mrb[0].mxu0
      %v1348 = vadd.f32 0.0, %v1347
      %v1349 = vpop.f32.mrb[0].mxu0
      %v1350 = vpop.f32.mrb[0].mxu0
      %v1351 = vadd.f32 0.0, %v1350
      %v1352 = vpop.f32.mrb[0].mxu0
      %1353 = vmatprep.mubr.bf16.mxu0 0
      %1354 = vmatmul.mubr.bf16.gmra.mrb[0].mxu0 %v1242
      %v1355 = vpop.f32.mrb[0].mxu0
      %v1356 = vadd.f32 0.0, %v1355
      %v1357 = vpop.f32.mrb[0].mxu0
      %v1358 = vpop.f32.mrb[0].mxu0
      %v1359 = vadd.f32 0.0, %v1358
      %v1360 = vpop.f32.mrb[0].mxu0
      %1361 = vmatprep.mubr.bf16.mxu0 0
      %1362 = vmatmul.mubr.bf16.gmra.mrb[0].mxu0 %v1244
      %v1363 = vpop.f32.mrb[0].mxu0
      %v1364 = vadd.f32 0.0, %v1363
      %v1365 = vpop.f32.mrb[0].mxu0
      %v1366 = vpop.f32.mrb[0].mxu0
      %v1367 = vadd.f32 0.0, %v1366
      %v1368 = vpop.f32.mrb[0].mxu0
      %1369 = vmatprep.mubr.bf16.mxu0 0
      %1370 = vmatmul.mubr.bf16.gmra.mrb[0].mxu0 %v1246
      %v1371 = vpop.f32.mrb[0].mxu0
      %v1372 = vadd.f32 0.0, %v1371
      %v1373 = vpop.f32.mrb[0].mxu0
      %v1374 = vpop.f32.mrb[0].mxu0
      %v1375 = vadd.f32 0.0, %v1374
      %v1376 = vpop.f32.mrb[0].mxu0
      %1377 = vdwg.mxu0
      %v1378 = vadd.f32 %v1006, %v1348
      %v1379 = vadd.f32 %v1007, %v1351
      %v1380 = vadd.f32 %v1008, %v1356
      %v1381 = vadd.f32 %v1009, %v1359
      %v1382 = vadd.f32 %v1010, %v1364
      %v1383 = vadd.f32 %v1011, %v1367
      %v1384 = vadd.f32 %v1012, %v1372
      %v1385 = vadd.f32 %v1013, %v1375
      %v1386 = vmax.f32 %v1378, 0.0
      %v1387 = vmax.f32 %v1379, 0.0
      %v1388 = vmax.f32 %v1380, 0.0
      %v1389 = vmax.f32 %v1381, 0.0
      %v1390 = vmax.f32 %v1382, 0.0
      %v1391 = vmax.f32 %v1383, 0.0
      %v1392 = vmax.f32 %v1384, 0.0
      %v1393 = vmax.f32 %v1385, 0.0
      %v1394 = vpack.c.bf16 %v1387, %v1386
      %v1395 = vpack.c.bf16 %v1389, %v1388
      %v1396 = vpack.c.bf16 %v1391, %v1390
      %v1397 = vpack.c.bf16 %v1393, %v1392
      %1398 = vst [vmem:[#allocation2] sm:$0xf] 0
      %1399 = vst [vmem:[#allocation2 + $0x4] sm:$0x1] 0
      %s1400 = scalar_lea.vmem [#allocation2], 72
      %1401 = vst [vmem:[%s1400] sm:$0xf] 0
      %1402 = vst [vmem:[%s1400 + $0x4] sm:$0x1] 0
      %v1407 = vunpack.c.l.b16 %v1394
      %v1408 = vunpack.c.h.b16 %v1394
      %v1409 = vunpack.c.l.b16 %v1395
      %v1410 = vunpack.c.h.b16 %v1395
      %v1411 = vunpack.c.l.b16 %v1396
      %v1412 = vunpack.c.h.b16 %v1396
      %v1413 = vunpack.c.l.b16 %v1397
      %v1414 = vunpack.c.h.b16 %v1397
      %v1415 = vpack.c.b16 %v1407, %v1407
      %v1416 = vpack.c.b16 %v1408, %v1408
      %v1417 = vpack.c.b16 %v1409, %v1409
      %v1418 = vpack.c.b16 %v1410, %v1410
      %v1419 = vpack.c.b16 %v1411, %v1411
      %v1420 = vpack.c.b16 %v1412, %v1412
      %v1421 = vpack.c.b16 %v1413, %v1413
      %v1422 = vpack.c.b16 %v1414, %v1414
      %v1424 = vshrl.u32 %v1415, 16
      %v1426 = vrot.slane %v1424, 7
      %v1427 = vshll.u32 %v1415, 16
      %v1429 = vor.u32 %v1426, %v1427
      %v1431 = vshrl.u32 %v1416, 16
      %v1433 = vrot.slane %v1431, 7
      %v1434 = vshll.u32 %v1416, 16
      %v1436 = vor.u32 %v1433, %v1434
      %v1438 = vshrl.u32 %v1417, 16
      %v1440 = vrot.slane %v1438, 7
      %v1441 = vshll.u32 %v1417, 16
      %v1443 = vor.u32 %v1440, %v1441
      %v1445 = vshrl.u32 %v1418, 16
      %v1447 = vrot.slane %v1445, 7
      %v1448 = vshll.u32 %v1418, 16
      %v1450 = vor.u32 %v1447, %v1448
      %v1452 = vshrl.u32 %v1419, 16
      %v1454 = vrot.slane %v1452, 7
      %v1455 = vshll.u32 %v1419, 16
      %v1457 = vor.u32 %v1454, %v1455
      %v1459 = vshrl.u32 %v1420, 16
      %v1461 = vrot.slane %v1459, 7
      %v1462 = vshll.u32 %v1420, 16
      %v1464 = vor.u32 %v1461, %v1462
      %v1466 = vshrl.u32 %v1421, 16
      %v1468 = vrot.slane %v1466, 7
      %v1469 = vshll.u32 %v1421, 16
      %v1471 = vor.u32 %v1468, %v1469
      %v1473 = vshrl.u32 %v1422, 16
      %v1475 = vrot.slane %v1473, 7
      %v1476 = vshll.u32 %v1422, 16
      %v1478 = vor.u32 %v1475, %v1476
      %vm1487 = vcmask 1040384
      %vm1488 = vsmask.f32 256
      %vm1489 = vmand %vm1487, %vm1488
      %v1490 = vsel %vm1489, 0, %v1429
      %v1491 = vsel %vm1489, 0, %v1436
      %v1492 = vsel %vm1489, 0, %v1443
      %v1493 = vsel %vm1489, 0, %v1450
      %v1494 = vsel %vm1489, 0, %v1457
      %v1495 = vsel %vm1489, 0, %v1464
      %v1496 = vsel %vm1489, 0, %v1471
      %v1497 = vsel %vm1489, 0, %v1478
      %vm1498 = vcmask 1044480
      %vm1499 = vsmask.f32 4352
      %vm1500 = vmand %vm1498, %vm1499
      %v1501 = vsel %vm1500, %v1490, 0
      %v1502 = vsel %vm1500, %v1491, 0
      %v1503 = vsel %vm1500, %v1492, 0
      %v1504 = vsel %vm1500, %v1493, 0
      %v1505 = vsel %vm1500, %v1494, 0
      %v1506 = vsel %vm1500, %v1495, 0
      %v1507 = vsel %vm1500, %v1496, 0
      %v1508 = vsel %vm1500, %v1497, 0
      %v1517 = vunpack.c.l.b16 %v1501
      %v1518 = vunpack.c.h.b16 %v1501
      %v1519 = vunpack.c.l.b16 %v1502
      %v1520 = vunpack.c.h.b16 %v1502
      %v1521 = vunpack.c.l.b16 %v1503
      %v1522 = vunpack.c.h.b16 %v1503
      %v1523 = vunpack.c.l.b16 %v1504
      %v1524 = vunpack.c.h.b16 %v1504
      %v1525 = vunpack.c.l.b16 %v1505
      %v1526 = vunpack.c.h.b16 %v1505
      %v1527 = vunpack.c.l.b16 %v1506
      %v1528 = vunpack.c.h.b16 %v1506
      %v1529 = vunpack.c.l.b16 %v1507
      %v1530 = vunpack.c.h.b16 %v1507
      %v1531 = vunpack.c.l.b16 %v1508
      %v1532 = vunpack.c.h.b16 %v1508
      %v1533 = vpack.c.b16 %v1517, %v1517
      %v1534 = vpack.c.b16 %v1518, %v1518
      %v1535 = vpack.c.b16 %v1519, %v1519
      %v1536 = vpack.c.b16 %v1520, %v1520
      %v1537 = vpack.c.b16 %v1521, %v1521
      %v1538 = vpack.c.b16 %v1522, %v1522
      %v1539 = vpack.c.b16 %v1523, %v1523
      %v1540 = vpack.c.b16 %v1524, %v1524
      %v1541 = vpack.c.b16 %v1525, %v1525
      %v1542 = vpack.c.b16 %v1526, %v1526
      %v1543 = vpack.c.b16 %v1527, %v1527
      %v1544 = vpack.c.b16 %v1528, %v1528
      %v1545 = vpack.c.b16 %v1529, %v1529
      %v1546 = vpack.c.b16 %v1530, %v1530
      %v1547 = vpack.c.b16 %v1531, %v1531
      %v1548 = vpack.c.b16 %v1532, %v1532
      %s1565 = scalar_lea.vmem [#allocation2], 8
      %1566 = vst [vmem:[%s1565] sm:$0xf] %v1533
      %1567 = vst [vmem:[%s1565 + $0x4] sm:$0x1] %v1534
      %1568 = vst [vmem:[%s1565 + $0x8] sm:$0xf] %v1535
      %1569 = vst [vmem:[%s1565 + $0xc] sm:$0x1] %v1536
      %1570 = vst [vmem:[%s1565 + $0x10] sm:$0xf] %v1537
      %1571 = vst [vmem:[%s1565 + $0x14] sm:$0x1] %v1538
      %1572 = vst [vmem:[%s1565 + $0x18] sm:$0xf] %v1539
      %1573 = vst [vmem:[%s1565 + $0x1c] sm:$0x1] %v1540
      %1574 = vst [vmem:[%s1565 + $0x20] sm:$0xf] %v1541
      %1575 = vst [vmem:[%s1565 + $0x24] sm:$0x1] %v1542
      %1576 = vst [vmem:[%s1565 + $0x28] sm:$0xf] %v1543
      %1577 = vst [vmem:[%s1565 + $0x2c] sm:$0x1] %v1544
      %1578 = vst [vmem:[%s1565 + $0x30] sm:$0xf] %v1545
      %1579 = vst [vmem:[%s1565 + $0x34] sm:$0x1] %v1546
      %1580 = vst [vmem:[%s1565 + $0x38] sm:$0xf] %v1547
      %1581 = vst [vmem:[%s1565 + $0x3c] sm:$0x1] %v1548
      %v1582 = vld [vmem:[%s651] sm:$0xf]
      %v1583 = vld [vmem:[%s651 + $0x8] sm:$0xf]
      %v1584 = vld [vmem:[%s651 + $0x10] sm:$0xf]
      %v1585 = vld [vmem:[%s651 + $0x18] sm:$0xf]
      %v1586 = vld [vmem:[%s651 + $0x20] sm:$0xf]
      %v1587 = vld [vmem:[%s651 + $0x28] sm:$0xf]
      %v1588 = vld [vmem:[%s651 + $0x30] sm:$0xf]
      %v1589 = vld [vmem:[%s651 + $0x38] sm:$0xf]
      %v1598 = vunpack.c.l.b16 %v1582
      %v1599 = vunpack.c.l.b16 %v1583
      %v1600 = vunpack.c.l.b16 %v1584
      %v1601 = vunpack.c.l.b16 %v1585
      %v1602 = vunpack.c.l.b16 %v1586
      %v1603 = vunpack.c.l.b16 %v1587
      %v1604 = vunpack.c.l.b16 %v1588
      %v1605 = vunpack.c.l.b16 %v1589
      %v1606 = vpack.c.b16 %v1599, %v1598
      %v1607 = vpack.c.b16 %v1601, %v1600
      %v1608 = vpack.c.b16 %v1603, %v1602
      %v1609 = vpack.c.b16 %v1605, %v1604
      %v1611 = vsel %vm473, %v1606, 0
      %v1614 = vsel %vm473, %v1607, 0
      %v1617 = vsel %vm473, %v1608, 0
      %v1620 = vsel %vm473, %v1609, 0
      %v1622 = vld [vmem:[%s5] sm:$0xf]
      %v1623 = vld [vmem:[%s5 + $0x4] sm:$0xf]
      %v1624 = vld [vmem:[%s5 + $0x8] sm:$0xf]
      %v1625 = vld [vmem:[%s5 + $0xc] sm:$0xf]
      %v1626 = vld [vmem:[%s5 + $0x10] sm:$0xf]
      %v1627 = vld [vmem:[%s5 + $0x14] sm:$0xf]
      %v1628 = vld [vmem:[%s5 + $0x18] sm:$0xf]
      %v1629 = vld [vmem:[%s5 + $0x1c] sm:$0xf]
      %v1630 = vld [vmem:[%s5 + $0x20] sm:$0xf]
      %v1631 = vld [vmem:[%s5 + $0x24] sm:$0xf]
      %v1632 = vld [vmem:[%s5 + $0x28] sm:$0xf]
      %v1633 = vld [vmem:[%s5 + $0x2c] sm:$0xf]
      %v1634 = vld [vmem:[%s5 + $0x30] sm:$0xf]
      %v1635 = vld [vmem:[%s5 + $0x34] sm:$0xf]
      %v1636 = vld [vmem:[%s5 + $0x38] sm:$0xf]
      %v1637 = vld [vmem:[%s5 + $0x3c] sm:$0xf]
      %v1638 = vld [vmem:[%s4] sm:$0x1]
      %v1640 = vlaneseq
      %v1641 = vshrl.u32 %v1640, 7
      %v1642 = vsub.s32 0, %v1641
      %v1643 = vrot.slane %v1638, %v1642
      %v1661 = vunpack.c.l.b16 %v1622
      %v1662 = vunpack.c.l.b16 %v1623
      %v1663 = vunpack.c.l.b16 %v1624
      %v1664 = vunpack.c.l.b16 %v1625
      %v1665 = vunpack.c.l.b16 %v1626
      %v1666 = vunpack.c.l.b16 %v1627
      %v1667 = vunpack.c.l.b16 %v1628
      %v1668 = vunpack.c.l.b16 %v1629
      %v1669 = vunpack.c.l.b16 %v1630
      %v1670 = vunpack.c.l.b16 %v1631
      %v1671 = vunpack.c.l.b16 %v1632
      %v1672 = vunpack.c.l.b16 %v1633
      %v1673 = vunpack.c.l.b16 %v1634
      %v1674 = vunpack.c.l.b16 %v1635
      %v1675 = vunpack.c.l.b16 %v1636
      %v1676 = vunpack.c.l.b16 %v1637
      %v1677 = vpack.c.b16 %v1662, %v1661
      %v1678 = vpack.c.b16 %v1664, %v1663
      %v1679 = vpack.c.b16 %v1666, %v1665
      %v1680 = vpack.c.b16 %v1668, %v1667
      %v1681 = vpack.c.b16 %v1670, %v1669
      %v1682 = vpack.c.b16 %v1672, %v1671
      %v1683 = vpack.c.b16 %v1674, %v1673
      %v1684 = vpack.c.b16 %v1676, %v1675
      %1693 = vmatprep.subr.bf16.mxu0 0
      %1694 = vmatpush1.bf16.msra.mxu0 %v1677
      %1695 = vmatprep.subr.bf16.mxu0 0
      %1696 = vmatpush1.bf16.msra.mxu0 %v1678
      %1697 = vmatprep.subr.bf16.mxu0 0
      %1698 = vmatpush1.bf16.msra.mxu0 %v1679
      %1699 = vmatprep.subr.bf16.mxu0 0
      %1700 = vmatpush1.bf16.msra.mxu0 %v1680
      %1701 = vmatprep.subr.bf16.mxu0 0
      %1702 = vmatpush1.bf16.msra.mxu0 %v1681
      %1703 = vmatprep.subr.bf16.mxu0 0
      %1704 = vmatpush1.bf16.msra.mxu0 %v1682
      %1705 = vmatprep.subr.bf16.mxu0 0
      %1706 = vmatpush1.bf16.msra.mxu0 %v1683
      %1707 = vmatprep.subr.bf16.mxu0 0
      %1708 = vmatpush1.bf16.msra.mxu0 %v1684
      %1709 = vmatprep.subr.bf16.mxu0 0
      %1710 = vmatpush1.bf16.msra.mxu0 0
      %1711 = vmatprep.subr.bf16.mxu0 0
      %1712 = vmatpush1.bf16.msra.mxu0 0
      %1713 = vmatprep.subr.bf16.mxu0 0
      %1714 = vmatpush1.bf16.msra.mxu0 0
      %1715 = vmatprep.subr.bf16.mxu0 0
      %1716 = vmatpush1.bf16.msra.mxu0 0
      %1717 = vmatprep.subr.bf16.mxu0 0
      %1718 = vmatpush1.bf16.msra.mxu0 0
      %1719 = vmatprep.subr.bf16.mxu0 0
      %1720 = vmatpush1.bf16.msra.mxu0 0
      %1721 = vmatprep.subr.bf16.mxu0 0
      %1722 = vmatpush1.bf16.msra.mxu0 0
      %1723 = vmatprep.subr.bf16.mxu0 0
      %1724 = vmatpush1.bf16.msra.mxu0 0
      %1725 = vmatprep.mubr.bf16.mxu0 0
      %1726 = vmatmul.mubr.bf16.gmra.mrb[0].mxu0 %v1611
      %v1727 = vpop.f32.mrb[0].mxu0
      %v1728 = vadd.f32 %v1643, %v1727
      %v1729 = vpop.f32.mrb[0].mxu0
      %v1730 = vpop.f32.mrb[0].mxu0
      %v1731 = vadd.f32 %v1643, %v1730
      %v1732 = vpop.f32.mrb[0].mxu0
      %1733 = vmatprep.mubr.bf16.mxu0 0
      %1734 = vmatmul.mubr.bf16.gmra.mrb[0].mxu0 %v1614
      %v1735 = vpop.f32.mrb[0].mxu0
      %v1736 = vadd.f32 %v1643, %v1735
      %v1737 = vpop.f32.mrb[0].mxu0
      %v1738 = vpop.f32.mrb[0].mxu0
      %v1739 = vadd.f32 %v1643, %v1738
      %v1740 = vpop.f32.mrb[0].mxu0
      %1741 = vmatprep.mubr.bf16.mxu0 0
      %1742 = vmatmul.mubr.bf16.gmra.mrb[0].mxu0 %v1617
      %v1743 = vpop.f32.mrb[0].mxu0
      %v1744 = vadd.f32 %v1643, %v1743
      %v1745 = vpop.f32.mrb[0].mxu0
      %v1746 = vpop.f32.mrb[0].mxu0
      %v1747 = vadd.f32 %v1643, %v1746
      %v1748 = vpop.f32.mrb[0].mxu0
      %1749 = vmatprep.mubr.bf16.mxu0 0
      %1750 = vmatmul.mubr.bf16.gmra.mrb[0].mxu0 %v1620
      %v1751 = vpop.f32.mrb[0].mxu0
      %v1752 = vadd.f32 %v1643, %v1751
      %v1753 = vpop.f32.mrb[0].mxu0
      %v1754 = vpop.f32.mrb[0].mxu0
      %v1755 = vadd.f32 %v1643, %v1754
      %v1756 = vpop.f32.mrb[0].mxu0
      %1757 = vdwg.mxu0
      %v1758 = vld [vmem:[#allocation2] sm:$0xf]
      %v1759 = vld [vmem:[#allocation2 + $0x8] sm:$0xf]
      %v1760 = vld [vmem:[#allocation2 + $0x10] sm:$0xf]
      %v1761 = vld [vmem:[#allocation2 + $0x18] sm:$0xf]
      %v1762 = vld [vmem:[#allocation2 + $0x20] sm:$0xf]
      %v1763 = vld [vmem:[#allocation2 + $0x28] sm:$0xf]
      %v1764 = vld [vmem:[#allocation2 + $0x30] sm:$0xf]
      %v1765 = vld [vmem:[#allocation2 + $0x38] sm:$0xf]
      %v1766 = vld [vmem:[#allocation2 + $0x4] sm:$0x1]
      %v1767 = vld [vmem:[#allocation2 + $0xc] sm:$0x1]
      %v1768 = vld [vmem:[#allocation2 + $0x14] sm:$0x1]
      %v1769 = vld [vmem:[#allocation2 + $0x1c] sm:$0x1]
      %v1770 = vld [vmem:[#allocation2 + $0x24] sm:$0x1]
      %v1771 = vld [vmem:[#allocation2 + $0x2c] sm:$0x1]
      %v1772 = vld [vmem:[#allocation2 + $0x34] sm:$0x1]
      %v1773 = vld [vmem:[#allocation2 + $0x3c] sm:$0x1]
      %v1775 = vshrl.u32 %v1758, 16
      %v1777 = vrot.slane %v1775, 4
      %v1778 = vshll.u32 %v1758, 16
      %v1780 = vrot.slane %v1778, 5
      %v1781 = vor.u32 %v1777, %v1780
      %v1782 = vrot.slane %v1781, 4
      %v1784 = vshll.u32 %v1766, 16
      %v1786 = vrot.slane %v1784, 5
      %v1787 = vsel %vm292, %v1782, %v1786
      %v1789 = vshrl.u32 %v1759, 16
      %v1791 = vrot.slane %v1789, 4
      %v1792 = vshll.u32 %v1759, 16
      %v1794 = vrot.slane %v1792, 5
      %v1795 = vor.u32 %v1791, %v1794
      %v1796 = vrot.slane %v1795, 4
      %v1798 = vshll.u32 %v1767, 16
      %v1800 = vrot.slane %v1798, 5
      %v1801 = vsel %vm292, %v1796, %v1800
      %v1803 = vshrl.u32 %v1760, 16
      %v1805 = vrot.slane %v1803, 4
      %v1806 = vshll.u32 %v1760, 16
      %v1808 = vrot.slane %v1806, 5
      %v1809 = vor.u32 %v1805, %v1808
      %v1810 = vrot.slane %v1809, 4
      %v1812 = vshll.u32 %v1768, 16
      %v1814 = vrot.slane %v1812, 5
      %v1815 = vsel %vm292, %v1810, %v1814
      %v1817 = vshrl.u32 %v1761, 16
      %v1819 = vrot.slane %v1817, 4
      %v1820 = vshll.u32 %v1761, 16
      %v1822 = vrot.slane %v1820, 5
      %v1823 = vor.u32 %v1819, %v1822
      %v1824 = vrot.slane %v1823, 4
      %v1826 = vshll.u32 %v1769, 16
      %v1828 = vrot.slane %v1826, 5
      %v1829 = vsel %vm292, %v1824, %v1828
      %v1831 = vshrl.u32 %v1762, 16
      %v1833 = vrot.slane %v1831, 4
      %v1834 = vshll.u32 %v1762, 16
      %v1836 = vrot.slane %v1834, 5
      %v1837 = vor.u32 %v1833, %v1836
      %v1838 = vrot.slane %v1837, 4
      %v1840 = vshll.u32 %v1770, 16
      %v1842 = vrot.slane %v1840, 5
      %v1843 = vsel %vm292, %v1838, %v1842
      %v1845 = vshrl.u32 %v1763, 16
      %v1847 = vrot.slane %v1845, 4
      %v1848 = vshll.u32 %v1763, 16
      %v1850 = vrot.slane %v1848, 5
      %v1851 = vor.u32 %v1847, %v1850
      %v1852 = vrot.slane %v1851, 4
      %v1854 = vshll.u32 %v1771, 16
      %v1856 = vrot.slane %v1854, 5
      %v1857 = vsel %vm292, %v1852, %v1856
      %v1859 = vshrl.u32 %v1764, 16
      %v1861 = vrot.slane %v1859, 4
      %v1862 = vshll.u32 %v1764, 16
      %v1864 = vrot.slane %v1862, 5
      %v1865 = vor.u32 %v1861, %v1864
      %v1866 = vrot.slane %v1865, 4
      %v1868 = vshll.u32 %v1772, 16
      %v1870 = vrot.slane %v1868, 5
      %v1871 = vsel %vm292, %v1866, %v1870
      %v1873 = vshrl.u32 %v1765, 16
      %v1875 = vrot.slane %v1873, 4
      %v1876 = vshll.u32 %v1765, 16
      %v1878 = vrot.slane %v1876, 5
      %v1879 = vor.u32 %v1875, %v1878
      %v1880 = vrot.slane %v1879, 4
      %v1882 = vshll.u32 %v1773, 16
      %v1884 = vrot.slane %v1882, 5
      %v1885 = vsel %vm292, %v1880, %v1884
      %v1886 = vld [vmem:[#allocation2] sm:$0xe]
      %v1887 = vld [vmem:[#allocation2 + $0x8] sm:$0xe]
      %v1888 = vld [vmem:[#allocation2 + $0x10] sm:$0xe]
      %v1889 = vld [vmem:[#allocation2 + $0x18] sm:$0xe]
      %v1890 = vld [vmem:[#allocation2 + $0x20] sm:$0xe]
      %v1891 = vld [vmem:[#allocation2 + $0x28] sm:$0xe]
      %v1892 = vld [vmem:[#allocation2 + $0x30] sm:$0xe]
      %v1893 = vld [vmem:[#allocation2 + $0x38] sm:$0xe]
      %vm1910 = vcmask 1042432
      %vm1911 = vcmask 1046532
      %vm1912 = vmor %vm1910, %vm1911
      %v1913 = vrot.slane %v1886, 5
      %v1914 = vrot.slane %v1913, 4
      %v1915 = vrot.slane %v1766, 5
      %v1916 = vsel %vm1912, %v1914, %v1915
      %v1917 = vrot.slane %v1887, 5
      %v1918 = vrot.slane %v1917, 4
      %v1919 = vrot.slane %v1767, 5
      %v1920 = vsel %vm1912, %v1918, %v1919
      %v1921 = vrot.slane %v1888, 5
      %v1922 = vrot.slane %v1921, 4
      %v1923 = vrot.slane %v1768, 5
      %v1924 = vsel %vm1912, %v1922, %v1923
      %v1925 = vrot.slane %v1889, 5
      %v1926 = vrot.slane %v1925, 4
      %v1927 = vrot.slane %v1769, 5
      %v1928 = vsel %vm1912, %v1926, %v1927
      %v1929 = vrot.slane %v1890, 5
      %v1930 = vrot.slane %v1929, 4
      %v1931 = vrot.slane %v1770, 5
      %v1932 = vsel %vm1912, %v1930, %v1931
      %v1933 = vrot.slane %v1891, 5
      %v1934 = vrot.slane %v1933, 4
      %v1935 = vrot.slane %v1771, 5
      %v1936 = vsel %vm1912, %v1934, %v1935
      %v1937 = vrot.slane %v1892, 5
      %v1938 = vrot.slane %v1937, 4
      %v1939 = vrot.slane %v1772, 5
      %v1940 = vsel %vm1912, %v1938, %v1939
      %v1941 = vrot.slane %v1893, 5
      %v1942 = vrot.slane %v1941, 4
      %v1943 = vrot.slane %v1773, 5
      %v1944 = vsel %vm1912, %v1942, %v1943
      %v1953 = vunpack.c.l.b16 %v1758
      %v1954 = vunpack.c.l.b16 %v1759
      %v1955 = vunpack.c.l.b16 %v1760
      %v1956 = vunpack.c.l.b16 %v1761
      %v1957 = vunpack.c.l.b16 %v1762
      %v1958 = vunpack.c.l.b16 %v1763
      %v1959 = vunpack.c.l.b16 %v1764
      %v1960 = vunpack.c.l.b16 %v1765
      %v1961 = vpack.c.b16 %v1954, %v1953
      %v1962 = vpack.c.b16 %v1956, %v1955
      %v1963 = vpack.c.b16 %v1958, %v1957
      %v1964 = vpack.c.b16 %v1960, %v1959
      %v1969 = vunpack.c.l.b16 %v1787
      %v1970 = vunpack.c.l.b16 %v1801
      %v1971 = vunpack.c.l.b16 %v1815
      %v1972 = vunpack.c.l.b16 %v1829
      %v1973 = vunpack.c.l.b16 %v1843
      %v1974 = vunpack.c.l.b16 %v1857
      %v1975 = vunpack.c.l.b16 %v1871
      %v1976 = vunpack.c.l.b16 %v1885
      %v1977 = vpack.c.b16 %v1970, %v1969
      %v1978 = vpack.c.b16 %v1972, %v1971
      %v1979 = vpack.c.b16 %v1974, %v1973
      %v1980 = vpack.c.b16 %v1976, %v1975
      %v1985 = vunpack.c.l.b16 %v1916
      %v1986 = vunpack.c.l.b16 %v1920
      %v1987 = vunpack.c.l.b16 %v1924
      %v1988 = vunpack.c.l.b16 %v1928
      %v1989 = vunpack.c.l.b16 %v1932
      %v1990 = vunpack.c.l.b16 %v1936
      %v1991 = vunpack.c.l.b16 %v1940
      %v1992 = vunpack.c.l.b16 %v1944
      %v1993 = vpack.c.b16 %v1986, %v1985
      %v1994 = vpack.c.b16 %v1988, %v1987
      %v1995 = vpack.c.b16 %v1990, %v1989
      %v1996 = vpack.c.b16 %v1992, %v1991
      %v2001 = vld [vmem:[%s3] sm:$0xf]
      %v2002 = vld [vmem:[%s3 + $0x4] sm:$0xf]
      %v2003 = vld [vmem:[%s3 + $0x8] sm:$0xf]
      %v2004 = vld [vmem:[%s3 + $0xc] sm:$0xf]
      %v2005 = vld [vmem:[%s3 + $0x10] sm:$0xf]
      %v2006 = vld [vmem:[%s3 + $0x14] sm:$0xf]
      %v2007 = vld [vmem:[%s3 + $0x18] sm:$0xf]
      %v2008 = vld [vmem:[%s3 + $0x1c] sm:$0xf]
      %v2009 = vld [vmem:[%s3 + $0x20] sm:$0xf]
      %v2010 = vld [vmem:[%s3 + $0x24] sm:$0xf]
      %v2011 = vld [vmem:[%s3 + $0x28] sm:$0xf]
      %v2012 = vld [vmem:[%s3 + $0x2c] sm:$0xf]
      %v2013 = vld [vmem:[%s3 + $0x30] sm:$0xf]
      %v2014 = vld [vmem:[%s3 + $0x34] sm:$0xf]
      %v2015 = vld [vmem:[%s3 + $0x38] sm:$0xf]
      %v2016 = vld [vmem:[%s3 + $0x3c] sm:$0xf]
      %v2017 = vld [vmem:[%s3 + $0x40] sm:$0xf]
      %v2018 = vld [vmem:[%s3 + $0x44] sm:$0xf]
      %v2019 = vld [vmem:[%s3 + $0x48] sm:$0xf]
      %v2020 = vld [vmem:[%s3 + $0x4c] sm:$0xf]
      %v2021 = vld [vmem:[%s3 + $0x50] sm:$0xf]
      %v2022 = vld [vmem:[%s3 + $0x54] sm:$0xf]
      %v2023 = vld [vmem:[%s3 + $0x58] sm:$0xf]
      %v2024 = vld [vmem:[%s3 + $0x5c] sm:$0xf]
      %v2025 = vld [vmem:[%s3 + $0x60] sm:$0xf]
      %v2026 = vld [vmem:[%s3 + $0x64] sm:$0xf]
      %v2027 = vld [vmem:[%s3 + $0x68] sm:$0xf]
      %v2028 = vld [vmem:[%s3 + $0x6c] sm:$0xf]
      %v2029 = vld [vmem:[%s3 + $0x70] sm:$0xf]
      %v2030 = vld [vmem:[%s3 + $0x74] sm:$0xf]
      %v2031 = vld [vmem:[%s3 + $0x78] sm:$0xf]
      %v2032 = vld [vmem:[%s3 + $0x7c] sm:$0xf]
      %v2033 = vld [vmem:[%s3 + $0x80] sm:$0xf]
      %v2034 = vld [vmem:[%s3 + $0x84] sm:$0xf]
      %v2035 = vld [vmem:[%s3 + $0x88] sm:$0xf]
      %v2036 = vld [vmem:[%s3 + $0x8c] sm:$0xf]
      %v2037 = vld [vmem:[%s3 + $0x90] sm:$0xf]
      %v2038 = vld [vmem:[%s3 + $0x94] sm:$0xf]
      %v2039 = vld [vmem:[%s3 + $0x98] sm:$0xf]
      %v2040 = vld [vmem:[%s3 + $0x9c] sm:$0xf]
      %v2041 = vld [vmem:[%s3 + $0xa0] sm:$0xf]
      %v2042 = vld [vmem:[%s3 + $0xa4] sm:$0xf]
      %v2043 = vld [vmem:[%s3 + $0xa8] sm:$0xf]
      %v2044 = vld [vmem:[%s3 + $0xac] sm:$0xf]
      %v2045 = vld [vmem:[%s3 + $0xb0] sm:$0xf]
      %v2046 = vld [vmem:[%s3 + $0xb4] sm:$0xf]
      %v2047 = vld [vmem:[%s3 + $0xb8] sm:$0xf]
      %v2048 = vld [vmem:[%s3 + $0xbc] sm:$0xf]
      %v2097 = vunpack.c.l.b16 %v2001
      %v2098 = vunpack.c.l.b16 %v2002
      %v2099 = vunpack.c.l.b16 %v2003
      %v2100 = vunpack.c.l.b16 %v2004
      %v2101 = vunpack.c.l.b16 %v2005
      %v2102 = vunpack.c.l.b16 %v2006
      %v2103 = vunpack.c.l.b16 %v2007
      %v2104 = vunpack.c.l.b16 %v2008
      %v2105 = vunpack.c.l.b16 %v2009
      %v2106 = vunpack.c.l.b16 %v2010
      %v2107 = vunpack.c.l.b16 %v2011
      %v2108 = vunpack.c.l.b16 %v2012
      %v2109 = vunpack.c.l.b16 %v2013
      %v2110 = vunpack.c.l.b16 %v2014
      %v2111 = vunpack.c.l.b16 %v2015
      %v2112 = vunpack.c.l.b16 %v2016
      %v2113 = vunpack.c.l.b16 %v2017
      %v2114 = vunpack.c.l.b16 %v2018
      %v2115 = vunpack.c.l.b16 %v2019
      %v2116 = vunpack.c.l.b16 %v2020
      %v2117 = vunpack.c.l.b16 %v2021
      %v2118 = vunpack.c.l.b16 %v2022
      %v2119 = vunpack.c.l.b16 %v2023
      %v2120 = vunpack.c.l.b16 %v2024
      %v2121 = vunpack.c.l.b16 %v2025
      %v2122 = vunpack.c.l.b16 %v2026
      %v2123 = vunpack.c.l.b16 %v2027
      %v2124 = vunpack.c.l.b16 %v2028
      %v2125 = vunpack.c.l.b16 %v2029
      %v2126 = vunpack.c.l.b16 %v2030
      %v2127 = vunpack.c.l.b16 %v2031
      %v2128 = vunpack.c.l.b16 %v2032
      %v2129 = vunpack.c.l.b16 %v2033
      %v2130 = vunpack.c.l.b16 %v2034
      %v2131 = vunpack.c.l.b16 %v2035
      %v2132 = vunpack.c.l.b16 %v2036
      %v2133 = vunpack.c.l.b16 %v2037
      %v2134 = vunpack.c.l.b16 %v2038
      %v2135 = vunpack.c.l.b16 %v2039
      %v2136 = vunpack.c.l.b16 %v2040
      %v2137 = vunpack.c.l.b16 %v2041
      %v2138 = vunpack.c.l.b16 %v2042
      %v2139 = vunpack.c.l.b16 %v2043
      %v2140 = vunpack.c.l.b16 %v2044
      %v2141 = vunpack.c.l.b16 %v2045
      %v2142 = vunpack.c.l.b16 %v2046
      %v2143 = vunpack.c.l.b16 %v2047
      %v2144 = vunpack.c.l.b16 %v2048
      %v2145 = vpack.c.b16 %v2098, %v2097
      %v2146 = vpack.c.b16 %v2100, %v2099
      %v2147 = vpack.c.b16 %v2102, %v2101
      %v2148 = vpack.c.b16 %v2104, %v2103
      %v2149 = vpack.c.b16 %v2106, %v2105
      %v2150 = vpack.c.b16 %v2108, %v2107
      %v2151 = vpack.c.b16 %v2110, %v2109
      %v2152 = vpack.c.b16 %v2112, %v2111
      %v2153 = vpack.c.b16 %v2114, %v2113
      %v2154 = vpack.c.b16 %v2116, %v2115
      %v2155 = vpack.c.b16 %v2118, %v2117
      %v2156 = vpack.c.b16 %v2120, %v2119
      %v2157 = vpack.c.b16 %v2122, %v2121
      %v2158 = vpack.c.b16 %v2124, %v2123
      %v2159 = vpack.c.b16 %v2126, %v2125
      %v2160 = vpack.c.b16 %v2128, %v2127
      %v2161 = vpack.c.b16 %v2130, %v2129
      %v2162 = vpack.c.b16 %v2132, %v2131
      %v2163 = vpack.c.b16 %v2134, %v2133
      %v2164 = vpack.c.b16 %v2136, %v2135
      %v2165 = vpack.c.b16 %v2138, %v2137
      %v2166 = vpack.c.b16 %v2140, %v2139
      %v2167 = vpack.c.b16 %v2142, %v2141
      %v2168 = vpack.c.b16 %v2144, %v2143
      %2193 = vmatprep.subr.bf16.mxu0 0
      %2194 = vmatpush1.bf16.msra.mxu0 %v2145
      %2195 = vmatprep.subr.bf16.mxu0 0
      %2196 = vmatpush1.bf16.msra.mxu0 %v2146
      %2197 = vmatprep.subr.bf16.mxu0 0
      %2198 = vmatpush1.bf16.msra.mxu0 %v2147
      %2199 = vmatprep.subr.bf16.mxu0 0
      %2200 = vmatpush1.bf16.msra.mxu0 %v2148
      %2201 = vmatprep.subr.bf16.mxu0 0
      %2202 = vmatpush1.bf16.msra.mxu0 %v2149
      %2203 = vmatprep.subr.bf16.mxu0 0
      %2204 = vmatpush1.bf16.msra.mxu0 %v2150
      %2205 = vmatprep.subr.bf16.mxu0 0
      %2206 = vmatpush1.bf16.msra.mxu0 %v2151
      %2207 = vmatprep.subr.bf16.mxu0 0
      %2208 = vmatpush1.bf16.msra.mxu0 %v2152
      %2209 = vmatprep.subr.bf16.mxu0 0
      %2210 = vmatpush1.bf16.msra.mxu0 %v2153
      %2211 = vmatprep.subr.bf16.mxu0 0
      %2212 = vmatpush1.bf16.msra.mxu0 %v2154
      %2213 = vmatprep.subr.bf16.mxu0 0
      %2214 = vmatpush1.bf16.msra.mxu0 %v2155
      %2215 = vmatprep.subr.bf16.mxu0 0
      %2216 = vmatpush1.bf16.msra.mxu0 %v2156
      %2217 = vmatprep.subr.bf16.mxu0 0
      %2218 = vmatpush1.bf16.msra.mxu0 %v2157
      %2219 = vmatprep.subr.bf16.mxu0 0
      %2220 = vmatpush1.bf16.msra.mxu0 %v2158
      %2221 = vmatprep.subr.bf16.mxu0 0
      %2222 = vmatpush1.bf16.msra.mxu0 %v2159
      %2223 = vmatprep.subr.bf16.mxu0 0
      %2224 = vmatpush1.bf16.msra.mxu0 %v2160
      %2225 = vmatprep.mubr.bf16.mxu0 %v1977
      %2226 = vmatmul.mubr.bf16.gmra.mrb[0].mxu0 %v1961
      %v2227 = vpop.f32.mrb[0].mxu0
      %v2228 = vadd.f32 0.0, %v2227
      %v2229 = vpop.f32.mrb[0].mxu0
      %v2230 = vpop.f32.mrb[0].mxu0
      %v2231 = vadd.f32 0.0, %v2230
      %v2232 = vpop.f32.mrb[0].mxu0
      %2233 = vmatprep.mubr.bf16.mxu0 %v1978
      %2234 = vmatmul.mubr.bf16.gmra.mrb[0].mxu0 %v1962
      %v2235 = vpop.f32.mrb[0].mxu0
      %v2236 = vadd.f32 0.0, %v2235
      %v2237 = vpop.f32.mrb[0].mxu0
      %v2238 = vpop.f32.mrb[0].mxu0
      %v2239 = vadd.f32 0.0, %v2238
      %v2240 = vpop.f32.mrb[0].mxu0
      %2241 = vmatprep.mubr.bf16.mxu0 %v1979
      %2242 = vmatmul.mubr.bf16.gmra.mrb[0].mxu0 %v1963
      %v2243 = vpop.f32.mrb[0].mxu0
      %v2244 = vadd.f32 0.0, %v2243
      %v2245 = vpop.f32.mrb[0].mxu0
      %v2246 = vpop.f32.mrb[0].mxu0
      %v2247 = vadd.f32 0.0, %v2246
      %v2248 = vpop.f32.mrb[0].mxu0
      %2249 = vmatprep.mubr.bf16.mxu0 %v1980
      %2250 = vmatmul.mubr.bf16.gmra.mrb[0].mxu0 %v1964
      %v2251 = vpop.f32.mrb[0].mxu0
      %v2252 = vadd.f32 0.0, %v2251
      %v2253 = vpop.f32.mrb[0].mxu0
      %v2254 = vpop.f32.mrb[0].mxu0
      %v2255 = vadd.f32 0.0, %v2254
      %v2256 = vpop.f32.mrb[0].mxu0
      %2257 = vdwg.mxu0
      %2258 = vmatprep.subr.bf16.mxu0 0
      %2259 = vmatpush1.bf16.msra.mxu0 %v2161
      %2260 = vmatprep.subr.bf16.mxu0 0
      %2261 = vmatpush1.bf16.msra.mxu0 %v2162
      %2262 = vmatprep.subr.bf16.mxu0 0
      %2263 = vmatpush1.bf16.msra.mxu0 %v2163
      %2264 = vmatprep.subr.bf16.mxu0 0
      %2265 = vmatpush1.bf16.msra.mxu0 %v2164
      %2266 = vmatprep.subr.bf16.mxu0 0
      %2267 = vmatpush1.bf16.msra.mxu0 %v2165
      %2268 = vmatprep.subr.bf16.mxu0 0
      %2269 = vmatpush1.bf16.msra.mxu0 %v2166
      %2270 = vmatprep.subr.bf16.mxu0 0
      %2271 = vmatpush1.bf16.msra.mxu0 %v2167
      %2272 = vmatprep.subr.bf16.mxu0 0
      %2273 = vmatpush1.bf16.msra.mxu0 %v2168
      %2274 = vmatprep.subr.bf16.mxu0 0
      %2275 = vmatpush1.bf16.msra.mxu0 0
      %2276 = vmatprep.subr.bf16.mxu0 0
      %2277 = vmatpush1.bf16.msra.mxu0 0
      %2278 = vmatprep.subr.bf16.mxu0 0
      %2279 = vmatpush1.bf16.msra.mxu0 0
      %2280 = vmatprep.subr.bf16.mxu0 0
      %2281 = vmatpush1.bf16.msra.mxu0 0
      %2282 = vmatprep.subr.bf16.mxu0 0
      %2283 = vmatpush1.bf16.msra.mxu0 0
      %2284 = vmatprep.subr.bf16.mxu0 0
      %2285 = vmatpush1.bf16.msra.mxu0 0
      %2286 = vmatprep.subr.bf16.mxu0 0
      %2287 = vmatpush1.bf16.msra.mxu0 0
      %2288 = vmatprep.subr.bf16.mxu0 0
      %2289 = vmatpush1.bf16.msra.mxu0 0
      %2290 = vmatprep.mubr.bf16.mxu0 0
      %2291 = vmatmul.mubr.bf16.gmra.mrb[0].mxu0 %v1993
      %v2292 = vpop.f32.mrb[0].mxu0
      %v2293 = vadd.f32 %v2228, %v2292
      %v2294 = vpop.f32.mrb[0].mxu0
      %v2295 = vpop.f32.mrb[0].mxu0
      %v2296 = vadd.f32 %v2231, %v2295
      %v2297 = vpop.f32.mrb[0].mxu0
      %2298 = vmatprep.mubr.bf16.mxu0 0
      %2299 = vmatmul.mubr.bf16.gmra.mrb[0].mxu0 %v1994
      %v2300 = vpop.f32.mrb[0].mxu0
      %v2301 = vadd.f32 %v2236, %v2300
      %v2302 = vpop.f32.mrb[0].mxu0
      %v2303 = vpop.f32.mrb[0].mxu0
      %v2304 = vadd.f32 %v2239, %v2303
      %v2305 = vpop.f32.mrb[0].mxu0
      %2306 = vmatprep.mubr.bf16.mxu0 0
      %2307 = vmatmul.mubr.bf16.gmra.mrb[0].mxu0 %v1995
      %v2308 = vpop.f32.mrb[0].mxu0
      %v2309 = vadd.f32 %v2244, %v2308
      %v2310 = vpop.f32.mrb[0].mxu0
      %v2311 = vpop.f32.mrb[0].mxu0
      %v2312 = vadd.f32 %v2247, %v2311
      %v2313 = vpop.f32.mrb[0].mxu0
      %2314 = vmatprep.mubr.bf16.mxu0 0
      %2315 = vmatmul.mubr.bf16.gmra.mrb[0].mxu0 %v1996
      %v2316 = vpop.f32.mrb[0].mxu0
      %v2317 = vadd.f32 %v2252, %v2316
      %v2318 = vpop.f32.mrb[0].mxu0
      %v2319 = vpop.f32.mrb[0].mxu0
      %v2320 = vadd.f32 %v2255, %v2319
      %v2321 = vpop.f32.mrb[0].mxu0
      %2322 = vdwg.mxu0
      %v2323 = vadd.f32 %v1728, %v2293
      %v2324 = vadd.f32 %v1731, %v2296
      %v2325 = vadd.f32 %v1736, %v2301
      %v2326 = vadd.f32 %v1739, %v2304
      %v2327 = vadd.f32 %v1744, %v2309
      %v2328 = vadd.f32 %v1747, %v2312
      %v2329 = vadd.f32 %v1752, %v2317
      %v2330 = vadd.f32 %v1755, %v2320
      %v2331 = vld [vmem:[%s1565] sm:$0xf]
      %v2332 = vld [vmem:[%s1565 + $0x8] sm:$0xf]
      %v2333 = vld [vmem:[%s1565 + $0x10] sm:$0xf]
      %v2334 = vld [vmem:[%s1565 + $0x18] sm:$0xf]
      %v2335 = vld [vmem:[%s1565 + $0x20] sm:$0xf]
      %v2336 = vld [vmem:[%s1565 + $0x28] sm:$0xf]
      %v2337 = vld [vmem:[%s1565 + $0x30] sm:$0xf]
      %v2338 = vld [vmem:[%s1565 + $0x38] sm:$0xf]
      %v2339 = vld [vmem:[%s1565 + $0x4] sm:$0x1]
      %v2340 = vld [vmem:[%s1565 + $0xc] sm:$0x1]
      %v2341 = vld [vmem:[%s1565 + $0x14] sm:$0x1]
      %v2342 = vld [vmem:[%s1565 + $0x1c] sm:$0x1]
      %v2343 = vld [vmem:[%s1565 + $0x24] sm:$0x1]
      %v2344 = vld [vmem:[%s1565 + $0x2c] sm:$0x1]
      %v2345 = vld [vmem:[%s1565 + $0x34] sm:$0x1]
      %v2346 = vld [vmem:[%s1565 + $0x3c] sm:$0x1]
      %v2348 = vshrl.u32 %v2331, 16
      %v2350 = vrot.slane %v2348, 4
      %v2351 = vshll.u32 %v2331, 16
      %v2353 = vrot.slane %v2351, 5
      %v2354 = vor.u32 %v2350, %v2353
      %v2355 = vrot.slane %v2354, 4
      %v2357 = vshll.u32 %v2339, 16
      %v2359 = vrot.slane %v2357, 5
      %v2360 = vsel %vm292, %v2355, %v2359
      %v2362 = vshrl.u32 %v2332, 16
      %v2364 = vrot.slane %v2362, 4
      %v2365 = vshll.u32 %v2332, 16
      %v2367 = vrot.slane %v2365, 5
      %v2368 = vor.u32 %v2364, %v2367
      %v2369 = vrot.slane %v2368, 4
      %v2371 = vshll.u32 %v2340, 16
      %v2373 = vrot.slane %v2371, 5
      %v2374 = vsel %vm292, %v2369, %v2373
      %v2376 = vshrl.u32 %v2333, 16
      %v2378 = vrot.slane %v2376, 4
      %v2379 = vshll.u32 %v2333, 16
      %v2381 = vrot.slane %v2379, 5
      %v2382 = vor.u32 %v2378, %v2381
      %v2383 = vrot.slane %v2382, 4
      %v2385 = vshll.u32 %v2341, 16
      %v2387 = vrot.slane %v2385, 5
      %v2388 = vsel %vm292, %v2383, %v2387
      %v2390 = vshrl.u32 %v2334, 16
      %v2392 = vrot.slane %v2390, 4
      %v2393 = vshll.u32 %v2334, 16
      %v2395 = vrot.slane %v2393, 5
      %v2396 = vor.u32 %v2392, %v2395
      %v2397 = vrot.slane %v2396, 4
      %v2399 = vshll.u32 %v2342, 16
      %v2401 = vrot.slane %v2399, 5
      %v2402 = vsel %vm292, %v2397, %v2401
      %v2404 = vshrl.u32 %v2335, 16
      %v2406 = vrot.slane %v2404, 4
      %v2407 = vshll.u32 %v2335, 16
      %v2409 = vrot.slane %v2407, 5
      %v2410 = vor.u32 %v2406, %v2409
      %v2411 = vrot.slane %v2410, 4
      %v2413 = vshll.u32 %v2343, 16
      %v2415 = vrot.slane %v2413, 5
      %v2416 = vsel %vm292, %v2411, %v2415
      %v2418 = vshrl.u32 %v2336, 16
      %v2420 = vrot.slane %v2418, 4
      %v2421 = vshll.u32 %v2336, 16
      %v2423 = vrot.slane %v2421, 5
      %v2424 = vor.u32 %v2420, %v2423
      %v2425 = vrot.slane %v2424, 4
      %v2427 = vshll.u32 %v2344, 16
      %v2429 = vrot.slane %v2427, 5
      %v2430 = vsel %vm292, %v2425, %v2429
      %v2432 = vshrl.u32 %v2337, 16
      %v2434 = vrot.slane %v2432, 4
      %v2435 = vshll.u32 %v2337, 16
      %v2437 = vrot.slane %v2435, 5
      %v2438 = vor.u32 %v2434, %v2437
      %v2439 = vrot.slane %v2438, 4
      %v2441 = vshll.u32 %v2345, 16
      %v2443 = vrot.slane %v2441, 5
      %v2444 = vsel %vm292, %v2439, %v2443
      %v2446 = vshrl.u32 %v2338, 16
      %v2448 = vrot.slane %v2446, 4
      %v2449 = vshll.u32 %v2338, 16
      %v2451 = vrot.slane %v2449, 5
      %v2452 = vor.u32 %v2448, %v2451
      %v2453 = vrot.slane %v2452, 4
      %v2455 = vshll.u32 %v2346, 16
      %v2457 = vrot.slane %v2455, 5
      %v2458 = vsel %vm292, %v2453, %v2457
      %v2459 = vld [vmem:[%s1565] sm:$0xe]
      %v2460 = vld [vmem:[%s1565 + $0x8] sm:$0xe]
      %v2461 = vld [vmem:[%s1565 + $0x10] sm:$0xe]
      %v2462 = vld [vmem:[%s1565 + $0x18] sm:$0xe]
      %v2463 = vld [vmem:[%s1565 + $0x20] sm:$0xe]
      %v2464 = vld [vmem:[%s1565 + $0x28] sm:$0xe]
      %v2465 = vld [vmem:[%s1565 + $0x30] sm:$0xe]
      %v2466 = vld [vmem:[%s1565 + $0x38] sm:$0xe]
      %v2483 = vrot.slane %v2459, 5
      %v2484 = vrot.slane %v2483, 4
      %v2485 = vrot.slane %v2339, 5
      %v2486 = vsel %vm1912, %v2484, %v2485
      %v2487 = vrot.slane %v2460, 5
      %v2488 = vrot.slane %v2487, 4
      %v2489 = vrot.slane %v2340, 5
      %v2490 = vsel %vm1912, %v2488, %v2489
      %v2491 = vrot.slane %v2461, 5
      %v2492 = vrot.slane %v2491, 4
      %v2493 = vrot.slane %v2341, 5
      %v2494 = vsel %vm1912, %v2492, %v2493
      %v2495 = vrot.slane %v2462, 5
      %v2496 = vrot.slane %v2495, 4
      %v2497 = vrot.slane %v2342, 5
      %v2498 = vsel %vm1912, %v2496, %v2497
      %v2499 = vrot.slane %v2463, 5
      %v2500 = vrot.slane %v2499, 4
      %v2501 = vrot.slane %v2343, 5
      %v2502 = vsel %vm1912, %v2500, %v2501
      %v2503 = vrot.slane %v2464, 5
      %v2504 = vrot.slane %v2503, 4
      %v2505 = vrot.slane %v2344, 5
      %v2506 = vsel %vm1912, %v2504, %v2505
      %v2507 = vrot.slane %v2465, 5
      %v2508 = vrot.slane %v2507, 4
      %v2509 = vrot.slane %v2345, 5
      %v2510 = vsel %vm1912, %v2508, %v2509
      %v2511 = vrot.slane %v2466, 5
      %v2512 = vrot.slane %v2511, 4
      %v2513 = vrot.slane %v2346, 5
      %v2514 = vsel %vm1912, %v2512, %v2513
      %v2523 = vunpack.c.l.b16 %v2331
      %v2524 = vunpack.c.l.b16 %v2332
      %v2525 = vunpack.c.l.b16 %v2333
      %v2526 = vunpack.c.l.b16 %v2334
      %v2527 = vunpack.c.l.b16 %v2335
      %v2528 = vunpack.c.l.b16 %v2336
      %v2529 = vunpack.c.l.b16 %v2337
      %v2530 = vunpack.c.l.b16 %v2338
      %v2531 = vpack.c.b16 %v2524, %v2523
      %v2532 = vpack.c.b16 %v2526, %v2525
      %v2533 = vpack.c.b16 %v2528, %v2527
      %v2534 = vpack.c.b16 %v2530, %v2529
      %v2539 = vunpack.c.l.b16 %v2360
      %v2540 = vunpack.c.l.b16 %v2374
      %v2541 = vunpack.c.l.b16 %v2388
      %v2542 = vunpack.c.l.b16 %v2402
      %v2543 = vunpack.c.l.b16 %v2416
      %v2544 = vunpack.c.l.b16 %v2430
      %v2545 = vunpack.c.l.b16 %v2444
      %v2546 = vunpack.c.l.b16 %v2458
      %v2547 = vpack.c.b16 %v2540, %v2539
      %v2548 = vpack.c.b16 %v2542, %v2541
      %v2549 = vpack.c.b16 %v2544, %v2543
      %v2550 = vpack.c.b16 %v2546, %v2545
      %v2555 = vunpack.c.l.b16 %v2486
      %v2556 = vunpack.c.l.b16 %v2490
      %v2557 = vunpack.c.l.b16 %v2494
      %v2558 = vunpack.c.l.b16 %v2498
      %v2559 = vunpack.c.l.b16 %v2502
      %v2560 = vunpack.c.l.b16 %v2506
      %v2561 = vunpack.c.l.b16 %v2510
      %v2562 = vunpack.c.l.b16 %v2514
      %v2563 = vpack.c.b16 %v2556, %v2555
      %v2564 = vpack.c.b16 %v2558, %v2557
      %v2565 = vpack.c.b16 %v2560, %v2559
      %v2566 = vpack.c.b16 %v2562, %v2561
      %s2571 = scalar_lea.vmem %s3, 192
      %v2572 = vld [vmem:[%s2571] sm:$0xf]
      %v2573 = vld [vmem:[%s2571 + $0x4] sm:$0xf]
      %v2574 = vld [vmem:[%s2571 + $0x8] sm:$0xf]
      %v2575 = vld [vmem:[%s2571 + $0xc] sm:$0xf]
      %v2576 = vld [vmem:[%s2571 + $0x10] sm:$0xf]
      %v2577 = vld [vmem:[%s2571 + $0x14] sm:$0xf]
      %v2578 = vld [vmem:[%s2571 + $0x18] sm:$0xf]
      %v2579 = vld [vmem:[%s2571 + $0x1c] sm:$0xf]
      %v2580 = vld [vmem:[%s2571 + $0x20] sm:$0xf]
      %v2581 = vld [vmem:[%s2571 + $0x24] sm:$0xf]
      %v2582 = vld [vmem:[%s2571 + $0x28] sm:$0xf]
      %v2583 = vld [vmem:[%s2571 + $0x2c] sm:$0xf]
      %v2584 = vld [vmem:[%s2571 + $0x30] sm:$0xf]
      %v2585 = vld [vmem:[%s2571 + $0x34] sm:$0xf]
      %v2586 = vld [vmem:[%s2571 + $0x38] sm:$0xf]
      %v2587 = vld [vmem:[%s2571 + $0x3c] sm:$0xf]
      %v2588 = vld [vmem:[%s2571 + $0x40] sm:$0xf]
      %v2589 = vld [vmem:[%s2571 + $0x44] sm:$0xf]
      %v2590 = vld [vmem:[%s2571 + $0x48] sm:$0xf]
      %v2591 = vld [vmem:[%s2571 + $0x4c] sm:$0xf]
      %v2592 = vld [vmem:[%s2571 + $0x50] sm:$0xf]
      %v2593 = vld [vmem:[%s2571 + $0x54] sm:$0xf]
      %v2594 = vld [vmem:[%s2571 + $0x58] sm:$0xf]
      %v2595 = vld [vmem:[%s2571 + $0x5c] sm:$0xf]
      %v2596 = vld [vmem:[%s2571 + $0x60] sm:$0xf]
      %v2597 = vld [vmem:[%s2571 + $0x64] sm:$0xf]
      %v2598 = vld [vmem:[%s2571 + $0x68] sm:$0xf]
      %v2599 = vld [vmem:[%s2571 + $0x6c] sm:$0xf]
      %v2600 = vld [vmem:[%s2571 + $0x70] sm:$0xf]
      %v2601 = vld [vmem:[%s2571 + $0x74] sm:$0xf]
      %v2602 = vld [vmem:[%s2571 + $0x78] sm:$0xf]
      %v2603 = vld [vmem:[%s2571 + $0x7c] sm:$0xf]
      %v2604 = vld [vmem:[%s2571 + $0x80] sm:$0xf]
      %v2605 = vld [vmem:[%s2571 + $0x84] sm:$0xf]
      %v2606 = vld [vmem:[%s2571 + $0x88] sm:$0xf]
      %v2607 = vld [vmem:[%s2571 + $0x8c] sm:$0xf]
      %v2608 = vld [vmem:[%s2571 + $0x90] sm:$0xf]
      %v2609 = vld [vmem:[%s2571 + $0x94] sm:$0xf]
      %v2610 = vld [vmem:[%s2571 + $0x98] sm:$0xf]
      %v2611 = vld [vmem:[%s2571 + $0x9c] sm:$0xf]
      %v2612 = vld [vmem:[%s2571 + $0xa0] sm:$0xf]
      %v2613 = vld [vmem:[%s2571 + $0xa4] sm:$0xf]
      %v2614 = vld [vmem:[%s2571 + $0xa8] sm:$0xf]
      %v2615 = vld [vmem:[%s2571 + $0xac] sm:$0xf]
      %v2616 = vld [vmem:[%s2571 + $0xb0] sm:$0xf]
      %v2617 = vld [vmem:[%s2571 + $0xb4] sm:$0xf]
      %v2618 = vld [vmem:[%s2571 + $0xb8] sm:$0xf]
      %v2619 = vld [vmem:[%s2571 + $0xbc] sm:$0xf]
      %v2668 = vunpack.c.l.b16 %v2572
      %v2669 = vunpack.c.l.b16 %v2573
      %v2670 = vunpack.c.l.b16 %v2574
      %v2671 = vunpack.c.l.b16 %v2575
      %v2672 = vunpack.c.l.b16 %v2576
      %v2673 = vunpack.c.l.b16 %v2577
      %v2674 = vunpack.c.l.b16 %v2578
      %v2675 = vunpack.c.l.b16 %v2579
      %v2676 = vunpack.c.l.b16 %v2580
      %v2677 = vunpack.c.l.b16 %v2581
      %v2678 = vunpack.c.l.b16 %v2582
      %v2679 = vunpack.c.l.b16 %v2583
      %v2680 = vunpack.c.l.b16 %v2584
      %v2681 = vunpack.c.l.b16 %v2585
      %v2682 = vunpack.c.l.b16 %v2586
      %v2683 = vunpack.c.l.b16 %v2587
      %v2684 = vunpack.c.l.b16 %v2588
      %v2685 = vunpack.c.l.b16 %v2589
      %v2686 = vunpack.c.l.b16 %v2590
      %v2687 = vunpack.c.l.b16 %v2591
      %v2688 = vunpack.c.l.b16 %v2592
      %v2689 = vunpack.c.l.b16 %v2593
      %v2690 = vunpack.c.l.b16 %v2594
      %v2691 = vunpack.c.l.b16 %v2595
      %v2692 = vunpack.c.l.b16 %v2596
      %v2693 = vunpack.c.l.b16 %v2597
      %v2694 = vunpack.c.l.b16 %v2598
      %v2695 = vunpack.c.l.b16 %v2599
      %v2696 = vunpack.c.l.b16 %v2600
      %v2697 = vunpack.c.l.b16 %v2601
      %v2698 = vunpack.c.l.b16 %v2602
      %v2699 = vunpack.c.l.b16 %v2603
      %v2700 = vunpack.c.l.b16 %v2604
      %v2701 = vunpack.c.l.b16 %v2605
      %v2702 = vunpack.c.l.b16 %v2606
      %v2703 = vunpack.c.l.b16 %v2607
      %v2704 = vunpack.c.l.b16 %v2608
      %v2705 = vunpack.c.l.b16 %v2609
      %v2706 = vunpack.c.l.b16 %v2610
      %v2707 = vunpack.c.l.b16 %v2611
      %v2708 = vunpack.c.l.b16 %v2612
      %v2709 = vunpack.c.l.b16 %v2613
      %v2710 = vunpack.c.l.b16 %v2614
      %v2711 = vunpack.c.l.b16 %v2615
      %v2712 = vunpack.c.l.b16 %v2616
      %v2713 = vunpack.c.l.b16 %v2617
      %v2714 = vunpack.c.l.b16 %v2618
      %v2715 = vunpack.c.l.b16 %v2619
      %v2716 = vpack.c.b16 %v2669, %v2668
      %v2717 = vpack.c.b16 %v2671, %v2670
      %v2718 = vpack.c.b16 %v2673, %v2672
      %v2719 = vpack.c.b16 %v2675, %v2674
      %v2720 = vpack.c.b16 %v2677, %v2676
      %v2721 = vpack.c.b16 %v2679, %v2678
      %v2722 = vpack.c.b16 %v2681, %v2680
      %v2723 = vpack.c.b16 %v2683, %v2682
      %v2724 = vpack.c.b16 %v2685, %v2684
      %v2725 = vpack.c.b16 %v2687, %v2686
      %v2726 = vpack.c.b16 %v2689, %v2688
      %v2727 = vpack.c.b16 %v2691, %v2690
      %v2728 = vpack.c.b16 %v2693, %v2692
      %v2729 = vpack.c.b16 %v2695, %v2694
      %v2730 = vpack.c.b16 %v2697, %v2696
      %v2731 = vpack.c.b16 %v2699, %v2698
      %v2732 = vpack.c.b16 %v2701, %v2700
      %v2733 = vpack.c.b16 %v2703, %v2702
      %v2734 = vpack.c.b16 %v2705, %v2704
      %v2735 = vpack.c.b16 %v2707, %v2706
      %v2736 = vpack.c.b16 %v2709, %v2708
      %v2737 = vpack.c.b16 %v2711, %v2710
      %v2738 = vpack.c.b16 %v2713, %v2712
      %v2739 = vpack.c.b16 %v2715, %v2714
      %2764 = vmatprep.subr.bf16.mxu0 0
      %2765 = vmatpush1.bf16.msra.mxu0 %v2716
      %2766 = vmatprep.subr.bf16.mxu0 0
      %2767 = vmatpush1.bf16.msra.mxu0 %v2717
      %2768 = vmatprep.subr.bf16.mxu0 0
      %2769 = vmatpush1.bf16.msra.mxu0 %v2718
      %2770 = vmatprep.subr.bf16.mxu0 0
      %2771 = vmatpush1.bf16.msra.mxu0 %v2719
      %2772 = vmatprep.subr.bf16.mxu0 0
      %2773 = vmatpush1.bf16.msra.mxu0 %v2720
      %2774 = vmatprep.subr.bf16.mxu0 0
      %2775 = vmatpush1.bf16.msra.mxu0 %v2721
      %2776 = vmatprep.subr.bf16.mxu0 0
      %2777 = vmatpush1.bf16.msra.mxu0 %v2722
      %2778 = vmatprep.subr.bf16.mxu0 0
      %2779 = vmatpush1.bf16.msra.mxu0 %v2723
      %2780 = vmatprep.subr.bf16.mxu0 0
      %2781 = vmatpush1.bf16.msra.mxu0 %v2724
      %2782 = vmatprep.subr.bf16.mxu0 0
      %2783 = vmatpush1.bf16.msra.mxu0 %v2725
      %2784 = vmatprep.subr.bf16.mxu0 0
      %2785 = vmatpush1.bf16.msra.mxu0 %v2726
      %2786 = vmatprep.subr.bf16.mxu0 0
      %2787 = vmatpush1.bf16.msra.mxu0 %v2727
      %2788 = vmatprep.subr.bf16.mxu0 0
      %2789 = vmatpush1.bf16.msra.mxu0 %v2728
      %2790 = vmatprep.subr.bf16.mxu0 0
      %2791 = vmatpush1.bf16.msra.mxu0 %v2729
      %2792 = vmatprep.subr.bf16.mxu0 0
      %2793 = vmatpush1.bf16.msra.mxu0 %v2730
      %2794 = vmatprep.subr.bf16.mxu0 0
      %2795 = vmatpush1.bf16.msra.mxu0 %v2731
      %2796 = vmatprep.mubr.bf16.mxu0 %v2547
      %2797 = vmatmul.mubr.bf16.gmra.mrb[0].mxu0 %v2531
      %v2798 = vpop.f32.mrb[0].mxu0
      %v2799 = vadd.f32 0.0, %v2798
      %v2800 = vpop.f32.mrb[0].mxu0
      %v2801 = vpop.f32.mrb[0].mxu0
      %v2802 = vadd.f32 0.0, %v2801
      %v2803 = vpop.f32.mrb[0].mxu0
      %2804 = vmatprep.mubr.bf16.mxu0 %v2548
      %2805 = vmatmul.mubr.bf16.gmra.mrb[0].mxu0 %v2532
      %v2806 = vpop.f32.mrb[0].mxu0
      %v2807 = vadd.f32 0.0, %v2806
      %v2808 = vpop.f32.mrb[0].mxu0
      %v2809 = vpop.f32.mrb[0].mxu0
      %v2810 = vadd.f32 0.0, %v2809
      %v2811 = vpop.f32.mrb[0].mxu0
      %2812 = vmatprep.mubr.bf16.mxu0 %v2549
      %2813 = vmatmul.mubr.bf16.gmra.mrb[0].mxu0 %v2533
      %v2814 = vpop.f32.mrb[0].mxu0
      %v2815 = vadd.f32 0.0, %v2814
      %v2816 = vpop.f32.mrb[0].mxu0
      %v2817 = vpop.f32.mrb[0].mxu0
      %v2818 = vadd.f32 0.0, %v2817
      %v2819 = vpop.f32.mrb[0].mxu0
      %2820 = vmatprep.mubr.bf16.mxu0 %v2550
      %2821 = vmatmul.mubr.bf16.gmra.mrb[0].mxu0 %v2534
      %v2822 = vpop.f32.mrb[0].mxu0
      %v2823 = vadd.f32 0.0, %v2822
      %v2824 = vpop.f32.mrb[0].mxu0
      %v2825 = vpop.f32.mrb[0].mxu0
      %v2826 = vadd.f32 0.0, %v2825
      %v2827 = vpop.f32.mrb[0].mxu0
      %2828 = vdwg.mxu0
      %2829 = vmatprep.subr.bf16.mxu0 0
      %2830 = vmatpush1.bf16.msra.mxu0 %v2732
      %2831 = vmatprep.subr.bf16.mxu0 0
      %2832 = vmatpush1.bf16.msra.mxu0 %v2733
      %2833 = vmatprep.subr.bf16.mxu0 0
      %2834 = vmatpush1.bf16.msra.mxu0 %v2734
      %2835 = vmatprep.subr.bf16.mxu0 0
      %2836 = vmatpush1.bf16.msra.mxu0 %v2735
      %2837 = vmatprep.subr.bf16.mxu0 0
      %2838 = vmatpush1.bf16.msra.mxu0 %v2736
      %2839 = vmatprep.subr.bf16.mxu0 0
      %2840 = vmatpush1.bf16.msra.mxu0 %v2737
      %2841 = vmatprep.subr.bf16.mxu0 0
      %2842 = vmatpush1.bf16.msra.mxu0 %v2738
      %2843 = vmatprep.subr.bf16.mxu0 0
      %2844 = vmatpush1.bf16.msra.mxu0 %v2739
      %2845 = vmatprep.subr.bf16.mxu0 0
      %2846 = vmatpush1.bf16.msra.mxu0 0
      %2847 = vmatprep.subr.bf16.mxu0 0
      %2848 = vmatpush1.bf16.msra.mxu0 0
      %2849 = vmatprep.subr.bf16.mxu0 0
      %2850 = vmatpush1.bf16.msra.mxu0 0
      %2851 = vmatprep.subr.bf16.mxu0 0
      %2852 = vmatpush1.bf16.msra.mxu0 0
      %2853 = vmatprep.subr.bf16.mxu0 0
      %2854 = vmatpush1.bf16.msra.mxu0 0
      %2855 = vmatprep.subr.bf16.mxu0 0
      %2856 = vmatpush1.bf16.msra.mxu0 0
      %2857 = vmatprep.subr.bf16.mxu0 0
      %2858 = vmatpush1.bf16.msra.mxu0 0
      %2859 = vmatprep.subr.bf16.mxu0 0
      %2860 = vmatpush1.bf16.msra.mxu0 0
      %2861 = vmatprep.mubr.bf16.mxu0 0
      %2862 = vmatmul.mubr.bf16.gmra.mrb[0].mxu0 %v2563
      %v2863 = vpop.f32.mrb[0].mxu0
      %v2864 = vadd.f32 %v2799, %v2863
      %v2865 = vpop.f32.mrb[0].mxu0
      %v2866 = vpop.f32.mrb[0].mxu0
      %v2867 = vadd.f32 %v2802, %v2866
      %v2868 = vpop.f32.mrb[0].mxu0
      %2869 = vmatprep.mubr.bf16.mxu0 0
      %2870 = vmatmul.mubr.bf16.gmra.mrb[0].mxu0 %v2564
      %v2871 = vpop.f32.mrb[0].mxu0
      %v2872 = vadd.f32 %v2807, %v2871
      %v2873 = vpop.f32.mrb[0].mxu0
      %v2874 = vpop.f32.mrb[0].mxu0
      %v2875 = vadd.f32 %v2810, %v2874
      %v2876 = vpop.f32.mrb[0].mxu0
      %2877 = vmatprep.mubr.bf16.mxu0 0
      %2878 = vmatmul.mubr.bf16.gmra.mrb[0].mxu0 %v2565
      %v2879 = vpop.f32.mrb[0].mxu0
      %v2880 = vadd.f32 %v2815, %v2879
      %v2881 = vpop.f32.mrb[0].mxu0
      %v2882 = vpop.f32.mrb[0].mxu0
      %v2883 = vadd.f32 %v2818, %v2882
      %v2884 = vpop.f32.mrb[0].mxu0
      %2885 = vmatprep.mubr.bf16.mxu0 0
      %2886 = vmatmul.mubr.bf16.gmra.mrb[0].mxu0 %v2566
      %v2887 = vpop.f32.mrb[0].mxu0
      %v2888 = vadd.f32 %v2823, %v2887
      %v2889 = vpop.f32.mrb[0].mxu0
      %v2890 = vpop.f32.mrb[0].mxu0
      %v2891 = vadd.f32 %v2826, %v2890
      %v2892 = vpop.f32.mrb[0].mxu0
      %2893 = vdwg.mxu0
      %v2894 = vadd.f32 %v2323, %v2864
      %v2895 = vadd.f32 %v2324, %v2867
      %v2896 = vadd.f32 %v2325, %v2872
      %v2897 = vadd.f32 %v2326, %v2875
      %v2898 = vadd.f32 %v2327, %v2880
      %v2899 = vadd.f32 %v2328, %v2883
      %v2900 = vadd.f32 %v2329, %v2888
      %v2901 = vadd.f32 %v2330, %v2891
      %s2902 = scalar_lea.vmem [#allocation2], 16
      %v2903 = vld [vmem:[%s2902] sm:$0xf]
      %v2904 = vld [vmem:[%s2902 + $0x8] sm:$0xf]
      %v2905 = vld [vmem:[%s2902 + $0x10] sm:$0xf]
      %v2906 = vld [vmem:[%s2902 + $0x18] sm:$0xf]
      %v2907 = vld [vmem:[%s2902 + $0x20] sm:$0xf]
      %v2908 = vld [vmem:[%s2902 + $0x28] sm:$0xf]
      %v2909 = vld [vmem:[%s2902 + $0x30] sm:$0xf]
      %v2910 = vld [vmem:[%s2902 + $0x38] sm:$0xf]
      %v2911 = vld [vmem:[%s2902 + $0x4] sm:$0x1]
      %v2912 = vld [vmem:[%s2902 + $0xc] sm:$0x1]
      %v2913 = vld [vmem:[%s2902 + $0x14] sm:$0x1]
      %v2914 = vld [vmem:[%s2902 + $0x1c] sm:$0x1]
      %v2915 = vld [vmem:[%s2902 + $0x24] sm:$0x1]
      %v2916 = vld [vmem:[%s2902 + $0x2c] sm:$0x1]
      %v2917 = vld [vmem:[%s2902 + $0x34] sm:$0x1]
      %v2918 = vld [vmem:[%s2902 + $0x3c] sm:$0x1]
      %v2920 = vshrl.u32 %v2903, 16
      %v2922 = vrot.slane %v2920, 4
      %v2923 = vshll.u32 %v2903, 16
      %v2925 = vrot.slane %v2923, 5
      %v2926 = vor.u32 %v2922, %v2925
      %v2927 = vrot.slane %v2926, 4
      %v2929 = vshll.u32 %v2911, 16
      %v2931 = vrot.slane %v2929, 5
      %v2932 = vsel %vm292, %v2927, %v2931
      %v2934 = vshrl.u32 %v2904, 16
      %v2936 = vrot.slane %v2934, 4
      %v2937 = vshll.u32 %v2904, 16
      %v2939 = vrot.slane %v2937, 5
      %v2940 = vor.u32 %v2936, %v2939
      %v2941 = vrot.slane %v2940, 4
      %v2943 = vshll.u32 %v2912, 16
      %v2945 = vrot.slane %v2943, 5
      %v2946 = vsel %vm292, %v2941, %v2945
      %v2948 = vshrl.u32 %v2905, 16
      %v2950 = vrot.slane %v2948, 4
      %v2951 = vshll.u32 %v2905, 16
      %v2953 = vrot.slane %v2951, 5
      %v2954 = vor.u32 %v2950, %v2953
      %v2955 = vrot.slane %v2954, 4
      %v2957 = vshll.u32 %v2913, 16
      %v2959 = vrot.slane %v2957, 5
      %v2960 = vsel %vm292, %v2955, %v2959
      %v2962 = vshrl.u32 %v2906, 16
      %v2964 = vrot.slane %v2962, 4
      %v2965 = vshll.u32 %v2906, 16
      %v2967 = vrot.slane %v2965, 5
      %v2968 = vor.u32 %v2964, %v2967
      %v2969 = vrot.slane %v2968, 4
      %v2971 = vshll.u32 %v2914, 16
      %v2973 = vrot.slane %v2971, 5
      %v2974 = vsel %vm292, %v2969, %v2973
      %v2976 = vshrl.u32 %v2907, 16
      %v2978 = vrot.slane %v2976, 4
      %v2979 = vshll.u32 %v2907, 16
      %v2981 = vrot.slane %v2979, 5
      %v2982 = vor.u32 %v2978, %v2981
      %v2983 = vrot.slane %v2982, 4
      %v2985 = vshll.u32 %v2915, 16
      %v2987 = vrot.slane %v2985, 5
      %v2988 = vsel %vm292, %v2983, %v2987
      %v2990 = vshrl.u32 %v2908, 16
      %v2992 = vrot.slane %v2990, 4
      %v2993 = vshll.u32 %v2908, 16
      %v2995 = vrot.slane %v2993, 5
      %v2996 = vor.u32 %v2992, %v2995
      %v2997 = vrot.slane %v2996, 4
      %v2999 = vshll.u32 %v2916, 16
      %v3001 = vrot.slane %v2999, 5
      %v3002 = vsel %vm292, %v2997, %v3001
      %v3004 = vshrl.u32 %v2909, 16
      %v3006 = vrot.slane %v3004, 4
      %v3007 = vshll.u32 %v2909, 16
      %v3009 = vrot.slane %v3007, 5
      %v3010 = vor.u32 %v3006, %v3009
      %v3011 = vrot.slane %v3010, 4
      %v3013 = vshll.u32 %v2917, 16
      %v3015 = vrot.slane %v3013, 5
      %v3016 = vsel %vm292, %v3011, %v3015
      %v3018 = vshrl.u32 %v2910, 16
      %v3020 = vrot.slane %v3018, 4
      %v3021 = vshll.u32 %v2910, 16
      %v3023 = vrot.slane %v3021, 5
      %v3024 = vor.u32 %v3020, %v3023
      %v3025 = vrot.slane %v3024, 4
      %v3027 = vshll.u32 %v2918, 16
      %v3029 = vrot.slane %v3027, 5
      %v3030 = vsel %vm292, %v3025, %v3029
      %v3031 = vld [vmem:[%s2902] sm:$0xe]
      %v3032 = vld [vmem:[%s2902 + $0x8] sm:$0xe]
      %v3033 = vld [vmem:[%s2902 + $0x10] sm:$0xe]
      %v3034 = vld [vmem:[%s2902 + $0x18] sm:$0xe]
      %v3035 = vld [vmem:[%s2902 + $0x20] sm:$0xe]
      %v3036 = vld [vmem:[%s2902 + $0x28] sm:$0xe]
      %v3037 = vld [vmem:[%s2902 + $0x30] sm:$0xe]
      %v3038 = vld [vmem:[%s2902 + $0x38] sm:$0xe]
      %v3055 = vrot.slane %v3031, 5
      %v3056 = vrot.slane %v3055, 4
      %v3057 = vrot.slane %v2911, 5
      %v3058 = vsel %vm1912, %v3056, %v3057
      %v3059 = vrot.slane %v3032, 5
      %v3060 = vrot.slane %v3059, 4
      %v3061 = vrot.slane %v2912, 5
      %v3062 = vsel %vm1912, %v3060, %v3061
      %v3063 = vrot.slane %v3033, 5
      %v3064 = vrot.slane %v3063, 4
      %v3065 = vrot.slane %v2913, 5
      %v3066 = vsel %vm1912, %v3064, %v3065
      %v3067 = vrot.slane %v3034, 5
      %v3068 = vrot.slane %v3067, 4
      %v3069 = vrot.slane %v2914, 5
      %v3070 = vsel %vm1912, %v3068, %v3069
      %v3071 = vrot.slane %v3035, 5
      %v3072 = vrot.slane %v3071, 4
      %v3073 = vrot.slane %v2915, 5
      %v3074 = vsel %vm1912, %v3072, %v3073
      %v3075 = vrot.slane %v3036, 5
      %v3076 = vrot.slane %v3075, 4
      %v3077 = vrot.slane %v2916, 5
      %v3078 = vsel %vm1912, %v3076, %v3077
      %v3079 = vrot.slane %v3037, 5
      %v3080 = vrot.slane %v3079, 4
      %v3081 = vrot.slane %v2917, 5
      %v3082 = vsel %vm1912, %v3080, %v3081
      %v3083 = vrot.slane %v3038, 5
      %v3084 = vrot.slane %v3083, 4
      %v3085 = vrot.slane %v2918, 5
      %v3086 = vsel %vm1912, %v3084, %v3085
      %v3095 = vunpack.c.l.b16 %v2903
      %v3096 = vunpack.c.l.b16 %v2904
      %v3097 = vunpack.c.l.b16 %v2905
      %v3098 = vunpack.c.l.b16 %v2906
      %v3099 = vunpack.c.l.b16 %v2907
      %v3100 = vunpack.c.l.b16 %v2908
      %v3101 = vunpack.c.l.b16 %v2909
      %v3102 = vunpack.c.l.b16 %v2910
      %v3103 = vpack.c.b16 %v3096, %v3095
      %v3104 = vpack.c.b16 %v3098, %v3097
      %v3105 = vpack.c.b16 %v3100, %v3099
      %v3106 = vpack.c.b16 %v3102, %v3101
      %v3111 = vunpack.c.l.b16 %v2932
      %v3112 = vunpack.c.l.b16 %v2946
      %v3113 = vunpack.c.l.b16 %v2960
      %v3114 = vunpack.c.l.b16 %v2974
      %v3115 = vunpack.c.l.b16 %v2988
      %v3116 = vunpack.c.l.b16 %v3002
      %v3117 = vunpack.c.l.b16 %v3016
      %v3118 = vunpack.c.l.b16 %v3030
      %v3119 = vpack.c.b16 %v3112, %v3111
      %v3120 = vpack.c.b16 %v3114, %v3113
      %v3121 = vpack.c.b16 %v3116, %v3115
      %v3122 = vpack.c.b16 %v3118, %v3117
      %v3127 = vunpack.c.l.b16 %v3058
      %v3128 = vunpack.c.l.b16 %v3062
      %v3129 = vunpack.c.l.b16 %v3066
      %v3130 = vunpack.c.l.b16 %v3070
      %v3131 = vunpack.c.l.b16 %v3074
      %v3132 = vunpack.c.l.b16 %v3078
      %v3133 = vunpack.c.l.b16 %v3082
      %v3134 = vunpack.c.l.b16 %v3086
      %v3135 = vpack.c.b16 %v3128, %v3127
      %v3136 = vpack.c.b16 %v3130, %v3129
      %v3137 = vpack.c.b16 %v3132, %v3131
      %v3138 = vpack.c.b16 %v3134, %v3133
      %s3143 = scalar_lea.vmem %s3, 384
      %v3144 = vld [vmem:[%s3143] sm:$0xf]
      %v3145 = vld [vmem:[%s3143 + $0x4] sm:$0xf]
      %v3146 = vld [vmem:[%s3143 + $0x8] sm:$0xf]
      %v3147 = vld [vmem:[%s3143 + $0xc] sm:$0xf]
      %v3148 = vld [vmem:[%s3143 + $0x10] sm:$0xf]
      %v3149 = vld [vmem:[%s3143 + $0x14] sm:$0xf]
      %v3150 = vld [vmem:[%s3143 + $0x18] sm:$0xf]
      %v3151 = vld [vmem:[%s3143 + $0x1c] sm:$0xf]
      %v3152 = vld [vmem:[%s3143 + $0x20] sm:$0xf]
      %v3153 = vld [vmem:[%s3143 + $0x24] sm:$0xf]
      %v3154 = vld [vmem:[%s3143 + $0x28] sm:$0xf]
      %v3155 = vld [vmem:[%s3143 + $0x2c] sm:$0xf]
      %v3156 = vld [vmem:[%s3143 + $0x30] sm:$0xf]
      %v3157 = vld [vmem:[%s3143 + $0x34] sm:$0xf]
      %v3158 = vld [vmem:[%s3143 + $0x38] sm:$0xf]
      %v3159 = vld [vmem:[%s3143 + $0x3c] sm:$0xf]
      %v3160 = vld [vmem:[%s3143 + $0x40] sm:$0xf]
      %v3161 = vld [vmem:[%s3143 + $0x44] sm:$0xf]
      %v3162 = vld [vmem:[%s3143 + $0x48] sm:$0xf]
      %v3163 = vld [vmem:[%s3143 + $0x4c] sm:$0xf]
      %v3164 = vld [vmem:[%s3143 + $0x50] sm:$0xf]
      %v3165 = vld [vmem:[%s3143 + $0x54] sm:$0xf]
      %v3166 = vld [vmem:[%s3143 + $0x58] sm:$0xf]
      %v3167 = vld [vmem:[%s3143 + $0x5c] sm:$0xf]
      %v3168 = vld [vmem:[%s3143 + $0x60] sm:$0xf]
      %v3169 = vld [vmem:[%s3143 + $0x64] sm:$0xf]
      %v3170 = vld [vmem:[%s3143 + $0x68] sm:$0xf]
      %v3171 = vld [vmem:[%s3143 + $0x6c] sm:$0xf]
      %v3172 = vld [vmem:[%s3143 + $0x70] sm:$0xf]
      %v3173 = vld [vmem:[%s3143 + $0x74] sm:$0xf]
      %v3174 = vld [vmem:[%s3143 + $0x78] sm:$0xf]
      %v3175 = vld [vmem:[%s3143 + $0x7c] sm:$0xf]
      %v3176 = vld [vmem:[%s3143 + $0x80] sm:$0xf]
      %v3177 = vld [vmem:[%s3143 + $0x84] sm:$0xf]
      %v3178 = vld [vmem:[%s3143 + $0x88] sm:$0xf]
      %v3179 = vld [vmem:[%s3143 + $0x8c] sm:$0xf]
      %v3180 = vld [vmem:[%s3143 + $0x90] sm:$0xf]
      %v3181 = vld [vmem:[%s3143 + $0x94] sm:$0xf]
      %v3182 = vld [vmem:[%s3143 + $0x98] sm:$0xf]
      %v3183 = vld [vmem:[%s3143 + $0x9c] sm:$0xf]
      %v3184 = vld [vmem:[%s3143 + $0xa0] sm:$0xf]
      %v3185 = vld [vmem:[%s3143 + $0xa4] sm:$0xf]
      %v3186 = vld [vmem:[%s3143 + $0xa8] sm:$0xf]
      %v3187 = vld [vmem:[%s3143 + $0xac] sm:$0xf]
      %v3188 = vld [vmem:[%s3143 + $0xb0] sm:$0xf]
      %v3189 = vld [vmem:[%s3143 + $0xb4] sm:$0xf]
      %v3190 = vld [vmem:[%s3143 + $0xb8] sm:$0xf]
      %v3191 = vld [vmem:[%s3143 + $0xbc] sm:$0xf]
      %v3240 = vunpack.c.l.b16 %v3144
      %v3241 = vunpack.c.l.b16 %v3145
      %v3242 = vunpack.c.l.b16 %v3146
      %v3243 = vunpack.c.l.b16 %v3147
      %v3244 = vunpack.c.l.b16 %v3148
      %v3245 = vunpack.c.l.b16 %v3149
      %v3246 = vunpack.c.l.b16 %v3150
      %v3247 = vunpack.c.l.b16 %v3151
      %v3248 = vunpack.c.l.b16 %v3152
      %v3249 = vunpack.c.l.b16 %v3153
      %v3250 = vunpack.c.l.b16 %v3154
      %v3251 = vunpack.c.l.b16 %v3155
      %v3252 = vunpack.c.l.b16 %v3156
      %v3253 = vunpack.c.l.b16 %v3157
      %v3254 = vunpack.c.l.b16 %v3158
      %v3255 = vunpack.c.l.b16 %v3159
      %v3256 = vunpack.c.l.b16 %v3160
      %v3257 = vunpack.c.l.b16 %v3161
      %v3258 = vunpack.c.l.b16 %v3162
      %v3259 = vunpack.c.l.b16 %v3163
      %v3260 = vunpack.c.l.b16 %v3164
      %v3261 = vunpack.c.l.b16 %v3165
      %v3262 = vunpack.c.l.b16 %v3166
      %v3263 = vunpack.c.l.b16 %v3167
      %v3264 = vunpack.c.l.b16 %v3168
      %v3265 = vunpack.c.l.b16 %v3169
      %v3266 = vunpack.c.l.b16 %v3170
      %v3267 = vunpack.c.l.b16 %v3171
      %v3268 = vunpack.c.l.b16 %v3172
      %v3269 = vunpack.c.l.b16 %v3173
      %v3270 = vunpack.c.l.b16 %v3174
      %v3271 = vunpack.c.l.b16 %v3175
      %v3272 = vunpack.c.l.b16 %v3176
      %v3273 = vunpack.c.l.b16 %v3177
      %v3274 = vunpack.c.l.b16 %v3178
      %v3275 = vunpack.c.l.b16 %v3179
      %v3276 = vunpack.c.l.b16 %v3180
      %v3277 = vunpack.c.l.b16 %v3181
      %v3278 = vunpack.c.l.b16 %v3182
      %v3279 = vunpack.c.l.b16 %v3183
      %v3280 = vunpack.c.l.b16 %v3184
      %v3281 = vunpack.c.l.b16 %v3185
      %v3282 = vunpack.c.l.b16 %v3186
      %v3283 = vunpack.c.l.b16 %v3187
      %v3284 = vunpack.c.l.b16 %v3188
      %v3285 = vunpack.c.l.b16 %v3189
      %v3286 = vunpack.c.l.b16 %v3190
      %v3287 = vunpack.c.l.b16 %v3191
      %v3288 = vpack.c.b16 %v3241, %v3240
      %v3289 = vpack.c.b16 %v3243, %v3242
      %v3290 = vpack.c.b16 %v3245, %v3244
      %v3291 = vpack.c.b16 %v3247, %v3246
      %v3292 = vpack.c.b16 %v3249, %v3248
      %v3293 = vpack.c.b16 %v3251, %v3250
      %v3294 = vpack.c.b16 %v3253, %v3252
      %v3295 = vpack.c.b16 %v3255, %v3254
      %v3296 = vpack.c.b16 %v3257, %v3256
      %v3297 = vpack.c.b16 %v3259, %v3258
      %v3298 = vpack.c.b16 %v3261, %v3260
      %v3299 = vpack.c.b16 %v3263, %v3262
      %v3300 = vpack.c.b16 %v3265, %v3264
      %v3301 = vpack.c.b16 %v3267, %v3266
      %v3302 = vpack.c.b16 %v3269, %v3268
      %v3303 = vpack.c.b16 %v3271, %v3270
      %v3304 = vpack.c.b16 %v3273, %v3272
      %v3305 = vpack.c.b16 %v3275, %v3274
      %v3306 = vpack.c.b16 %v3277, %v3276
      %v3307 = vpack.c.b16 %v3279, %v3278
      %v3308 = vpack.c.b16 %v3281, %v3280
      %v3309 = vpack.c.b16 %v3283, %v3282
      %v3310 = vpack.c.b16 %v3285, %v3284
      %v3311 = vpack.c.b16 %v3287, %v3286
      %3336 = vmatprep.subr.bf16.mxu0 0
      %3337 = vmatpush1.bf16.msra.mxu0 %v3288
      %3338 = vmatprep.subr.bf16.mxu0 0
      %3339 = vmatpush1.bf16.msra.mxu0 %v3289
      %3340 = vmatprep.subr.bf16.mxu0 0
      %3341 = vmatpush1.bf16.msra.mxu0 %v3290
      %3342 = vmatprep.subr.bf16.mxu0 0
      %3343 = vmatpush1.bf16.msra.mxu0 %v3291
      %3344 = vmatprep.subr.bf16.mxu0 0
      %3345 = vmatpush1.bf16.msra.mxu0 %v3292
      %3346 = vmatprep.subr.bf16.mxu0 0
      %3347 = vmatpush1.bf16.msra.mxu0 %v3293
      %3348 = vmatprep.subr.bf16.mxu0 0
      %3349 = vmatpush1.bf16.msra.mxu0 %v3294
      %3350 = vmatprep.subr.bf16.mxu0 0
      %3351 = vmatpush1.bf16.msra.mxu0 %v3295
      %3352 = vmatprep.subr.bf16.mxu0 0
      %3353 = vmatpush1.bf16.msra.mxu0 %v3296
      %3354 = vmatprep.subr.bf16.mxu0 0
      %3355 = vmatpush1.bf16.msra.mxu0 %v3297
      %3356 = vmatprep.subr.bf16.mxu0 0
      %3357 = vmatpush1.bf16.msra.mxu0 %v3298
      %3358 = vmatprep.subr.bf16.mxu0 0
      %3359 = vmatpush1.bf16.msra.mxu0 %v3299
      %3360 = vmatprep.subr.bf16.mxu0 0
      %3361 = vmatpush1.bf16.msra.mxu0 %v3300
      %3362 = vmatprep.subr.bf16.mxu0 0
      %3363 = vmatpush1.bf16.msra.mxu0 %v3301
      %3364 = vmatprep.subr.bf16.mxu0 0
      %3365 = vmatpush1.bf16.msra.mxu0 %v3302
      %3366 = vmatprep.subr.bf16.mxu0 0
      %3367 = vmatpush1.bf16.msra.mxu0 %v3303
      %3368 = vmatprep.mubr.bf16.mxu0 %v3119
      %3369 = vmatmul.mubr.bf16.gmra.mrb[0].mxu0 %v3103
      %v3370 = vpop.f32.mrb[0].mxu0
      %v3371 = vadd.f32 0.0, %v3370
      %v3372 = vpop.f32.mrb[0].mxu0
      %v3373 = vpop.f32.mrb[0].mxu0
      %v3374 = vadd.f32 0.0, %v3373
      %v3375 = vpop.f32.mrb[0].mxu0
      %3376 = vmatprep.mubr.bf16.mxu0 %v3120
      %3377 = vmatmul.mubr.bf16.gmra.mrb[0].mxu0 %v3104
      %v3378 = vpop.f32.mrb[0].mxu0
      %v3379 = vadd.f32 0.0, %v3378
      %v3380 = vpop.f32.mrb[0].mxu0
      %v3381 = vpop.f32.mrb[0].mxu0
      %v3382 = vadd.f32 0.0, %v3381
      %v3383 = vpop.f32.mrb[0].mxu0
      %3384 = vmatprep.mubr.bf16.mxu0 %v3121
      %3385 = vmatmul.mubr.bf16.gmra.mrb[0].mxu0 %v3105
      %v3386 = vpop.f32.mrb[0].mxu0
      %v3387 = vadd.f32 0.0, %v3386
      %v3388 = vpop.f32.mrb[0].mxu0
      %v3389 = vpop.f32.mrb[0].mxu0
      %v3390 = vadd.f32 0.0, %v3389
      %v3391 = vpop.f32.mrb[0].mxu0
      %3392 = vmatprep.mubr.bf16.mxu0 %v3122
      %3393 = vmatmul.mubr.bf16.gmra.mrb[0].mxu0 %v3106
      %v3394 = vpop.f32.mrb[0].mxu0
      %v3395 = vadd.f32 0.0, %v3394
      %v3396 = vpop.f32.mrb[0].mxu0
      %v3397 = vpop.f32.mrb[0].mxu0
      %v3398 = vadd.f32 0.0, %v3397
      %v3399 = vpop.f32.mrb[0].mxu0
      %3400 = vdwg.mxu0
      %3401 = vmatprep.subr.bf16.mxu0 0
      %3402 = vmatpush1.bf16.msra.mxu0 %v3304
      %3403 = vmatprep.subr.bf16.mxu0 0
      %3404 = vmatpush1.bf16.msra.mxu0 %v3305
      %3405 = vmatprep.subr.bf16.mxu0 0
      %3406 = vmatpush1.bf16.msra.mxu0 %v3306
      %3407 = vmatprep.subr.bf16.mxu0 0
      %3408 = vmatpush1.bf16.msra.mxu0 %v3307
      %3409 = vmatprep.subr.bf16.mxu0 0
      %3410 = vmatpush1.bf16.msra.mxu0 %v3308
      %3411 = vmatprep.subr.bf16.mxu0 0
      %3412 = vmatpush1.bf16.msra.mxu0 %v3309
      %3413 = vmatprep.subr.bf16.mxu0 0
      %3414 = vmatpush1.bf16.msra.mxu0 %v3310
      %3415 = vmatprep.subr.bf16.mxu0 0
      %3416 = vmatpush1.bf16.msra.mxu0 %v3311
      %3417 = vmatprep.subr.bf16.mxu0 0
      %3418 = vmatpush1.bf16.msra.mxu0 0
      %3419 = vmatprep.subr.bf16.mxu0 0
      %3420 = vmatpush1.bf16.msra.mxu0 0
      %3421 = vmatprep.subr.bf16.mxu0 0
      %3422 = vmatpush1.bf16.msra.mxu0 0
      %3423 = vmatprep.subr.bf16.mxu0 0
      %3424 = vmatpush1.bf16.msra.mxu0 0
      %3425 = vmatprep.subr.bf16.mxu0 0
      %3426 = vmatpush1.bf16.msra.mxu0 0
      %3427 = vmatprep.subr.bf16.mxu0 0
      %3428 = vmatpush1.bf16.msra.mxu0 0
      %3429 = vmatprep.subr.bf16.mxu0 0
      %3430 = vmatpush1.bf16.msra.mxu0 0
      %3431 = vmatprep.subr.bf16.mxu0 0
      %3432 = vmatpush1.bf16.msra.mxu0 0
      %3433 = vmatprep.mubr.bf16.mxu0 0
      %3434 = vmatmul.mubr.bf16.gmra.mrb[0].mxu0 %v3135
      %v3435 = vpop.f32.mrb[0].mxu0
      %v3436 = vadd.f32 %v3371, %v3435
      %v3437 = vpop.f32.mrb[0].mxu0
      %v3438 = vpop.f32.mrb[0].mxu0
      %v3439 = vadd.f32 %v3374, %v3438
      %v3440 = vpop.f32.mrb[0].mxu0
      %3441 = vmatprep.mubr.bf16.mxu0 0
      %3442 = vmatmul.mubr.bf16.gmra.mrb[0].mxu0 %v3136
      %v3443 = vpop.f32.mrb[0].mxu0
      %v3444 = vadd.f32 %v3379, %v3443
      %v3445 = vpop.f32.mrb[0].mxu0
      %v3446 = vpop.f32.mrb[0].mxu0
      %v3447 = vadd.f32 %v3382, %v3446
      %v3448 = vpop.f32.mrb[0].mxu0
      %3449 = vmatprep.mubr.bf16.mxu0 0
      %3450 = vmatmul.mubr.bf16.gmra.mrb[0].mxu0 %v3137
      %v3451 = vpop.f32.mrb[0].mxu0
      %v3452 = vadd.f32 %v3387, %v3451
      %v3453 = vpop.f32.mrb[0].mxu0
      %v3454 = vpop.f32.mrb[0].mxu0
      %v3455 = vadd.f32 %v3390, %v3454
      %v3456 = vpop.f32.mrb[0].mxu0
      %3457 = vmatprep.mubr.bf16.mxu0 0
      %3458 = vmatmul.mubr.bf16.gmra.mrb[0].mxu0 %v3138
      %v3459 = vpop.f32.mrb[0].mxu0
      %v3460 = vadd.f32 %v3395, %v3459
      %v3461 = vpop.f32.mrb[0].mxu0
      %v3462 = vpop.f32.mrb[0].mxu0
      %v3463 = vadd.f32 %v3398, %v3462
      %v3464 = vpop.f32.mrb[0].mxu0
      %3465 = vdwg.mxu0
      %v3466 = vadd.f32 %v2894, %v3436
      %v3467 = vadd.f32 %v2895, %v3439
      %v3468 = vadd.f32 %v2896, %v3444
      %v3469 = vadd.f32 %v2897, %v3447
      %v3470 = vadd.f32 %v2898, %v3452
      %v3471 = vadd.f32 %v2899, %v3455
      %v3472 = vadd.f32 %v2900, %v3460
      %v3473 = vadd.f32 %v2901, %v3463
      %v3474 = vmax.f32 %v3466, 0.0
      %v3475 = vmax.f32 %v3467, 0.0
      %v3476 = vmax.f32 %v3468, 0.0
      %v3477 = vmax.f32 %v3469, 0.0
      %v3478 = vmax.f32 %v3470, 0.0
      %v3479 = vmax.f32 %v3471, 0.0
      %v3480 = vmax.f32 %v3472, 0.0
      %v3481 = vmax.f32 %v3473, 0.0
      %3482 = vst [vmem:[%s256] sm:$0xff] %v3474
      %3483 = vst [vmem:[%s256 + $0x8] sm:$0xff] %v3475
      %3484 = vst [vmem:[%s256 + $0x10] sm:$0xff] %v3476
      %3485 = vst [vmem:[%s256 + $0x18] sm:$0xff] %v3477
      %3486 = vst [vmem:[%s256 + $0x20] sm:$0xff] %v3478
      %3487 = vst [vmem:[%s256 + $0x28] sm:$0xff] %v3479
      %3488 = vst [vmem:[%s256 + $0x30] sm:$0xff] %v3480
      %3489 = vst [vmem:[%s256 + $0x38] sm:$0xff] %v3481
      %p3490 = scmp.lt.s32.totalorder %s17, 1
      %s3491 = scalar_select %p3490, %s17, 1
      %s3492 = smul.addr %s3491, 8
      %s3493 = smul.addr %s3492, 8
      %s3494 = scalar_lea.vmem %s6, %s3493
      // Predicated region
      $region45: #{residual_block_forward.1} parent=43 // pred_check
        %p3495 = pneg %p166
      $region46: #{residual_block_forward.1} parent=43 // pred_check_branch
        %3497 = sbr.rel (%p3495) target = $region48
      $region47: #{residual_block_forward.1} parent=43 // pred_region
        _
      $region48: #{residual_block_forward.1} parent=43 // pred_fallthru
        _
    $region44: #{residual_block_forward.1} parent=5 // pred_fallthru
      _
    %p3498 = scmp.le.s32.totalorder 2, %s12
    // Predicated region
    $region49: #{residual_block_forward.1} parent=5 // pred_check
      %p3499 = pneg %p3498
    $region50: #{residual_block_forward.1} parent=5 // pred_check_branch
      %3501 = sbr.rel (%p3499) target = $region52
    $region51: #{residual_block_forward.1} parent=5 // pred_region
      %s3502 = ssub.s32 %s12, 2
      // Predicated region
      $region53: #{residual_block_forward.1} parent=51 // pred_check
        %p3503 = pneg %p172
      $region54: #{residual_block_forward.1} parent=51 // pred_check_branch
        %3505 = sbr.rel (%p3503) target = $region56
      $region55: #{residual_block_forward.1} parent=51 // pred_region
        %p3506 = scmp.lt.s32.totalorder %s18, 1
        %s3507 = scalar_select %p3506, %s18, 1
        %s3508 = smul.addr %s3507, 8
        %s3509 = smul.addr %s3508, 8
        %s3510 = scalar_lea.vmem %s6, %s3509
      $region56: #{residual_block_forward.1} parent=51 // pred_fallthru
        _
    $region52: #{residual_block_forward.1} parent=5 // pred_fallthru
      _
  $region6: #{residual_block_forward.1} parent=0 // loop_footer
    %s16 = sadd.s32 1, %s12
  $region7: #{residual_block_forward.1} parent=0 // loop_footer_branch
    %11 = sbr.rel target = $region3
  $region8: #{residual_block_forward.1} parent=0 // loop_exit
    _

</llo_original>
